<compile_context>
chip_gen: v7x
topology: tpu7x:2x2x1
jax: 0.10.0
libtpu: 0.0.40
codegen_flags: <defaults>
</compile_context>

<pallas_src>
import functools

import jax
import jax.numpy as jnp
from jax.experimental import pallas as pl
from jax.experimental.pallas import tpu as pltpu


# ----------------------------- Pallas kernel --------------------------------
def _sindy_forward_kernel(
    x_ref,
    we0_ref, be0_ref,
    we1_ref, be1_ref,
    we2_ref, be2_ref,   # last encoder layer (produces z), un-padded
    wf_ref, bf_ref,     # fused bottleneck: we2 @ wd0, be2 @ wd0 + bd0
    wd1_ref, bd1_ref,
    wd2_ref, bd2_ref,
    xdec_ref, z_ref,
):
    def act(h):
        # Numerically-stable sigmoid: clamp, then exp + approx reciprocal (both EUP).
        h = jnp.clip(h, -60.0, 60.0)
        return pl.reciprocal(1.0 + jnp.exp(-h), approx=True)

    def linear(h, w_ref, b_ref):
        # bf16 MXU operands, f32 accumulation, f32 bias add.
        return (
            jnp.dot(h.astype(jnp.bfloat16), w_ref[...],
                    preferred_element_type=jnp.float32)
            + b_ref[...]
        )

    x = x_ref[...]                                   # (tile, input_dim) bf16

    # Encoder
    h1 = act(linear(x, we0_ref, be0_ref))            # (tile, 64)
    h2 = act(linear(h1, we1_ref, be1_ref))           # (tile, 32)
    z_ref[...] = linear(h2, we2_ref, be2_ref).astype(z_ref.dtype)   # (tile, latent)

    # Decoder (first layer fused through the latent bottleneck: uses h2, not z)
    d1 = act(linear(h2, wf_ref, bf_ref))             # (tile, 32)
    d2 = act(linear(d1, wd1_ref, bd1_ref))           # (tile, 64)
    xdec_ref[...] = linear(d2, wd2_ref, bd2_ref).astype(xdec_ref.dtype)


# --------------------------- One-time param prep ------------------------------
def prepare_params(enc_params, dec_params):
    """Hoisted, call-once weight preparation.

    enc_params / dec_params: lists of (W[in,out], b[1,out]) (already transposed
    relative to PyTorch nn.Linear).  Returns the flat tuple of kernel weight
    arguments: bf16 weights, f32 biases, with the latent bottleneck fused.
    """
    assert len(enc_params) == 3 and len(dec_params) == 3, "kernel is fixed to widths of length 2"
    (we0, be0), (we1, be1), (we2, be2) = [(w, b) for (w, b) in enc_params]
    (wd0, bd0), (wd1, bd1), (wd2, bd2) = [(w, b) for (w, b) in dec_params]

    # Fused bottleneck, computed in f32 BEFORE the bf16 cast (exact in f32).
    wf = we2.astype(jnp.float32) @ wd0.astype(jnp.float32)                    # (32, 32)
    bf = be2.astype(jnp.float32) @ wd0.astype(jnp.float32) + bd0.astype(jnp.float32)

    def w_(w):
        return jnp.asarray(w).astype(jnp.bfloat16)

    def b_(b):
        return jnp.asarray(b).astype(jnp.float32).reshape(1, -1)

    flat = (
        w_(we0), b_(be0),
        w_(we1), b_(be1),
        w_(we2), b_(be2),
        w_(wf),  b_(bf),
        w_(wd1), b_(bd1),
        w_(wd2), b_(bd2),
    )
    latent_dim = we2.shape[1]
    return flat, latent_dim


# ------------------------------ Wrapper --------------------------------------
def _round_up(a, m):
    return ((a + m - 1) // m) * m


def _num_tensorcores():
    """Best-effort count of TensorCores sharing one Pallas grid (megacore)."""
    try:
        kind = jax.devices()[0].device_kind.lower()
    except Exception:
        return 1
    if "v7" in kind or "v4" in kind:
        return 2
    return 1


@functools.partial(jax.jit, static_argnames=("latent_dim", "batch_tile"))
def sindy_forward(x, weight_args, *, latent_dim, batch_tile=1024):
    """Forward pass of SindyNet: returns (x_decode, z).

    `weight_args` comes from `prepare_params` (already cast / fused); this
    function is fully jitted so pad/cast/slice ops fuse with the pallas_call.
    """
    n, input_dim = x.shape
    num_tc = _num_tensorcores()

    # Tile: as large as possible (one step per core), multiple of 8, capped.
    tile = min(batch_tile, _round_up(-(-n // num_tc), 8))
    tile = _round_up(tile, 8)
    n_pad = _round_up(n, tile)
    grid = (n_pad // tile,)

    x_p = x
    if n_pad != n:
        x_p = jnp.pad(x, ((0, n_pad - n), (0, 0)))
    x_p = x_p.astype(jnp.bfloat16)

    def full_spec(arr):
        # Broadcast weight/bias: whole array resident, same block every grid step.
        return pl.BlockSpec(arr.shape, lambda i: (0, 0))

    in_specs = [pl.BlockSpec((tile, input_dim), lambda i: (i, 0))]
    in_specs += [full_spec(a) for a in weight_args]

    out_shape = (
        jax.ShapeDtypeStruct((n_pad, input_dim), jnp.float32),   # x_decode
        jax.ShapeDtypeStruct((n_pad, latent_dim), jnp.float32),  # z (narrow)
    )
    out_specs = (
        pl.BlockSpec((tile, input_dim), lambda i: (i, 0)),
        pl.BlockSpec((tile, latent_dim), lambda i: (i, 0)),
    )

    fn = pl.pallas_call(
        _sindy_forward_kernel,
        out_shape=out_shape,
        grid_spec=pltpu.PrefetchScalarGridSpec(
            num_scalar_prefetch=0,
            grid=grid,
            in_specs=in_specs,
            out_specs=out_specs,
        ),
        compiler_params=pltpu.CompilerParams(
            dimension_semantics=("parallel",),
        ),
    )
    x_decode_p, z_p = fn(x_p, *weight_args)
    return x_decode_p[:n], z_p[:n]


# --------------------------- Parameter init ----------------------------------
def _xavier_uniform(key, fan_in, fan_out, dtype=jnp.float32):
    # Matches torch.nn.init.xavier_uniform_ (gain=1); symmetric in fan_in/out,
    # so initializing the (in, out)-transposed weight gives the same bound.
    bound = jnp.sqrt(6.0 / (fan_in + fan_out)).astype(dtype)
    return jax.random.uniform(
        key, (fan_in, fan_out), dtype=dtype, minval=-bound, maxval=bound
    )


def make_params(key, input_dim, widths, latent_dim):
    """Build encoder/decoder Linear params exactly as SindyNet.__init__ does.

    Returns lists of (W[in,out], b[1,out]); biases are zero (nn.init.constant_).
    """
    enc_dims = [input_dim] + list(widths) + [latent_dim]
    dec_dims = [latent_dim] + list(widths[::-1]) + [input_dim]

    enc_params, dec_params = [], []
    for d_in, d_out in zip(enc_dims[:-1], enc_dims[1:]):
        key, sub = jax.random.split(key)
        enc_params.append(
            (_xavier_uniform(sub, d_in, d_out), jnp.zeros((1, d_out), jnp.float32))
        )
    for d_in, d_out in zip(dec_dims[:-1], dec_dims[1:]):
        key, sub = jax.random.split(key)
        dec_params.append(
            (_xavier_uniform(sub, d_in, d_out), jnp.zeros((1, d_out), jnp.float32))
        )
    return enc_params, dec_params


# --------------------------- Pure-JAX reference -------------------------------
def ref_forward(x, enc_params, dec_params):
    h = x
    for i, (w, b) in enumerate(enc_params):
        h = h @ w + b
        if i != len(enc_params) - 1:
            h = jax.nn.sigmoid(h)
    z = h
    for i, (w, b) in enumerate(dec_params):
        h = h @ w + b
        if i != len(dec_params) - 1:
            h = jax.nn.sigmoid(h)
    return h, z


# ------------------------------- Main -----------------------------------------
if __name__ == "__main__":
    # Shapes consistent with the module's params:
    #   params['input_dim'] = 128, params['widths'] = [64, 32],
    #   params['latent_dim'] = 8, params['activation'] = 'sigmoid'
    input_dim = 128
    widths = [64, 32]
    latent_dim = 8

    key = jax.random.PRNGKey(0)
    key, xkey, x2key, pkey = jax.random.split(key, 4)

    enc_params, dec_params = make_params(pkey, input_dim, widths, latent_dim)
    weight_args, ldim = prepare_params(enc_params, dec_params)  # one-time prep

    def check(x):
        x_decode, z = sindy_forward(x, weight_args, latent_dim=ldim, batch_tile=1024)
        x_decode = jax.block_until_ready(x_decode)
        z = jax.block_until_ready(z)
        x_decode_ref, z_ref = ref_forward(x, enc_params, dec_params)
        n = x.shape[0]
        assert x_decode.shape == (n, input_dim)
        assert z.shape == (n, latent_dim)
        assert bool(jnp.all(jnp.isfinite(x_decode))) and bool(jnp.all(jnp.isfinite(z)))
        # Kernel uses bf16 MXU operands + approx reciprocal -> loose tolerance.
        assert jnp.allclose(x_decode, x_decode_ref, atol=2e-2, rtol=2e-2)
        assert jnp.allclose(z, z_ref, atol=2e-2, rtol=2e-2)

    # Main case: one grid step per TensorCore (1 on v5e/v6e, 2 on v7x).
    x = jax.random.normal(xkey, (512, input_dim), dtype=jnp.float32)
    check(x)

    # Ragged batch: exercises the padding path.
    x_small = jax.random.normal(x2key, (37, input_dim), dtype=jnp.float32)
    check(x_small)

    # TODO(synk): loss/derivative helpers (sindy_predict, dz, Theta, losses) are
    # not part of forward() and are left unimplemented.
    print("KERNEL_OK")
</pallas_src>

<mosaic_0001>
module attributes {stable_mosaic.version = 11 : i64} {
  func.func @_sindy_forward_kernel(%arg0: i32, %arg1: memref<512x128xbf16, #tpu.memory_space<vmem>>, %arg2: memref<128x64xbf16, #tpu.memory_space<vmem>>, %arg3: memref<1x64xf32, #tpu.memory_space<vmem>>, %arg4: memref<64x32xbf16, #tpu.memory_space<vmem>>, %arg5: memref<1x32xf32, #tpu.memory_space<vmem>>, %arg6: memref<32x8xbf16, #tpu.memory_space<vmem>>, %arg7: memref<1x8xf32, #tpu.memory_space<vmem>>, %arg8: memref<32x32xbf16, #tpu.memory_space<vmem>>, %arg9: memref<1x32xf32, #tpu.memory_space<vmem>>, %arg10: memref<32x64xbf16, #tpu.memory_space<vmem>>, %arg11: memref<1x64xf32, #tpu.memory_space<vmem>>, %arg12: memref<64x128xbf16, #tpu.memory_space<vmem>>, %arg13: memref<1x128xf32, #tpu.memory_space<vmem>>, %arg14: memref<512x128xf32, #tpu.memory_space<vmem>>, %arg15: memref<512x8xf32, #tpu.memory_space<vmem>>) attributes {dimension_semantics = [#tpu.dimension_semantics<parallel>], iteration_bounds = array<i64: 1>, scalar_prefetch = 0 : i64, scratch_operands = 0 : i64, tpu.core_type = #tpu.core_type<tc>, window_params = [{transform_indices = @transform_0, window_bounds = array<i64: 512, 128>}, {pipeline_mode = #tpu.pipeline_mode<synchronous>, transform_indices = @transform_1, window_bounds = array<i64: 128, 64>}, {pipeline_mode = #tpu.pipeline_mode<synchronous>, transform_indices = @transform_2, window_bounds = array<i64: 1, 64>}, {pipeline_mode = #tpu.pipeline_mode<synchronous>, transform_indices = @transform_3, window_bounds = array<i64: 64, 32>}, {pipeline_mode = #tpu.pipeline_mode<synchronous>, transform_indices = @transform_4, window_bounds = array<i64: 1, 32>}, {pipeline_mode = #tpu.pipeline_mode<synchronous>, transform_indices = @transform_5, window_bounds = array<i64: 32, 8>}, {pipeline_mode = #tpu.pipeline_mode<synchronous>, transform_indices = @transform_6, window_bounds = array<i64: 1, 8>}, {pipeline_mode = #tpu.pipeline_mode<synchronous>, transform_indices = @transform_7, window_bounds = array<i64: 32, 32>}, {pipeline_mode = #tpu.pipeline_mode<synchronous>, transform_indices = @transform_8, window_bounds = array<i64: 1, 32>}, {pipeline_mode = #tpu.pipeline_mode<synchronous>, transform_indices = @transform_9, window_bounds = array<i64: 32, 64>}, {pipeline_mode = #tpu.pipeline_mode<synchronous>, transform_indices = @transform_10, window_bounds = array<i64: 1, 64>}, {pipeline_mode = #tpu.pipeline_mode<synchronous>, transform_indices = @transform_11, window_bounds = array<i64: 64, 128>}, {pipeline_mode = #tpu.pipeline_mode<synchronous>, transform_indices = @transform_12, window_bounds = array<i64: 1, 128>}, {transform_indices = @transform_13, window_bounds = array<i64: 512, 128>}, {transform_indices = @transform_14, window_bounds = array<i64: 512, 8>}]} {
    %c0 = arith.constant 0 : index
    %c0_0 = arith.constant 0 : index
    %0 = vector.load %arg1[%c0, %c0_0] : memref<512x128xbf16, #tpu.memory_space<vmem>>, vector<512x128xbf16>
    %c0_1 = arith.constant 0 : index
    %c0_2 = arith.constant 0 : index
    %1 = vector.load %arg2[%c0_1, %c0_2] : memref<128x64xbf16, #tpu.memory_space<vmem>>, vector<128x64xbf16>
    %cst = arith.constant dense<0.000000e+00> : vector<512x64xf32>
    %2 = tpu.matmul %0, %1, %cst {dimension_numbers = #tpu.dot_dimension_numbers<[1], [0], [0], [1], [0, 0, 1, 1], [], []>} : vector<512x128xbf16>, vector<128x64xbf16>, vector<512x64xf32> -> vector<512x64xf32>
    %c0_3 = arith.constant 0 : index
    %c0_4 = arith.constant 0 : index
    %3 = vector.load %arg3[%c0_3, %c0_4] : memref<1x64xf32, #tpu.memory_space<vmem>>, vector<1x64xf32>
    %4 = vector.broadcast %3 : vector<1x64xf32> to vector<512x64xf32>
    %5 = arith.addf %2, %4 : vector<512x64xf32>
    %cst_5 = arith.constant -6.000000e+01 : f32
    %cst_6 = arith.constant 6.000000e+01 : f32
    %6 = vector.broadcast %cst_5 : f32 to vector<512x64xf32>
    %7 = arith.maximumf %6, %5 : vector<512x64xf32>
    %8 = vector.broadcast %cst_6 : f32 to vector<512x64xf32>
    %9 = arith.minimumf %8, %7 : vector<512x64xf32>
    %cst_7 = arith.constant 0.000000e+00 : f32
    %10 = vector.broadcast %cst_7 : f32 to vector<512x64xf32>
    %11 = arith.subf %10, %9 : vector<512x64xf32>
    %12 = math.exp %11 : vector<512x64xf32>
    %cst_8 = arith.constant 1.000000e+00 : f32
    %13 = vector.broadcast %cst_8 : f32 to vector<512x64xf32>
    %14 = arith.addf %13, %12 : vector<512x64xf32>
    %15 = tpu.reciprocal %14 {approx = true} : vector<512x64xf32> -> vector<512x64xf32>
    %16 = arith.truncf %15 : vector<512x64xf32> to vector<512x64xbf16>
    %c0_9 = arith.constant 0 : index
    %c0_10 = arith.constant 0 : index
    %17 = vector.load %arg4[%c0_9, %c0_10] : memref<64x32xbf16, #tpu.memory_space<vmem>>, vector<64x32xbf16>
    %cst_11 = arith.constant dense<0.000000e+00> : vector<512x32xf32>
    %18 = tpu.matmul %16, %17, %cst_11 {dimension_numbers = #tpu.dot_dimension_numbers<[1], [0], [0], [1], [0, 0, 1, 1], [], []>} : vector<512x64xbf16>, vector<64x32xbf16>, vector<512x32xf32> -> vector<512x32xf32>
    %c0_12 = arith.constant 0 : index
    %c0_13 = arith.constant 0 : index
    %19 = vector.load %arg5[%c0_12, %c0_13] : memref<1x32xf32, #tpu.memory_space<vmem>>, vector<1x32xf32>
    %20 = vector.broadcast %19 : vector<1x32xf32> to vector<512x32xf32>
    %21 = arith.addf %18, %20 : vector<512x32xf32>
    %cst_14 = arith.constant -6.000000e+01 : f32
    %cst_15 = arith.constant 6.000000e+01 : f32
    %22 = vector.broadcast %cst_14 : f32 to vector<512x32xf32>
    %23 = arith.maximumf %22, %21 : vector<512x32xf32>
    %24 = vector.broadcast %cst_15 : f32 to vector<512x32xf32>
    %25 = arith.minimumf %24, %23 : vector<512x32xf32>
    %cst_16 = arith.constant 0.000000e+00 : f32
    %26 = vector.broadcast %cst_16 : f32 to vector<512x32xf32>
    %27 = arith.subf %26, %25 : vector<512x32xf32>
    %28 = math.exp %27 : vector<512x32xf32>
    %cst_17 = arith.constant 1.000000e+00 : f32
    %29 = vector.broadcast %cst_17 : f32 to vector<512x32xf32>
    %30 = arith.addf %29, %28 : vector<512x32xf32>
    %31 = tpu.reciprocal %30 {approx = true} : vector<512x32xf32> -> vector<512x32xf32>
    %32 = arith.truncf %31 : vector<512x32xf32> to vector<512x32xbf16>
    %c0_18 = arith.constant 0 : index
    %c0_19 = arith.constant 0 : index
    %33 = vector.load %arg6[%c0_18, %c0_19] : memref<32x8xbf16, #tpu.memory_space<vmem>>, vector<32x8xbf16>
    %cst_20 = arith.constant dense<0.000000e+00> : vector<512x8xf32>
    %34 = tpu.matmul %32, %33, %cst_20 {dimension_numbers = #tpu.dot_dimension_numbers<[1], [0], [0], [1], [0, 0, 1, 1], [], []>} : vector<512x32xbf16>, vector<32x8xbf16>, vector<512x8xf32> -> vector<512x8xf32>
    %c0_21 = arith.constant 0 : index
    %c0_22 = arith.constant 0 : index
    %35 = vector.load %arg7[%c0_21, %c0_22] : memref<1x8xf32, #tpu.memory_space<vmem>>, vector<1x8xf32>
    %36 = vector.broadcast %35 : vector<1x8xf32> to vector<512x8xf32>
    %37 = arith.addf %34, %36 : vector<512x8xf32>
    %c0_23 = arith.constant 0 : index
    %c0_24 = arith.constant 0 : index
    %38 = vector.load %arg15[%c0_23, %c0_24] : memref<512x8xf32, #tpu.memory_space<vmem>>, vector<512x8xf32>
    tpu.vector_store %arg15[%c0_23, %c0_24], %37 {strides = array<i32>} : memref<512x8xf32, #tpu.memory_space<vmem>>, vector<512x8xf32>,
    %39 = arith.truncf %31 : vector<512x32xf32> to vector<512x32xbf16>
    %c0_25 = arith.constant 0 : index
    %c0_26 = arith.constant 0 : index
    %40 = vector.load %arg8[%c0_25, %c0_26] : memref<32x32xbf16, #tpu.memory_space<vmem>>, vector<32x32xbf16>
    %cst_27 = arith.constant dense<0.000000e+00> : vector<512x32xf32>
    %41 = tpu.matmul %39, %40, %cst_27 {dimension_numbers = #tpu.dot_dimension_numbers<[1], [0], [0], [1], [0, 0, 1, 1], [], []>} : vector<512x32xbf16>, vector<32x32xbf16>, vector<512x32xf32> -> vector<512x32xf32>
    %c0_28 = arith.constant 0 : index
    %c0_29 = arith.constant 0 : index
    %42 = vector.load %arg9[%c0_28, %c0_29] : memref<1x32xf32, #tpu.memory_space<vmem>>, vector<1x32xf32>
    %43 = vector.broadcast %42 : vector<1x32xf32> to vector<512x32xf32>
    %44 = arith.addf %41, %43 : vector<512x32xf32>
    %cst_30 = arith.constant -6.000000e+01 : f32
    %cst_31 = arith.constant 6.000000e+01 : f32
    %45 = vector.broadcast %cst_30 : f32 to vector<512x32xf32>
    %46 = arith.maximumf %45, %44 : vector<512x32xf32>
    %47 = vector.broadcast %cst_31 : f32 to vector<512x32xf32>
    %48 = arith.minimumf %47, %46 : vector<512x32xf32>
    %cst_32 = arith.constant 0.000000e+00 : f32
    %49 = vector.broadcast %cst_32 : f32 to vector<512x32xf32>
    %50 = arith.subf %49, %48 : vector<512x32xf32>
    %51 = math.exp %50 : vector<512x32xf32>
    %cst_33 = arith.constant 1.000000e+00 : f32
    %52 = vector.broadcast %cst_33 : f32 to vector<512x32xf32>
    %53 = arith.addf %52, %51 : vector<512x32xf32>
    %54 = tpu.reciprocal %53 {approx = true} : vector<512x32xf32> -> vector<512x32xf32>
    %55 = arith.truncf %54 : vector<512x32xf32> to vector<512x32xbf16>
    %c0_34 = arith.constant 0 : index
    %c0_35 = arith.constant 0 : index
    %56 = vector.load %arg10[%c0_34, %c0_35] : memref<32x64xbf16, #tpu.memory_space<vmem>>, vector<32x64xbf16>
    %cst_36 = arith.constant dense<0.000000e+00> : vector<512x64xf32>
    %57 = tpu.matmul %55, %56, %cst_36 {dimension_numbers = #tpu.dot_dimension_numbers<[1], [0], [0], [1], [0, 0, 1, 1], [], []>} : vector<512x32xbf16>, vector<32x64xbf16>, vector<512x64xf32> -> vector<512x64xf32>
    %c0_37 = arith.constant 0 : index
    %c0_38 = arith.constant 0 : index
    %58 = vector.load %arg11[%c0_37, %c0_38] : memref<1x64xf32, #tpu.memory_space<vmem>>, vector<1x64xf32>
    %59 = vector.broadcast %58 : vector<1x64xf32> to vector<512x64xf32>
    %60 = arith.addf %57, %59 : vector<512x64xf32>
    %cst_39 = arith.constant -6.000000e+01 : f32
    %cst_40 = arith.constant 6.000000e+01 : f32
    %61 = vector.broadcast %cst_39 : f32 to vector<512x64xf32>
    %62 = arith.maximumf %61, %60 : vector<512x64xf32>
    %63 = vector.broadcast %cst_40 : f32 to vector<512x64xf32>
    %64 = arith.minimumf %63, %62 : vector<512x64xf32>
    %cst_41 = arith.constant 0.000000e+00 : f32
    %65 = vector.broadcast %cst_41 : f32 to vector<512x64xf32>
    %66 = arith.subf %65, %64 : vector<512x64xf32>
    %67 = math.exp %66 : vector<512x64xf32>
    %cst_42 = arith.constant 1.000000e+00 : f32
    %68 = vector.broadcast %cst_42 : f32 to vector<512x64xf32>
    %69 = arith.addf %68, %67 : vector<512x64xf32>
    %70 = tpu.reciprocal %69 {approx = true} : vector<512x64xf32> -> vector<512x64xf32>
    %71 = arith.truncf %70 : vector<512x64xf32> to vector<512x64xbf16>
    %c0_43 = arith.constant 0 : index
    %c0_44 = arith.constant 0 : index
    %72 = vector.load %arg12[%c0_43, %c0_44] : memref<64x128xbf16, #tpu.memory_space<vmem>>, vector<64x128xbf16>
    %cst_45 = arith.constant dense<0.000000e+00> : vector<512x128xf32>
    %73 = tpu.matmul %71, %72, %cst_45 {dimension_numbers = #tpu.dot_dimension_numbers<[1], [0], [0], [1], [0, 0, 1, 1], [], []>} : vector<512x64xbf16>, vector<64x128xbf16>, vector<512x128xf32> -> vector<512x128xf32>
    %c0_46 = arith.constant 0 : index
    %c0_47 = arith.constant 0 : index
    %74 = vector.load %arg13[%c0_46, %c0_47] : memref<1x128xf32, #tpu.memory_space<vmem>>, vector<1x128xf32>
    %75 = vector.broadcast %74 : vector<1x128xf32> to vector<512x128xf32>
    %76 = arith.addf %73, %75 : vector<512x128xf32>
    %c0_48 = arith.constant 0 : index
    %c0_49 = arith.constant 0 : index
    %77 = vector.load %arg14[%c0_48, %c0_49] : memref<512x128xf32, #tpu.memory_space<vmem>>, vector<512x128xf32>
    tpu.vector_store %arg14[%c0_48, %c0_49], %76 {strides = array<i32>} : memref<512x128xf32, #tpu.memory_space<vmem>>, vector<512x128xf32>,
    return
  }
  func.func @transform_0(%arg0: i32) -> (i32, i32) {
    %c0_i32 = arith.constant 0 : i32
    %c0_i32_0 = arith.constant 0 : i32
    return %arg0, %c0_i32 : i32, i32
  }
  func.func @transform_1(%arg0: i32) -> (i32, i32) {
    %c0_i32 = arith.constant 0 : i32
    %c0_i32_0 = arith.constant 0 : i32
    %c0_i32_1 = arith.constant 0 : i32
    return %c0_i32, %c0_i32_0 : i32, i32
  }
  func.func @transform_2(%arg0: i32) -> (i32, i32) {
    %c0_i32 = arith.constant 0 : i32
    %c0_i32_0 = arith.constant 0 : i32
    %c0_i32_1 = arith.constant 0 : i32
    return %c0_i32, %c0_i32_0 : i32, i32
  }
  func.func @transform_3(%arg0: i32) -> (i32, i32) {
    %c0_i32 = arith.constant 0 : i32
    %c0_i32_0 = arith.constant 0 : i32
    %c0_i32_1 = arith.constant 0 : i32
    return %c0_i32, %c0_i32_0 : i32, i32
  }
  func.func @transform_4(%arg0: i32) -> (i32, i32) {
    %c0_i32 = arith.constant 0 : i32
    %c0_i32_0 = arith.constant 0 : i32
    %c0_i32_1 = arith.constant 0 : i32
    return %c0_i32, %c0_i32_0 : i32, i32
  }
  func.func @transform_5(%arg0: i32) -> (i32, i32) {
    %c0_i32 = arith.constant 0 : i32
    %c0_i32_0 = arith.constant 0 : i32
    %c0_i32_1 = arith.constant 0 : i32
    return %c0_i32, %c0_i32_0 : i32, i32
  }
  func.func @transform_6(%arg0: i32) -> (i32, i32) {
    %c0_i32 = arith.constant 0 : i32
    %c0_i32_0 = arith.constant 0 : i32
    %c0_i32_1 = arith.constant 0 : i32
    return %c0_i32, %c0_i32_0 : i32, i32
  }
  func.func @transform_7(%arg0: i32) -> (i32, i32) {
    %c0_i32 = arith.constant 0 : i32
    %c0_i32_0 = arith.constant 0 : i32
    %c0_i32_1 = arith.constant 0 : i32
    return %c0_i32, %c0_i32_0 : i32, i32
  }
  func.func @transform_8(%arg0: i32) -> (i32, i32) {
    %c0_i32 = arith.constant 0 : i32
    %c0_i32_0 = arith.constant 0 : i32
    %c0_i32_1 = arith.constant 0 : i32
    return %c0_i32, %c0_i32_0 : i32, i32
  }
  func.func @transform_9(%arg0: i32) -> (i32, i32) {
    %c0_i32 = arith.constant 0 : i32
    %c0_i32_0 = arith.constant 0 : i32
    %c0_i32_1 = arith.constant 0 : i32
    return %c0_i32, %c0_i32_0 : i32, i32
  }
  func.func @transform_10(%arg0: i32) -> (i32, i32) {
    %c0_i32 = arith.constant 0 : i32
    %c0_i32_0 = arith.constant 0 : i32
    %c0_i32_1 = arith.constant 0 : i32
    return %c0_i32, %c0_i32_0 : i32, i32
  }
  func.func @transform_11(%arg0: i32) -> (i32, i32) {
    %c0_i32 = arith.constant 0 : i32
    %c0_i32_0 = arith.constant 0 : i32
    %c0_i32_1 = arith.constant 0 : i32
    return %c0_i32, %c0_i32_0 : i32, i32
  }
  func.func @transform_12(%arg0: i32) -> (i32, i32) {
    %c0_i32 = arith.constant 0 : i32
    %c0_i32_0 = arith.constant 0 : i32
    %c0_i32_1 = arith.constant 0 : i32
    return %c0_i32, %c0_i32_0 : i32, i32
  }
  func.func @transform_13(%arg0: i32) -> (i32, i32) {
    %c0_i32 = arith.constant 0 : i32
    %c0_i32_0 = arith.constant 0 : i32
    return %arg0, %c0_i32 : i32, i32
  }
  func.func @transform_14(%arg0: i32) -> (i32, i32) {
    %c0_i32 = arith.constant 0 : i32
    %c0_i32_0 = arith.constant 0 : i32
    return %arg0, %c0_i32 : i32, i32
  }
}

</mosaic_0001>

<llo_original>
// kernel: sindy_forward.1
$region0: #{sindy_forward.1}
  #allocation0 [shape = 'u32[]', space=smem, size = 0x4, offset = 0x4, fixed_abs, tag = 'smem constant byte address 0x4 - core index']
  #allocation1 [shape = 'u32[144,128]{1,0:T(1,128)}', space=vmem, size = 0x12000, scoped, tag = 'internal scratch']
  %s0 = inlined_call_operand.vmem [shape: bf16[512,128], index: 0, kind: input, shape index: {}]
  %s1 = inlined_call_operand.vmem [shape: bf16[128,64], index: 1, kind: input, shape index: {}]
  %s2 = inlined_call_operand.vmem [shape: f32[1,64], index: 2, kind: input, shape index: {}]
  %s3 = inlined_call_operand.vmem [shape: bf16[64,32], index: 3, kind: input, shape index: {}]
  %s4 = inlined_call_operand.vmem [shape: f32[1,32], index: 4, kind: input, shape index: {}]
  %s5 = inlined_call_operand.vmem [shape: bf16[32,8], index: 5, kind: input, shape index: {}]
  %s6 = inlined_call_operand.vmem [shape: f32[1,8], index: 6, kind: input, shape index: {}]
  %s7 = inlined_call_operand.vmem [shape: bf16[32,32], index: 7, kind: input, shape index: {}]
  %s8 = inlined_call_operand.vmem [shape: f32[1,32], index: 8, kind: input, shape index: {}]
  %s9 = inlined_call_operand.vmem [shape: bf16[32,64], index: 9, kind: input, shape index: {}]
  %s10 = inlined_call_operand.vmem [shape: f32[1,64], index: 10, kind: input, shape index: {}]
  %s11 = inlined_call_operand.vmem [shape: bf16[64,128], index: 11, kind: input, shape index: {}]
  %s12 = inlined_call_operand.vmem [shape: f32[1,128], index: 12, kind: input, shape index: {}]
  %s13 = inlined_call_operand.hbm [shape: f32[512,128], index: 13, kind: output, shape index: {0}]
  %s14 = inlined_call_operand.vmem [shape: f32[512,8], index: 14, kind: output, shape index: {1}]
  %15 = xla_tuple %s13, %s14
  %s16 = sld [smem:[#allocation0]]
  $region70: #{sindy_forward.1} parent=0
    _
  %s18 = ssub.s32 1, %s16
  %s19 = scalar_select 0, %s18, %s16
  $region1: #{sindy_forward.1} parent=0
    #allocation2 [shape = 'u8[262144]{0}', space=vmem, size = 0x40000, scoped, tag = 'output window, operand 0, single buffered']
    #allocation3 [shape = 's32[1]{0}', space=sflag, size = 0x4, scoped, tag = 'scoped memory for sindy_forward.1']
    %20 = vsyncpa [#allocation3], 0
    // Predicated region
    $region2: #{sindy_forward.1} parent=1 // pred_check
      _
    $region3: #{sindy_forward.1} parent=1 // pred_check_branch
      %22 = sbr.rel (0) target = $region5
    $region4: #{sindy_forward.1} parent=1 // pred_region
      _
    $region5: #{sindy_forward.1} parent=1 // pred_fallthru
      _
    // Predicated region
    $region6: #{sindy_forward.1} parent=1 // pred_check
      _
    $region7: #{sindy_forward.1} parent=1 // pred_check_branch
      %24 = sbr.rel (0) target = $region9
    $region8: #{sindy_forward.1} parent=1 // pred_region
      _
    $region9: #{sindy_forward.1} parent=1 // pred_fallthru
      _
    // Predicated region
    $region10: #{sindy_forward.1} parent=1 // pred_check
      _
    $region11: #{sindy_forward.1} parent=1 // pred_check_branch
      %26 = sbr.rel (0) target = $region13
    $region12: #{sindy_forward.1} parent=1 // pred_region
      _
    $region13: #{sindy_forward.1} parent=1 // pred_fallthru
      _
    // Predicated region
    $region14: #{sindy_forward.1} parent=1 // pred_check
      _
    $region15: #{sindy_forward.1} parent=1 // pred_check_branch
      %28 = sbr.rel (0) target = $region17
    $region16: #{sindy_forward.1} parent=1 // pred_region
      _
    $region17: #{sindy_forward.1} parent=1 // pred_fallthru
      _
    // Predicated region
    $region18: #{sindy_forward.1} parent=1 // pred_check
      _
    $region19: #{sindy_forward.1} parent=1 // pred_check_branch
      %30 = sbr.rel (0) target = $region21
    $region20: #{sindy_forward.1} parent=1 // pred_region
      _
    $region21: #{sindy_forward.1} parent=1 // pred_fallthru
      _
    // Predicated region
    $region22: #{sindy_forward.1} parent=1 // pred_check
      _
    $region23: #{sindy_forward.1} parent=1 // pred_check_branch
      %32 = sbr.rel (0) target = $region25
    $region24: #{sindy_forward.1} parent=1 // pred_region
      _
    $region25: #{sindy_forward.1} parent=1 // pred_fallthru
      _
    // Predicated region
    $region26: #{sindy_forward.1} parent=1 // pred_check
      _
    $region27: #{sindy_forward.1} parent=1 // pred_check_branch
      %34 = sbr.rel (0) target = $region29
    $region28: #{sindy_forward.1} parent=1 // pred_region
      _
    $region29: #{sindy_forward.1} parent=1 // pred_fallthru
      _
    // Predicated region
    $region30: #{sindy_forward.1} parent=1 // pred_check
      _
    $region31: #{sindy_forward.1} parent=1 // pred_check_branch
      %36 = sbr.rel (0) target = $region33
    $region32: #{sindy_forward.1} parent=1 // pred_region
      _
    $region33: #{sindy_forward.1} parent=1 // pred_fallthru
      _
    // Predicated region
    $region34: #{sindy_forward.1} parent=1 // pred_check
      _
    $region35: #{sindy_forward.1} parent=1 // pred_check_branch
      %38 = sbr.rel (0) target = $region37
    $region36: #{sindy_forward.1} parent=1 // pred_region
      _
    $region37: #{sindy_forward.1} parent=1 // pred_fallthru
      _
    // Predicated region
    $region38: #{sindy_forward.1} parent=1 // pred_check
      _
    $region39: #{sindy_forward.1} parent=1 // pred_check_branch
      %40 = sbr.rel (0) target = $region41
    $region40: #{sindy_forward.1} parent=1 // pred_region
      _
    $region41: #{sindy_forward.1} parent=1 // pred_fallthru
      _
    // Predicated region
    $region42: #{sindy_forward.1} parent=1 // pred_check
      _
    $region43: #{sindy_forward.1} parent=1 // pred_check_branch
      %42 = sbr.rel (0) target = $region45
    $region44: #{sindy_forward.1} parent=1 // pred_region
      _
    $region45: #{sindy_forward.1} parent=1 // pred_fallthru
      _
    // Predicated region
    $region46: #{sindy_forward.1} parent=1 // pred_check
      _
    $region47: #{sindy_forward.1} parent=1 // pred_check_branch
      %44 = sbr.rel (0) target = $region49
    $region48: #{sindy_forward.1} parent=1 // pred_region
      _
    $region49: #{sindy_forward.1} parent=1 // pred_fallthru
      _
    // Predicated region
    $region50: #{sindy_forward.1} parent=1 // pred_check
      _
    $region51: #{sindy_forward.1} parent=1 // pred_check_branch
      %46 = sbr.rel (0) target = $region53
    $region52: #{sindy_forward.1} parent=1 // pred_region
      _
    $region53: #{sindy_forward.1} parent=1 // pred_fallthru
      _
    %v48 = vld [vmem:[%s0] sm:$0xf]
    %v49 = vld [vmem:[%s0 + $0x4] sm:$0xf]
    %v50 = vld [vmem:[%s0 + $0x8] sm:$0xf]
    %v51 = vld [vmem:[%s0 + $0xc] sm:$0xf]
    %v52 = vld [vmem:[%s0 + $0x10] sm:$0xf]
    %v53 = vld [vmem:[%s0 + $0x14] sm:$0xf]
    %v54 = vld [vmem:[%s0 + $0x18] sm:$0xf]
    %v55 = vld [vmem:[%s0 + $0x1c] sm:$0xf]
    %v56 = vld [vmem:[%s0 + $0x20] sm:$0xf]
    %v57 = vld [vmem:[%s0 + $0x24] sm:$0xf]
    %v58 = vld [vmem:[%s0 + $0x28] sm:$0xf]
    %v59 = vld [vmem:[%s0 + $0x2c] sm:$0xf]
    %v60 = vld [vmem:[%s0 + $0x30] sm:$0xf]
    %v61 = vld [vmem:[%s0 + $0x34] sm:$0xf]
    %v62 = vld [vmem:[%s0 + $0x38] sm:$0xf]
    %v63 = vld [vmem:[%s0 + $0x3c] sm:$0xf]
    %v64 = vld [vmem:[%s0 + $0x40] sm:$0xf]
    %v65 = vld [vmem:[%s0 + $0x44] sm:$0xf]
    %v66 = vld [vmem:[%s0 + $0x48] sm:$0xf]
    %v67 = vld [vmem:[%s0 + $0x4c] sm:$0xf]
    %v68 = vld [vmem:[%s0 + $0x50] sm:$0xf]
    %v69 = vld [vmem:[%s0 + $0x54] sm:$0xf]
    %v70 = vld [vmem:[%s0 + $0x58] sm:$0xf]
    %v71 = vld [vmem:[%s0 + $0x5c] sm:$0xf]
    %v72 = vld [vmem:[%s0 + $0x60] sm:$0xf]
    %v73 = vld [vmem:[%s0 + $0x64] sm:$0xf]
    %v74 = vld [vmem:[%s0 + $0x68] sm:$0xf]
    %v75 = vld [vmem:[%s0 + $0x6c] sm:$0xf]
    %v76 = vld [vmem:[%s0 + $0x70] sm:$0xf]
    %v77 = vld [vmem:[%s0 + $0x74] sm:$0xf]
    %v78 = vld [vmem:[%s0 + $0x78] sm:$0xf]
    %v79 = vld [vmem:[%s0 + $0x7c] sm:$0xf]
    %v80 = vld [vmem:[%s0 + $0x80] sm:$0xf]
    %v81 = vld [vmem:[%s0 + $0x84] sm:$0xf]
    %v82 = vld [vmem:[%s0 + $0x88] sm:$0xf]
    %v83 = vld [vmem:[%s0 + $0x8c] sm:$0xf]
    %v84 = vld [vmem:[%s0 + $0x90] sm:$0xf]
    %v85 = vld [vmem:[%s0 + $0x94] sm:$0xf]
    %v86 = vld [vmem:[%s0 + $0x98] sm:$0xf]
    %v87 = vld [vmem:[%s0 + $0x9c] sm:$0xf]
    %v88 = vld [vmem:[%s0 + $0xa0] sm:$0xf]
    %v89 = vld [vmem:[%s0 + $0xa4] sm:$0xf]
    %v90 = vld [vmem:[%s0 + $0xa8] sm:$0xf]
    %v91 = vld [vmem:[%s0 + $0xac] sm:$0xf]
    %v92 = vld [vmem:[%s0 + $0xb0] sm:$0xf]
    %v93 = vld [vmem:[%s0 + $0xb4] sm:$0xf]
    %v94 = vld [vmem:[%s0 + $0xb8] sm:$0xf]
    %v95 = vld [vmem:[%s0 + $0xbc] sm:$0xf]
    %v96 = vld [vmem:[%s0 + $0xc0] sm:$0xf]
    %v97 = vld [vmem:[%s0 + $0xc4] sm:$0xf]
    %v98 = vld [vmem:[%s0 + $0xc8] sm:$0xf]
    %v99 = vld [vmem:[%s0 + $0xcc] sm:$0xf]
    %v100 = vld [vmem:[%s0 + $0xd0] sm:$0xf]
    %v101 = vld [vmem:[%s0 + $0xd4] sm:$0xf]
    %v102 = vld [vmem:[%s0 + $0xd8] sm:$0xf]
    %v103 = vld [vmem:[%s0 + $0xdc] sm:$0xf]
    %v104 = vld [vmem:[%s0 + $0xe0] sm:$0xf]
    %v105 = vld [vmem:[%s0 + $0xe4] sm:$0xf]
    %v106 = vld [vmem:[%s0 + $0xe8] sm:$0xf]
    %v107 = vld [vmem:[%s0 + $0xec] sm:$0xf]
    %v108 = vld [vmem:[%s0 + $0xf0] sm:$0xf]
    %v109 = vld [vmem:[%s0 + $0xf4] sm:$0xf]
    %v110 = vld [vmem:[%s0 + $0xf8] sm:$0xf]
    %v111 = vld [vmem:[%s0 + $0xfc] sm:$0xf]
    %v112 = vld [vmem:[%s1] sm:$0xf]
    %v113 = vld [vmem:[%s1 + $0x4] sm:$0xf]
    %v114 = vld [vmem:[%s1 + $0x8] sm:$0xf]
    %v115 = vld [vmem:[%s1 + $0xc] sm:$0xf]
    %v116 = vld [vmem:[%s1 + $0x10] sm:$0xf]
    %v117 = vld [vmem:[%s1 + $0x14] sm:$0xf]
    %v118 = vld [vmem:[%s1 + $0x18] sm:$0xf]
    %v119 = vld [vmem:[%s1 + $0x1c] sm:$0xf]
    %v120 = vld [vmem:[%s1 + $0x20] sm:$0xf]
    %v121 = vld [vmem:[%s1 + $0x24] sm:$0xf]
    %v122 = vld [vmem:[%s1 + $0x28] sm:$0xf]
    %v123 = vld [vmem:[%s1 + $0x2c] sm:$0xf]
    %v124 = vld [vmem:[%s1 + $0x30] sm:$0xf]
    %v125 = vld [vmem:[%s1 + $0x34] sm:$0xf]
    %v126 = vld [vmem:[%s1 + $0x38] sm:$0xf]
    %v127 = vld [vmem:[%s1 + $0x3c] sm:$0xf]
    %v128 = vld [vmem:[%s2] sm:$0x1]
    %v130 = vlaneseq
    %v131 = vshrl.u32 %v130, 7
    %v132 = vsub.s32 0, %v131
    %v133 = vrot.slane %v128, %v132
    %v199 = vunpack.c.l.b16 %v48
    %v200 = vunpack.c.l.b16 %v49
    %v201 = vunpack.c.l.b16 %v50
    %v202 = vunpack.c.l.b16 %v51
    %v203 = vunpack.c.l.b16 %v52
    %v204 = vunpack.c.l.b16 %v53
    %v205 = vunpack.c.l.b16 %v54
    %v206 = vunpack.c.l.b16 %v55
    %v207 = vunpack.c.l.b16 %v56
    %v208 = vunpack.c.l.b16 %v57
    %v209 = vunpack.c.l.b16 %v58
    %v210 = vunpack.c.l.b16 %v59
    %v211 = vunpack.c.l.b16 %v60
    %v212 = vunpack.c.l.b16 %v61
    %v213 = vunpack.c.l.b16 %v62
    %v214 = vunpack.c.l.b16 %v63
    %v215 = vunpack.c.l.b16 %v64
    %v216 = vunpack.c.l.b16 %v65
    %v217 = vunpack.c.l.b16 %v66
    %v218 = vunpack.c.l.b16 %v67
    %v219 = vunpack.c.l.b16 %v68
    %v220 = vunpack.c.l.b16 %v69
    %v221 = vunpack.c.l.b16 %v70
    %v222 = vunpack.c.l.b16 %v71
    %v223 = vunpack.c.l.b16 %v72
    %v224 = vunpack.c.l.b16 %v73
    %v225 = vunpack.c.l.b16 %v74
    %v226 = vunpack.c.l.b16 %v75
    %v227 = vunpack.c.l.b16 %v76
    %v228 = vunpack.c.l.b16 %v77
    %v229 = vunpack.c.l.b16 %v78
    %v230 = vunpack.c.l.b16 %v79
    %v231 = vunpack.c.l.b16 %v80
    %v232 = vunpack.c.l.b16 %v81
    %v233 = vunpack.c.l.b16 %v82
    %v234 = vunpack.c.l.b16 %v83
    %v235 = vunpack.c.l.b16 %v84
    %v236 = vunpack.c.l.b16 %v85
    %v237 = vunpack.c.l.b16 %v86
    %v238 = vunpack.c.l.b16 %v87
    %v239 = vunpack.c.l.b16 %v88
    %v240 = vunpack.c.l.b16 %v89
    %v241 = vunpack.c.l.b16 %v90
    %v242 = vunpack.c.l.b16 %v91
    %v243 = vunpack.c.l.b16 %v92
    %v244 = vunpack.c.l.b16 %v93
    %v245 = vunpack.c.l.b16 %v94
    %v246 = vunpack.c.l.b16 %v95
    %v247 = vunpack.c.l.b16 %v96
    %v248 = vunpack.c.l.b16 %v97
    %v249 = vunpack.c.l.b16 %v98
    %v250 = vunpack.c.l.b16 %v99
    %v251 = vunpack.c.l.b16 %v100
    %v252 = vunpack.c.l.b16 %v101
    %v253 = vunpack.c.l.b16 %v102
    %v254 = vunpack.c.l.b16 %v103
    %v255 = vunpack.c.l.b16 %v104
    %v256 = vunpack.c.l.b16 %v105
    %v257 = vunpack.c.l.b16 %v106
    %v258 = vunpack.c.l.b16 %v107
    %v259 = vunpack.c.l.b16 %v108
    %v260 = vunpack.c.l.b16 %v109
    %v261 = vunpack.c.l.b16 %v110
    %v262 = vunpack.c.l.b16 %v111
    %v263 = vpack.c.b16 %v200, %v199
    %v264 = vpack.c.b16 %v202, %v201
    %v265 = vpack.c.b16 %v204, %v203
    %v266 = vpack.c.b16 %v206, %v205
    %v267 = vpack.c.b16 %v208, %v207
    %v268 = vpack.c.b16 %v210, %v209
    %v269 = vpack.c.b16 %v212, %v211
    %v270 = vpack.c.b16 %v214, %v213
    %v271 = vpack.c.b16 %v216, %v215
    %v272 = vpack.c.b16 %v218, %v217
    %v273 = vpack.c.b16 %v220, %v219
    %v274 = vpack.c.b16 %v222, %v221
    %v275 = vpack.c.b16 %v224, %v223
    %v276 = vpack.c.b16 %v226, %v225
    %v277 = vpack.c.b16 %v228, %v227
    %v278 = vpack.c.b16 %v230, %v229
    %v279 = vpack.c.b16 %v232, %v231
    %v280 = vpack.c.b16 %v234, %v233
    %v281 = vpack.c.b16 %v236, %v235
    %v282 = vpack.c.b16 %v238, %v237
    %v283 = vpack.c.b16 %v240, %v239
    %v284 = vpack.c.b16 %v242, %v241
    %v285 = vpack.c.b16 %v244, %v243
    %v286 = vpack.c.b16 %v246, %v245
    %v287 = vpack.c.b16 %v248, %v247
    %v288 = vpack.c.b16 %v250, %v249
    %v289 = vpack.c.b16 %v252, %v251
    %v290 = vpack.c.b16 %v254, %v253
    %v291 = vpack.c.b16 %v256, %v255
    %v292 = vpack.c.b16 %v258, %v257
    %v293 = vpack.c.b16 %v260, %v259
    %v294 = vpack.c.b16 %v262, %v261
    %v343 = vunpack.c.l.b16 %v112
    %v344 = vunpack.c.l.b16 %v113
    %v345 = vunpack.c.l.b16 %v114
    %v346 = vunpack.c.l.b16 %v115
    %v347 = vunpack.c.l.b16 %v116
    %v348 = vunpack.c.l.b16 %v117
    %v349 = vunpack.c.l.b16 %v118
    %v350 = vunpack.c.l.b16 %v119
    %v351 = vunpack.c.l.b16 %v120
    %v352 = vunpack.c.l.b16 %v121
    %v353 = vunpack.c.l.b16 %v122
    %v354 = vunpack.c.l.b16 %v123
    %v355 = vunpack.c.l.b16 %v124
    %v356 = vunpack.c.l.b16 %v125
    %v357 = vunpack.c.l.b16 %v126
    %v358 = vunpack.c.l.b16 %v127
    %v359 = vpack.c.b16 %v344, %v343
    %v360 = vpack.c.b16 %v346, %v345
    %v361 = vpack.c.b16 %v348, %v347
    %v362 = vpack.c.b16 %v350, %v349
    %v363 = vpack.c.b16 %v352, %v351
    %v364 = vpack.c.b16 %v354, %v353
    %v365 = vpack.c.b16 %v356, %v355
    %v366 = vpack.c.b16 %v358, %v357
    %375 = vmatprep.subr.bf16.mxu0 0
    %376 = vmatpush1.bf16.msra.mxu0 %v359
    %377 = vmatprep.subr.bf16.mxu0 0
    %378 = vmatpush1.bf16.msra.mxu0 %v360
    %379 = vmatprep.subr.bf16.mxu0 0
    %380 = vmatpush1.bf16.msra.mxu0 %v361
    %381 = vmatprep.subr.bf16.mxu0 0
    %382 = vmatpush1.bf16.msra.mxu0 %v362
    %383 = vmatprep.subr.bf16.mxu0 0
    %384 = vmatpush1.bf16.msra.mxu0 %v363
    %385 = vmatprep.subr.bf16.mxu0 0
    %386 = vmatpush1.bf16.msra.mxu0 %v364
    %387 = vmatprep.subr.bf16.mxu0 0
    %388 = vmatpush1.bf16.msra.mxu0 %v365
    %389 = vmatprep.subr.bf16.mxu0 0
    %390 = vmatpush1.bf16.msra.mxu0 %v366
    %391 = vmatprep.subr.bf16.mxu0 0
    %392 = vmatpush1.bf16.msra.mxu0 0
    %393 = vmatprep.subr.bf16.mxu0 0
    %394 = vmatpush1.bf16.msra.mxu0 0
    %395 = vmatprep.subr.bf16.mxu0 0
    %396 = vmatpush1.bf16.msra.mxu0 0
    %397 = vmatprep.subr.bf16.mxu0 0
    %398 = vmatpush1.bf16.msra.mxu0 0
    %399 = vmatprep.subr.bf16.mxu0 0
    %400 = vmatpush1.bf16.msra.mxu0 0
    %401 = vmatprep.subr.bf16.mxu0 0
    %402 = vmatpush1.bf16.msra.mxu0 0
    %403 = vmatprep.subr.bf16.mxu0 0
    %404 = vmatpush1.bf16.msra.mxu0 0
    %405 = vmatprep.subr.bf16.mxu0 0
    %406 = vmatpush1.bf16.msra.mxu0 0
    %407 = vmatprep.mubr.bf16.mxu0 0
    %408 = vmatmul.mubr.bf16.gmra.mrb[0].mxu0 %v263
    %v409 = vpop.f32.mrb[0].mxu0
    %v410 = vadd.f32 %v133, %v409
    %v411 = vpop.f32.mrb[0].mxu0
    %v412 = vpop.f32.mrb[0].mxu0
    %v413 = vadd.f32 %v133, %v412
    %v414 = vpop.f32.mrb[0].mxu0
    %415 = vmatprep.mubr.bf16.mxu0 0
    %416 = vmatmul.mubr.bf16.gmra.mrb[0].mxu0 %v264
    %v417 = vpop.f32.mrb[0].mxu0
    %v418 = vadd.f32 %v133, %v417
    %v419 = vpop.f32.mrb[0].mxu0
    %v420 = vpop.f32.mrb[0].mxu0
    %v421 = vadd.f32 %v133, %v420
    %v422 = vpop.f32.mrb[0].mxu0
    %423 = vmatprep.mubr.bf16.mxu0 0
    %424 = vmatmul.mubr.bf16.gmra.mrb[0].mxu0 %v265
    %v425 = vpop.f32.mrb[0].mxu0
    %v426 = vadd.f32 %v133, %v425
    %v427 = vpop.f32.mrb[0].mxu0
    %v428 = vpop.f32.mrb[0].mxu0
    %v429 = vadd.f32 %v133, %v428
    %v430 = vpop.f32.mrb[0].mxu0
    %431 = vmatprep.mubr.bf16.mxu0 0
    %432 = vmatmul.mubr.bf16.gmra.mrb[0].mxu0 %v266
    %v433 = vpop.f32.mrb[0].mxu0
    %v434 = vadd.f32 %v133, %v433
    %v435 = vpop.f32.mrb[0].mxu0
    %v436 = vpop.f32.mrb[0].mxu0
    %v437 = vadd.f32 %v133, %v436
    %v438 = vpop.f32.mrb[0].mxu0
    %439 = vmatprep.mubr.bf16.mxu0 0
    %440 = vmatmul.mubr.bf16.gmra.mrb[0].mxu0 %v267
    %v441 = vpop.f32.mrb[0].mxu0
    %v442 = vadd.f32 %v133, %v441
    %v443 = vpop.f32.mrb[0].mxu0
    %v444 = vpop.f32.mrb[0].mxu0
    %v445 = vadd.f32 %v133, %v444
    %v446 = vpop.f32.mrb[0].mxu0
    %447 = vmatprep.mubr.bf16.mxu0 0
    %448 = vmatmul.mubr.bf16.gmra.mrb[0].mxu0 %v268
    %v449 = vpop.f32.mrb[0].mxu0
    %v450 = vadd.f32 %v133, %v449
    %v451 = vpop.f32.mrb[0].mxu0
    %v452 = vpop.f32.mrb[0].mxu0
    %v453 = vadd.f32 %v133, %v452
    %v454 = vpop.f32.mrb[0].mxu0
    %455 = vmatprep.mubr.bf16.mxu0 0
    %456 = vmatmul.mubr.bf16.gmra.mrb[0].mxu0 %v269
    %v457 = vpop.f32.mrb[0].mxu0
    %v458 = vadd.f32 %v133, %v457
    %v459 = vpop.f32.mrb[0].mxu0
    %v460 = vpop.f32.mrb[0].mxu0
    %v461 = vadd.f32 %v133, %v460
    %v462 = vpop.f32.mrb[0].mxu0
    %463 = vmatprep.mubr.bf16.mxu0 0
    %464 = vmatmul.mubr.bf16.gmra.mrb[0].mxu0 %v270
    %v465 = vpop.f32.mrb[0].mxu0
    %v466 = vadd.f32 %v133, %v465
    %v467 = vpop.f32.mrb[0].mxu0
    %v468 = vpop.f32.mrb[0].mxu0
    %v469 = vadd.f32 %v133, %v468
    %v470 = vpop.f32.mrb[0].mxu0
    %471 = vmatprep.mubr.bf16.mxu0 0
    %472 = vmatmul.mubr.bf16.gmra.mrb[0].mxu0 %v271
    %v473 = vpop.f32.mrb[0].mxu0
    %v474 = vadd.f32 %v133, %v473
    %v475 = vpop.f32.mrb[0].mxu0
    %v476 = vpop.f32.mrb[0].mxu0
    %v477 = vadd.f32 %v133, %v476
    %v478 = vpop.f32.mrb[0].mxu0
    %479 = vmatprep.mubr.bf16.mxu0 0
    %480 = vmatmul.mubr.bf16.gmra.mrb[0].mxu0 %v272
    %v481 = vpop.f32.mrb[0].mxu0
    %v482 = vadd.f32 %v133, %v481
    %v483 = vpop.f32.mrb[0].mxu0
    %v484 = vpop.f32.mrb[0].mxu0
    %v485 = vadd.f32 %v133, %v484
    %v486 = vpop.f32.mrb[0].mxu0
    %487 = vmatprep.mubr.bf16.mxu0 0
    %488 = vmatmul.mubr.bf16.gmra.mrb[0].mxu0 %v273
    %v489 = vpop.f32.mrb[0].mxu0
    %v490 = vadd.f32 %v133, %v489
    %v491 = vpop.f32.mrb[0].mxu0
    %v492 = vpop.f32.mrb[0].mxu0
    %v493 = vadd.f32 %v133, %v492
    %v494 = vpop.f32.mrb[0].mxu0
    %495 = vmatprep.mubr.bf16.mxu0 0
    %496 = vmatmul.mubr.bf16.gmra.mrb[0].mxu0 %v274
    %v497 = vpop.f32.mrb[0].mxu0
    %v498 = vadd.f32 %v133, %v497
    %v499 = vpop.f32.mrb[0].mxu0
    %v500 = vpop.f32.mrb[0].mxu0
    %v501 = vadd.f32 %v133, %v500
    %v502 = vpop.f32.mrb[0].mxu0
    %503 = vmatprep.mubr.bf16.mxu0 0
    %504 = vmatmul.mubr.bf16.gmra.mrb[0].mxu0 %v275
    %v505 = vpop.f32.mrb[0].mxu0
    %v506 = vadd.f32 %v133, %v505
    %v507 = vpop.f32.mrb[0].mxu0
    %v508 = vpop.f32.mrb[0].mxu0
    %v509 = vadd.f32 %v133, %v508
    %v510 = vpop.f32.mrb[0].mxu0
    %511 = vmatprep.mubr.bf16.mxu0 0
    %512 = vmatmul.mubr.bf16.gmra.mrb[0].mxu0 %v276
    %v513 = vpop.f32.mrb[0].mxu0
    %v514 = vadd.f32 %v133, %v513
    %v515 = vpop.f32.mrb[0].mxu0
    %v516 = vpop.f32.mrb[0].mxu0
    %v517 = vadd.f32 %v133, %v516
    %v518 = vpop.f32.mrb[0].mxu0
    %519 = vmatprep.mubr.bf16.mxu0 0
    %520 = vmatmul.mubr.bf16.gmra.mrb[0].mxu0 %v277
    %v521 = vpop.f32.mrb[0].mxu0
    %v522 = vadd.f32 %v133, %v521
    %v523 = vpop.f32.mrb[0].mxu0
    %v524 = vpop.f32.mrb[0].mxu0
    %v525 = vadd.f32 %v133, %v524
    %v526 = vpop.f32.mrb[0].mxu0
    %527 = vmatprep.mubr.bf16.mxu0 0
    %528 = vmatmul.mubr.bf16.gmra.mrb[0].mxu0 %v278
    %v529 = vpop.f32.mrb[0].mxu0
    %v530 = vadd.f32 %v133, %v529
    %v531 = vpop.f32.mrb[0].mxu0
    %v532 = vpop.f32.mrb[0].mxu0
    %v533 = vadd.f32 %v133, %v532
    %v534 = vpop.f32.mrb[0].mxu0
    %535 = vmatprep.mubr.bf16.mxu0 0
    %536 = vmatmul.mubr.bf16.gmra.mrb[0].mxu0 %v279
    %v537 = vpop.f32.mrb[0].mxu0
    %v538 = vadd.f32 %v133, %v537
    %v539 = vpop.f32.mrb[0].mxu0
    %v540 = vpop.f32.mrb[0].mxu0
    %v541 = vadd.f32 %v133, %v540
    %v542 = vpop.f32.mrb[0].mxu0
    %543 = vmatprep.mubr.bf16.mxu0 0
    %544 = vmatmul.mubr.bf16.gmra.mrb[0].mxu0 %v280
    %v545 = vpop.f32.mrb[0].mxu0
    %v546 = vadd.f32 %v133, %v545
    %v547 = vpop.f32.mrb[0].mxu0
    %v548 = vpop.f32.mrb[0].mxu0
    %v549 = vadd.f32 %v133, %v548
    %v550 = vpop.f32.mrb[0].mxu0
    %551 = vmatprep.mubr.bf16.mxu0 0
    %552 = vmatmul.mubr.bf16.gmra.mrb[0].mxu0 %v281
    %v553 = vpop.f32.mrb[0].mxu0
    %v554 = vadd.f32 %v133, %v553
    %v555 = vpop.f32.mrb[0].mxu0
    %v556 = vpop.f32.mrb[0].mxu0
    %v557 = vadd.f32 %v133, %v556
    %v558 = vpop.f32.mrb[0].mxu0
    %559 = vmatprep.mubr.bf16.mxu0 0
    %560 = vmatmul.mubr.bf16.gmra.mrb[0].mxu0 %v282
    %v561 = vpop.f32.mrb[0].mxu0
    %v562 = vadd.f32 %v133, %v561
    %v563 = vpop.f32.mrb[0].mxu0
    %v564 = vpop.f32.mrb[0].mxu0
    %v565 = vadd.f32 %v133, %v564
    %v566 = vpop.f32.mrb[0].mxu0
    %567 = vmatprep.mubr.bf16.mxu0 0
    %568 = vmatmul.mubr.bf16.gmra.mrb[0].mxu0 %v283
    %v569 = vpop.f32.mrb[0].mxu0
    %v570 = vadd.f32 %v133, %v569
    %v571 = vpop.f32.mrb[0].mxu0
    %v572 = vpop.f32.mrb[0].mxu0
    %v573 = vadd.f32 %v133, %v572
    %v574 = vpop.f32.mrb[0].mxu0
    %575 = vmatprep.mubr.bf16.mxu0 0
    %576 = vmatmul.mubr.bf16.gmra.mrb[0].mxu0 %v284
    %v577 = vpop.f32.mrb[0].mxu0
    %v578 = vadd.f32 %v133, %v577
    %v579 = vpop.f32.mrb[0].mxu0
    %v580 = vpop.f32.mrb[0].mxu0
    %v581 = vadd.f32 %v133, %v580
    %v582 = vpop.f32.mrb[0].mxu0
    %583 = vmatprep.mubr.bf16.mxu0 0
    %584 = vmatmul.mubr.bf16.gmra.mrb[0].mxu0 %v285
    %v585 = vpop.f32.mrb[0].mxu0
    %v586 = vadd.f32 %v133, %v585
    %v587 = vpop.f32.mrb[0].mxu0
    %v588 = vpop.f32.mrb[0].mxu0
    %v589 = vadd.f32 %v133, %v588
    %v590 = vpop.f32.mrb[0].mxu0
    %591 = vmatprep.mubr.bf16.mxu0 0
    %592 = vmatmul.mubr.bf16.gmra.mrb[0].mxu0 %v286
    %v593 = vpop.f32.mrb[0].mxu0
    %v594 = vadd.f32 %v133, %v593
    %v595 = vpop.f32.mrb[0].mxu0
    %v596 = vpop.f32.mrb[0].mxu0
    %v597 = vadd.f32 %v133, %v596
    %v598 = vpop.f32.mrb[0].mxu0
    %599 = vmatprep.mubr.bf16.mxu0 0
    %600 = vmatmul.mubr.bf16.gmra.mrb[0].mxu0 %v287
    %v601 = vpop.f32.mrb[0].mxu0
    %v602 = vadd.f32 %v133, %v601
    %v603 = vpop.f32.mrb[0].mxu0
    %v604 = vpop.f32.mrb[0].mxu0
    %v605 = vadd.f32 %v133, %v604
    %v606 = vpop.f32.mrb[0].mxu0
    %607 = vmatprep.mubr.bf16.mxu0 0
    %608 = vmatmul.mubr.bf16.gmra.mrb[0].mxu0 %v288
    %v609 = vpop.f32.mrb[0].mxu0
    %v610 = vadd.f32 %v133, %v609
    %v611 = vpop.f32.mrb[0].mxu0
    %v612 = vpop.f32.mrb[0].mxu0
    %v613 = vadd.f32 %v133, %v612
    %v614 = vpop.f32.mrb[0].mxu0
    %615 = vmatprep.mubr.bf16.mxu0 0
    %616 = vmatmul.mubr.bf16.gmra.mrb[0].mxu0 %v289
    %v617 = vpop.f32.mrb[0].mxu0
    %v618 = vadd.f32 %v133, %v617
    %v619 = vpop.f32.mrb[0].mxu0
    %v620 = vpop.f32.mrb[0].mxu0
    %v621 = vadd.f32 %v133, %v620
    %v622 = vpop.f32.mrb[0].mxu0
    %623 = vmatprep.mubr.bf16.mxu0 0
    %624 = vmatmul.mubr.bf16.gmra.mrb[0].mxu0 %v290
    %v625 = vpop.f32.mrb[0].mxu0
    %v626 = vadd.f32 %v133, %v625
    %v627 = vpop.f32.mrb[0].mxu0
    %v628 = vpop.f32.mrb[0].mxu0
    %v629 = vadd.f32 %v133, %v628
    %v630 = vpop.f32.mrb[0].mxu0
    %631 = vmatprep.mubr.bf16.mxu0 0
    %632 = vmatmul.mubr.bf16.gmra.mrb[0].mxu0 %v291
    %v633 = vpop.f32.mrb[0].mxu0
    %v634 = vadd.f32 %v133, %v633
    %v635 = vpop.f32.mrb[0].mxu0
    %v636 = vpop.f32.mrb[0].mxu0
    %v637 = vadd.f32 %v133, %v636
    %v638 = vpop.f32.mrb[0].mxu0
    %639 = vmatprep.mubr.bf16.mxu0 0
    %640 = vmatmul.mubr.bf16.gmra.mrb[0].mxu0 %v292
    %v641 = vpop.f32.mrb[0].mxu0
    %v642 = vadd.f32 %v133, %v641
    %v643 = vpop.f32.mrb[0].mxu0
    %v644 = vpop.f32.mrb[0].mxu0
    %v645 = vadd.f32 %v133, %v644
    %v646 = vpop.f32.mrb[0].mxu0
    %647 = vmatprep.mubr.bf16.mxu0 0
    %648 = vmatmul.mubr.bf16.gmra.mrb[0].mxu0 %v293
    %v649 = vpop.f32.mrb[0].mxu0
    %v650 = vadd.f32 %v133, %v649
    %v651 = vpop.f32.mrb[0].mxu0
    %v652 = vpop.f32.mrb[0].mxu0
    %v653 = vadd.f32 %v133, %v652
    %v654 = vpop.f32.mrb[0].mxu0
    %655 = vmatprep.mubr.bf16.mxu0 0
    %656 = vmatmul.mubr.bf16.gmra.mrb[0].mxu0 %v294
    %v657 = vpop.f32.mrb[0].mxu0
    %v658 = vadd.f32 %v133, %v657
    %v659 = vpop.f32.mrb[0].mxu0
    %v660 = vpop.f32.mrb[0].mxu0
    %v661 = vadd.f32 %v133, %v660
    %v662 = vpop.f32.mrb[0].mxu0
    %663 = vdwg.mxu0
    %v664 = vmax.f32 %v410, -60.0
    %v665 = vmax.f32 %v413, -60.0
    %v666 = vmax.f32 %v418, -60.0
    %v667 = vmax.f32 %v421, -60.0
    %v668 = vmax.f32 %v426, -60.0
    %v669 = vmax.f32 %v429, -60.0
    %v670 = vmax.f32 %v434, -60.0
    %v671 = vmax.f32 %v437, -60.0
    %v672 = vmax.f32 %v442, -60.0
    %v673 = vmax.f32 %v445, -60.0
    %v674 = vmax.f32 %v450, -60.0
    %v675 = vmax.f32 %v453, -60.0
    %v676 = vmax.f32 %v458, -60.0
    %v677 = vmax.f32 %v461, -60.0
    %v678 = vmax.f32 %v466, -60.0
    %v679 = vmax.f32 %v469, -60.0
    %v680 = vmax.f32 %v474, -60.0
    %v681 = vmax.f32 %v477, -60.0
    %v682 = vmax.f32 %v482, -60.0
    %v683 = vmax.f32 %v485, -60.0
    %v684 = vmax.f32 %v490, -60.0
    %v685 = vmax.f32 %v493, -60.0
    %v686 = vmax.f32 %v498, -60.0
    %v687 = vmax.f32 %v501, -60.0
    %v688 = vmax.f32 %v506, -60.0
    %v689 = vmax.f32 %v509, -60.0
    %v690 = vmax.f32 %v514, -60.0
    %v691 = vmax.f32 %v517, -60.0
    %v692 = vmax.f32 %v522, -60.0
    %v693 = vmax.f32 %v525, -60.0
    %v694 = vmax.f32 %v530, -60.0
    %v695 = vmax.f32 %v533, -60.0
    %v696 = vmax.f32 %v538, -60.0
    %v697 = vmax.f32 %v541, -60.0
    %v698 = vmax.f32 %v546, -60.0
    %v699 = vmax.f32 %v549, -60.0
    %v700 = vmax.f32 %v554, -60.0
    %v701 = vmax.f32 %v557, -60.0
    %v702 = vmax.f32 %v562, -60.0
    %v703 = vmax.f32 %v565, -60.0
    %v704 = vmax.f32 %v570, -60.0
    %v705 = vmax.f32 %v573, -60.0
    %v706 = vmax.f32 %v578, -60.0
    %v707 = vmax.f32 %v581, -60.0
    %v708 = vmax.f32 %v586, -60.0
    %v709 = vmax.f32 %v589, -60.0
    %v710 = vmax.f32 %v594, -60.0
    %v711 = vmax.f32 %v597, -60.0
    %v712 = vmax.f32 %v602, -60.0
    %v713 = vmax.f32 %v605, -60.0
    %v714 = vmax.f32 %v610, -60.0
    %v715 = vmax.f32 %v613, -60.0
    %v716 = vmax.f32 %v618, -60.0
    %v717 = vmax.f32 %v621, -60.0
    %v718 = vmax.f32 %v626, -60.0
    %v719 = vmax.f32 %v629, -60.0
    %v720 = vmax.f32 %v634, -60.0
    %v721 = vmax.f32 %v637, -60.0
    %v722 = vmax.f32 %v642, -60.0
    %v723 = vmax.f32 %v645, -60.0
    %v724 = vmax.f32 %v650, -60.0
    %v725 = vmax.f32 %v653, -60.0
    %v726 = vmax.f32 %v658, -60.0
    %v727 = vmax.f32 %v661, -60.0
    %v728 = vmin.f32 %v664, 60.0
    %v729 = vmin.f32 %v665, 60.0
    %v730 = vmin.f32 %v666, 60.0
    %v731 = vmin.f32 %v667, 60.0
    %v732 = vmin.f32 %v668, 60.0
    %v733 = vmin.f32 %v669, 60.0
    %v734 = vmin.f32 %v670, 60.0
    %v735 = vmin.f32 %v671, 60.0
    %v736 = vmin.f32 %v672, 60.0
    %v737 = vmin.f32 %v673, 60.0
    %v738 = vmin.f32 %v674, 60.0
    %v739 = vmin.f32 %v675, 60.0
    %v740 = vmin.f32 %v676, 60.0
    %v741 = vmin.f32 %v677, 60.0
    %v742 = vmin.f32 %v678, 60.0
    %v743 = vmin.f32 %v679, 60.0
    %v744 = vmin.f32 %v680, 60.0
    %v745 = vmin.f32 %v681, 60.0
    %v746 = vmin.f32 %v682, 60.0
    %v747 = vmin.f32 %v683, 60.0
    %v748 = vmin.f32 %v684, 60.0
    %v749 = vmin.f32 %v685, 60.0
    %v750 = vmin.f32 %v686, 60.0
    %v751 = vmin.f32 %v687, 60.0
    %v752 = vmin.f32 %v688, 60.0
    %v753 = vmin.f32 %v689, 60.0
    %v754 = vmin.f32 %v690, 60.0
    %v755 = vmin.f32 %v691, 60.0
    %v756 = vmin.f32 %v692, 60.0
    %v757 = vmin.f32 %v693, 60.0
    %v758 = vmin.f32 %v694, 60.0
    %v759 = vmin.f32 %v695, 60.0
    %v760 = vmin.f32 %v696, 60.0
    %v761 = vmin.f32 %v697, 60.0
    %v762 = vmin.f32 %v698, 60.0
    %v763 = vmin.f32 %v699, 60.0
    %v764 = vmin.f32 %v700, 60.0
    %v765 = vmin.f32 %v701, 60.0
    %v766 = vmin.f32 %v702, 60.0
    %v767 = vmin.f32 %v703, 60.0
    %v768 = vmin.f32 %v704, 60.0
    %v769 = vmin.f32 %v705, 60.0
    %v770 = vmin.f32 %v706, 60.0
    %v771 = vmin.f32 %v707, 60.0
    %v772 = vmin.f32 %v708, 60.0
    %v773 = vmin.f32 %v709, 60.0
    %v774 = vmin.f32 %v710, 60.0
    %v775 = vmin.f32 %v711, 60.0
    %v776 = vmin.f32 %v712, 60.0
    %v777 = vmin.f32 %v713, 60.0
    %v778 = vmin.f32 %v714, 60.0
    %v779 = vmin.f32 %v715, 60.0
    %v780 = vmin.f32 %v716, 60.0
    %v781 = vmin.f32 %v717, 60.0
    %v782 = vmin.f32 %v718, 60.0
    %v783 = vmin.f32 %v719, 60.0
    %v784 = vmin.f32 %v720, 60.0
    %v785 = vmin.f32 %v721, 60.0
    %v786 = vmin.f32 %v722, 60.0
    %v787 = vmin.f32 %v723, 60.0
    %v788 = vmin.f32 %v724, 60.0
    %v789 = vmin.f32 %v725, 60.0
    %v790 = vmin.f32 %v726, 60.0
    %v791 = vmin.f32 %v727, 60.0
    %v792 = vsub.f32 0.0, %v728
    %v793 = vsub.f32 0.0, %v729
    %v794 = vsub.f32 0.0, %v730
    %v795 = vsub.f32 0.0, %v731
    %v796 = vsub.f32 0.0, %v732
    %v797 = vsub.f32 0.0, %v733
    %v798 = vsub.f32 0.0, %v734
    %v799 = vsub.f32 0.0, %v735
    %v800 = vsub.f32 0.0, %v736
    %v801 = vsub.f32 0.0, %v737
    %v802 = vsub.f32 0.0, %v738
    %v803 = vsub.f32 0.0, %v739
    %v804 = vsub.f32 0.0, %v740
    %v805 = vsub.f32 0.0, %v741
    %v806 = vsub.f32 0.0, %v742
    %v807 = vsub.f32 0.0, %v743
    %v808 = vsub.f32 0.0, %v744
    %v809 = vsub.f32 0.0, %v745
    %v810 = vsub.f32 0.0, %v746
    %v811 = vsub.f32 0.0, %v747
    %v812 = vsub.f32 0.0, %v748
    %v813 = vsub.f32 0.0, %v749
    %v814 = vsub.f32 0.0, %v750
    %v815 = vsub.f32 0.0, %v751
    %v816 = vsub.f32 0.0, %v752
    %v817 = vsub.f32 0.0, %v753
    %v818 = vsub.f32 0.0, %v754
    %v819 = vsub.f32 0.0, %v755
    %v820 = vsub.f32 0.0, %v756
    %v821 = vsub.f32 0.0, %v757
    %v822 = vsub.f32 0.0, %v758
    %v823 = vsub.f32 0.0, %v759
    %v824 = vsub.f32 0.0, %v760
    %v825 = vsub.f32 0.0, %v761
    %v826 = vsub.f32 0.0, %v762
    %v827 = vsub.f32 0.0, %v763
    %v828 = vsub.f32 0.0, %v764
    %v829 = vsub.f32 0.0, %v765
    %v830 = vsub.f32 0.0, %v766
    %v831 = vsub.f32 0.0, %v767
    %v832 = vsub.f32 0.0, %v768
    %v833 = vsub.f32 0.0, %v769
    %v834 = vsub.f32 0.0, %v770
    %v835 = vsub.f32 0.0, %v771
    %v836 = vsub.f32 0.0, %v772
    %v837 = vsub.f32 0.0, %v773
    %v838 = vsub.f32 0.0, %v774
    %v839 = vsub.f32 0.0, %v775
    %v840 = vsub.f32 0.0, %v776
    %v841 = vsub.f32 0.0, %v777
    %v842 = vsub.f32 0.0, %v778
    %v843 = vsub.f32 0.0, %v779
    %v844 = vsub.f32 0.0, %v780
    %v845 = vsub.f32 0.0, %v781
    %v846 = vsub.f32 0.0, %v782
    %v847 = vsub.f32 0.0, %v783
    %v848 = vsub.f32 0.0, %v784
    %v849 = vsub.f32 0.0, %v785
    %v850 = vsub.f32 0.0, %v786
    %v851 = vsub.f32 0.0, %v787
    %v852 = vsub.f32 0.0, %v788
    %v853 = vsub.f32 0.0, %v789
    %v854 = vsub.f32 0.0, %v790
    %v855 = vsub.f32 0.0, %v791
    %v856 = vmul.f32 %v792, 1.442695
    %v857 = vpow.pop %v856
    %v858 = vmul.f32 %v793, 1.442695
    %v859 = vpow.pop %v858
    %v860 = vmul.f32 %v794, 1.442695
    %v861 = vpow.pop %v860
    %v862 = vmul.f32 %v795, 1.442695
    %v863 = vpow.pop %v862
    %v864 = vmul.f32 %v796, 1.442695
    %v865 = vpow.pop %v864
    %v866 = vmul.f32 %v797, 1.442695
    %v867 = vpow.pop %v866
    %v868 = vmul.f32 %v798, 1.442695
    %v869 = vpow.pop %v868
    %v870 = vmul.f32 %v799, 1.442695
    %v871 = vpow.pop %v870
    %v872 = vmul.f32 %v800, 1.442695
    %v873 = vpow.pop %v872
    %v874 = vmul.f32 %v801, 1.442695
    %v875 = vpow.pop %v874
    %v876 = vmul.f32 %v802, 1.442695
    %v877 = vpow.pop %v876
    %v878 = vmul.f32 %v803, 1.442695
    %v879 = vpow.pop %v878
    %v880 = vmul.f32 %v804, 1.442695
    %v881 = vpow.pop %v880
    %v882 = vmul.f32 %v805, 1.442695
    %v883 = vpow.pop %v882
    %v884 = vmul.f32 %v806, 1.442695
    %v885 = vpow.pop %v884
    %v886 = vmul.f32 %v807, 1.442695
    %v887 = vpow.pop %v886
    %v888 = vmul.f32 %v808, 1.442695
    %v889 = vpow.pop %v888
    %v890 = vmul.f32 %v809, 1.442695
    %v891 = vpow.pop %v890
    %v892 = vmul.f32 %v810, 1.442695
    %v893 = vpow.pop %v892
    %v894 = vmul.f32 %v811, 1.442695
    %v895 = vpow.pop %v894
    %v896 = vmul.f32 %v812, 1.442695
    %v897 = vpow.pop %v896
    %v898 = vmul.f32 %v813, 1.442695
    %v899 = vpow.pop %v898
    %v900 = vmul.f32 %v814, 1.442695
    %v901 = vpow.pop %v900
    %v902 = vmul.f32 %v815, 1.442695
    %v903 = vpow.pop %v902
    %v904 = vmul.f32 %v816, 1.442695
    %v905 = vpow.pop %v904
    %v906 = vmul.f32 %v817, 1.442695
    %v907 = vpow.pop %v906
    %v908 = vmul.f32 %v818, 1.442695
    %v909 = vpow.pop %v908
    %v910 = vmul.f32 %v819, 1.442695
    %v911 = vpow.pop %v910
    %v912 = vmul.f32 %v820, 1.442695
    %v913 = vpow.pop %v912
    %v914 = vmul.f32 %v821, 1.442695
    %v915 = vpow.pop %v914
    %v916 = vmul.f32 %v822, 1.442695
    %v917 = vpow.pop %v916
    %v918 = vmul.f32 %v823, 1.442695
    %v919 = vpow.pop %v918
    %v920 = vmul.f32 %v824, 1.442695
    %v921 = vpow.pop %v920
    %v922 = vmul.f32 %v825, 1.442695
    %v923 = vpow.pop %v922
    %v924 = vmul.f32 %v826, 1.442695
    %v925 = vpow.pop %v924
    %v926 = vmul.f32 %v827, 1.442695
    %v927 = vpow.pop %v926
    %v928 = vmul.f32 %v828, 1.442695
    %v929 = vpow.pop %v928
    %v930 = vmul.f32 %v829, 1.442695
    %v931 = vpow.pop %v930
    %v932 = vmul.f32 %v830, 1.442695
    %v933 = vpow.pop %v932
    %v934 = vmul.f32 %v831, 1.442695
    %v935 = vpow.pop %v934
    %v936 = vmul.f32 %v832, 1.442695
    %v937 = vpow.pop %v936
    %v938 = vmul.f32 %v833, 1.442695
    %v939 = vpow.pop %v938
    %v940 = vmul.f32 %v834, 1.442695
    %v941 = vpow.pop %v940
    %v942 = vmul.f32 %v835, 1.442695
    %v943 = vpow.pop %v942
    %v944 = vmul.f32 %v836, 1.442695
    %v945 = vpow.pop %v944
    %v946 = vmul.f32 %v837, 1.442695
    %v947 = vpow.pop %v946
    %v948 = vmul.f32 %v838, 1.442695
    %v949 = vpow.pop %v948
    %v950 = vmul.f32 %v839, 1.442695
    %v951 = vpow.pop %v950
    %v952 = vmul.f32 %v840, 1.442695
    %v953 = vpow.pop %v952
    %v954 = vmul.f32 %v841, 1.442695
    %v955 = vpow.pop %v954
    %v956 = vmul.f32 %v842, 1.442695
    %v957 = vpow.pop %v956
    %v958 = vmul.f32 %v843, 1.442695
    %v959 = vpow.pop %v958
    %v960 = vmul.f32 %v844, 1.442695
    %v961 = vpow.pop %v960
    %v962 = vmul.f32 %v845, 1.442695
    %v963 = vpow.pop %v962
    %v964 = vmul.f32 %v846, 1.442695
    %v965 = vpow.pop %v964
    %v966 = vmul.f32 %v847, 1.442695
    %v967 = vpow.pop %v966
    %v968 = vmul.f32 %v848, 1.442695
    %v969 = vpow.pop %v968
    %v970 = vmul.f32 %v849, 1.442695
    %v971 = vpow.pop %v970
    %v972 = vmul.f32 %v850, 1.442695
    %v973 = vpow.pop %v972
    %v974 = vmul.f32 %v851, 1.442695
    %v975 = vpow.pop %v974
    %v976 = vmul.f32 %v852, 1.442695
    %v977 = vpow.pop %v976
    %v978 = vmul.f32 %v853, 1.442695
    %v979 = vpow.pop %v978
    %v980 = vmul.f32 %v854, 1.442695
    %v981 = vpow.pop %v980
    %v982 = vmul.f32 %v855, 1.442695
    %v983 = vpow.pop %v982
    %v984 = vadd.f32 %v857, 1.0
    %v985 = vadd.f32 %v859, 1.0
    %v986 = vadd.f32 %v861, 1.0
    %v987 = vadd.f32 %v863, 1.0
    %v988 = vadd.f32 %v865, 1.0
    %v989 = vadd.f32 %v867, 1.0
    %v990 = vadd.f32 %v869, 1.0
    %v991 = vadd.f32 %v871, 1.0
    %v992 = vadd.f32 %v873, 1.0
    %v993 = vadd.f32 %v875, 1.0
    %v994 = vadd.f32 %v877, 1.0
    %v995 = vadd.f32 %v879, 1.0
    %v996 = vadd.f32 %v881, 1.0
    %v997 = vadd.f32 %v883, 1.0
    %v998 = vadd.f32 %v885, 1.0
    %v999 = vadd.f32 %v887, 1.0
    %v1000 = vadd.f32 %v889, 1.0
    %v1001 = vadd.f32 %v891, 1.0
    %v1002 = vadd.f32 %v893, 1.0
    %v1003 = vadd.f32 %v895, 1.0
    %v1004 = vadd.f32 %v897, 1.0
    %v1005 = vadd.f32 %v899, 1.0
    %v1006 = vadd.f32 %v901, 1.0
    %v1007 = vadd.f32 %v903, 1.0
    %v1008 = vadd.f32 %v905, 1.0
    %v1009 = vadd.f32 %v907, 1.0
    %v1010 = vadd.f32 %v909, 1.0
    %v1011 = vadd.f32 %v911, 1.0
    %v1012 = vadd.f32 %v913, 1.0
    %v1013 = vadd.f32 %v915, 1.0
    %v1014 = vadd.f32 %v917, 1.0
    %v1015 = vadd.f32 %v919, 1.0
    %v1016 = vadd.f32 %v921, 1.0
    %v1017 = vadd.f32 %v923, 1.0
    %v1018 = vadd.f32 %v925, 1.0
    %v1019 = vadd.f32 %v927, 1.0
    %v1020 = vadd.f32 %v929, 1.0
    %v1021 = vadd.f32 %v931, 1.0
    %v1022 = vadd.f32 %v933, 1.0
    %v1023 = vadd.f32 %v935, 1.0
    %v1024 = vadd.f32 %v937, 1.0
    %v1025 = vadd.f32 %v939, 1.0
    %v1026 = vadd.f32 %v941, 1.0
    %v1027 = vadd.f32 %v943, 1.0
    %v1028 = vadd.f32 %v945, 1.0
    %v1029 = vadd.f32 %v947, 1.0
    %v1030 = vadd.f32 %v949, 1.0
    %v1031 = vadd.f32 %v951, 1.0
    %v1032 = vadd.f32 %v953, 1.0
    %v1033 = vadd.f32 %v955, 1.0
    %v1034 = vadd.f32 %v957, 1.0
    %v1035 = vadd.f32 %v959, 1.0
    %v1036 = vadd.f32 %v961, 1.0
    %v1037 = vadd.f32 %v963, 1.0
    %v1038 = vadd.f32 %v965, 1.0
    %v1039 = vadd.f32 %v967, 1.0
    %v1040 = vadd.f32 %v969, 1.0
    %v1041 = vadd.f32 %v971, 1.0
    %v1042 = vadd.f32 %v973, 1.0
    %v1043 = vadd.f32 %v975, 1.0
    %v1044 = vadd.f32 %v977, 1.0
    %v1045 = vadd.f32 %v979, 1.0
    %v1046 = vadd.f32 %v981, 1.0
    %v1047 = vadd.f32 %v983, 1.0
    %v1048 = vrcp.pop %v984
    %v1049 = vrcp.pop %v985
    %v1050 = vrcp.pop %v986
    %v1051 = vrcp.pop %v987
    %v1052 = vrcp.pop %v988
    %v1053 = vrcp.pop %v989
    %v1054 = vrcp.pop %v990
    %v1055 = vrcp.pop %v991
    %v1056 = vrcp.pop %v992
    %v1057 = vrcp.pop %v993
    %v1058 = vrcp.pop %v994
    %v1059 = vrcp.pop %v995
    %v1060 = vrcp.pop %v996
    %v1061 = vrcp.pop %v997
    %v1062 = vrcp.pop %v998
    %v1063 = vrcp.pop %v999
    %v1064 = vrcp.pop %v1000
    %v1065 = vrcp.pop %v1001
    %v1066 = vrcp.pop %v1002
    %v1067 = vrcp.pop %v1003
    %v1068 = vrcp.pop %v1004
    %v1069 = vrcp.pop %v1005
    %v1070 = vrcp.pop %v1006
    %v1071 = vrcp.pop %v1007
    %v1072 = vrcp.pop %v1008
    %v1073 = vrcp.pop %v1009
    %v1074 = vrcp.pop %v1010
    %v1075 = vrcp.pop %v1011
    %v1076 = vrcp.pop %v1012
    %v1077 = vrcp.pop %v1013
    %v1078 = vrcp.pop %v1014
    %v1079 = vrcp.pop %v1015
    %v1080 = vrcp.pop %v1016
    %v1081 = vrcp.pop %v1017
    %v1082 = vrcp.pop %v1018
    %v1083 = vrcp.pop %v1019
    %v1084 = vrcp.pop %v1020
    %v1085 = vrcp.pop %v1021
    %v1086 = vrcp.pop %v1022
    %v1087 = vrcp.pop %v1023
    %v1088 = vrcp.pop %v1024
    %v1089 = vrcp.pop %v1025
    %v1090 = vrcp.pop %v1026
    %v1091 = vrcp.pop %v1027
    %v1092 = vrcp.pop %v1028
    %v1093 = vrcp.pop %v1029
    %v1094 = vrcp.pop %v1030
    %v1095 = vrcp.pop %v1031
    %v1096 = vrcp.pop %v1032
    %v1097 = vrcp.pop %v1033
    %v1098 = vrcp.pop %v1034
    %v1099 = vrcp.pop %v1035
    %v1100 = vrcp.pop %v1036
    %v1101 = vrcp.pop %v1037
    %v1102 = vrcp.pop %v1038
    %v1103 = vrcp.pop %v1039
    %v1104 = vrcp.pop %v1040
    %v1105 = vrcp.pop %v1041
    %v1106 = vrcp.pop %v1042
    %v1107 = vrcp.pop %v1043
    %v1108 = vrcp.pop %v1044
    %v1109 = vrcp.pop %v1045
    %v1110 = vrcp.pop %v1046
    %v1111 = vrcp.pop %v1047
    %v1112 = vpack.c.bf16 %v1049, %v1048
    %v1113 = vpack.c.bf16 %v1051, %v1050
    %v1114 = vpack.c.bf16 %v1053, %v1052
    %v1115 = vpack.c.bf16 %v1055, %v1054
    %v1116 = vpack.c.bf16 %v1057, %v1056
    %v1117 = vpack.c.bf16 %v1059, %v1058
    %v1118 = vpack.c.bf16 %v1061, %v1060
    %v1119 = vpack.c.bf16 %v1063, %v1062
    %v1120 = vpack.c.bf16 %v1065, %v1064
    %v1121 = vpack.c.bf16 %v1067, %v1066
    %v1122 = vpack.c.bf16 %v1069, %v1068
    %v1123 = vpack.c.bf16 %v1071, %v1070
    %v1124 = vpack.c.bf16 %v1073, %v1072
    %v1125 = vpack.c.bf16 %v1075, %v1074
    %v1126 = vpack.c.bf16 %v1077, %v1076
    %v1127 = vpack.c.bf16 %v1079, %v1078
    %v1128 = vpack.c.bf16 %v1081, %v1080
    %v1129 = vpack.c.bf16 %v1083, %v1082
    %v1130 = vpack.c.bf16 %v1085, %v1084
    %v1131 = vpack.c.bf16 %v1087, %v1086
    %v1132 = vpack.c.bf16 %v1089, %v1088
    %v1133 = vpack.c.bf16 %v1091, %v1090
    %v1134 = vpack.c.bf16 %v1093, %v1092
    %v1135 = vpack.c.bf16 %v1095, %v1094
    %v1136 = vpack.c.bf16 %v1097, %v1096
    %v1137 = vpack.c.bf16 %v1099, %v1098
    %v1138 = vpack.c.bf16 %v1101, %v1100
    %v1139 = vpack.c.bf16 %v1103, %v1102
    %v1140 = vpack.c.bf16 %v1105, %v1104
    %v1141 = vpack.c.bf16 %v1107, %v1106
    %v1142 = vpack.c.bf16 %v1109, %v1108
    %v1143 = vpack.c.bf16 %v1111, %v1110
    %v1144 = vld [vmem:[%s3] sm:$0xf]
    %v1145 = vld [vmem:[%s3 + $0x4] sm:$0xf]
    %v1146 = vld [vmem:[%s3 + $0x8] sm:$0xf]
    %v1147 = vld [vmem:[%s3 + $0xc] sm:$0xf]
    %v1148 = vld [vmem:[%s3 + $0x10] sm:$0xf]
    %v1149 = vld [vmem:[%s3 + $0x14] sm:$0xf]
    %v1150 = vld [vmem:[%s3 + $0x18] sm:$0xf]
    %v1151 = vld [vmem:[%s3 + $0x1c] sm:$0xf]
    %v1152 = vld [vmem:[%s4] sm:$0x1]
    %v1154 = vlaneseq
    %v1155 = vshrl.u32 %v1154, 7
    %v1156 = vsub.s32 0, %v1155
    %v1157 = vrot.slane %v1152, %v1156
    %v1167 = vunpack.c.l.b16 %v1144
    %v1168 = vunpack.c.l.b16 %v1145
    %v1169 = vunpack.c.l.b16 %v1146
    %v1170 = vunpack.c.l.b16 %v1147
    %v1171 = vunpack.c.l.b16 %v1148
    %v1172 = vunpack.c.l.b16 %v1149
    %v1173 = vunpack.c.l.b16 %v1150
    %v1174 = vunpack.c.l.b16 %v1151
    %v1175 = vpack.c.b16 %v1168, %v1167
    %v1176 = vpack.c.b16 %v1170, %v1169
    %v1177 = vpack.c.b16 %v1172, %v1171
    %v1178 = vpack.c.b16 %v1174, %v1173
    %vm1183 = vcmask 523264
    %v1185 = vsel %vm1183, %v1112, 0
    %v1188 = vsel %vm1183, %v1113, 0
    %v1191 = vsel %vm1183, %v1114, 0
    %v1194 = vsel %vm1183, %v1115, 0
    %v1197 = vsel %vm1183, %v1116, 0
    %v1200 = vsel %vm1183, %v1117, 0
    %v1203 = vsel %vm1183, %v1118, 0
    %v1206 = vsel %vm1183, %v1119, 0
    %v1209 = vsel %vm1183, %v1120, 0
    %v1212 = vsel %vm1183, %v1121, 0
    %v1215 = vsel %vm1183, %v1122, 0
    %v1218 = vsel %vm1183, %v1123, 0
    %v1221 = vsel %vm1183, %v1124, 0
    %v1224 = vsel %vm1183, %v1125, 0
    %v1227 = vsel %vm1183, %v1126, 0
    %v1230 = vsel %vm1183, %v1127, 0
    %v1233 = vsel %vm1183, %v1128, 0
    %v1236 = vsel %vm1183, %v1129, 0
    %v1239 = vsel %vm1183, %v1130, 0
    %v1242 = vsel %vm1183, %v1131, 0
    %v1245 = vsel %vm1183, %v1132, 0
    %v1248 = vsel %vm1183, %v1133, 0
    %v1251 = vsel %vm1183, %v1134, 0
    %v1254 = vsel %vm1183, %v1135, 0
    %v1257 = vsel %vm1183, %v1136, 0
    %v1260 = vsel %vm1183, %v1137, 0
    %v1263 = vsel %vm1183, %v1138, 0
    %v1266 = vsel %vm1183, %v1139, 0
    %v1269 = vsel %vm1183, %v1140, 0
    %v1272 = vsel %vm1183, %v1141, 0
    %v1275 = vsel %vm1183, %v1142, 0
    %v1278 = vsel %vm1183, %v1143, 0
    %1280 = vmatprep.subr.bf16.mxu0 0
    %1281 = vmatpush1.bf16.msra.mxu0 %v1175
    %1282 = vmatprep.subr.bf16.mxu0 0
    %1283 = vmatpush1.bf16.msra.mxu0 %v1176
    %1284 = vmatprep.subr.bf16.mxu0 0
    %1285 = vmatpush1.bf16.msra.mxu0 %v1177
    %1286 = vmatprep.subr.bf16.mxu0 0
    %1287 = vmatpush1.bf16.msra.mxu0 %v1178
    %1288 = vmatprep.subr.bf16.mxu0 0
    %1289 = vmatpush1.bf16.msra.mxu0 0
    %1290 = vmatprep.subr.bf16.mxu0 0
    %1291 = vmatpush1.bf16.msra.mxu0 0
    %1292 = vmatprep.subr.bf16.mxu0 0
    %1293 = vmatpush1.bf16.msra.mxu0 0
    %1294 = vmatprep.subr.bf16.mxu0 0
    %1295 = vmatpush1.bf16.msra.mxu0 0
    %1296 = vmatprep.subr.bf16.mxu0 0
    %1297 = vmatpush1.bf16.msra.mxu0 0
    %1298 = vmatprep.subr.bf16.mxu0 0
    %1299 = vmatpush1.bf16.msra.mxu0 0
    %1300 = vmatprep.subr.bf16.mxu0 0
    %1301 = vmatpush1.bf16.msra.mxu0 0
    %1302 = vmatprep.subr.bf16.mxu0 0
    %1303 = vmatpush1.bf16.msra.mxu0 0
    %1304 = vmatprep.subr.bf16.mxu0 0
    %1305 = vmatpush1.bf16.msra.mxu0 0
    %1306 = vmatprep.subr.bf16.mxu0 0
    %1307 = vmatpush1.bf16.msra.mxu0 0
    %1308 = vmatprep.subr.bf16.mxu0 0
    %1309 = vmatpush1.bf16.msra.mxu0 0
    %1310 = vmatprep.subr.bf16.mxu0 0
    %1311 = vmatpush1.bf16.msra.mxu0 0
    %1312 = vmatprep.mubr.bf16.mxu0 0
    %1313 = vmatmul.mubr.bf16.gmra.mrb[0].mxu0 %v1185
    %v1314 = vpop.f32.mrb[0].mxu0
    %v1315 = vadd.f32 %v1157, %v1314
    %v1316 = vpop.f32.mrb[0].mxu0
    %v1317 = vpop.f32.mrb[0].mxu0
    %v1318 = vadd.f32 %v1157, %v1317
    %v1319 = vpop.f32.mrb[0].mxu0
    %1320 = vmatprep.mubr.bf16.mxu0 0
    %1321 = vmatmul.mubr.bf16.gmra.mrb[0].mxu0 %v1188
    %v1322 = vpop.f32.mrb[0].mxu0
    %v1323 = vadd.f32 %v1157, %v1322
    %v1324 = vpop.f32.mrb[0].mxu0
    %v1325 = vpop.f32.mrb[0].mxu0
    %v1326 = vadd.f32 %v1157, %v1325
    %v1327 = vpop.f32.mrb[0].mxu0
    %1328 = vmatprep.mubr.bf16.mxu0 0
    %1329 = vmatmul.mubr.bf16.gmra.mrb[0].mxu0 %v1191
    %v1330 = vpop.f32.mrb[0].mxu0
    %v1331 = vadd.f32 %v1157, %v1330
    %v1332 = vpop.f32.mrb[0].mxu0
    %v1333 = vpop.f32.mrb[0].mxu0
    %v1334 = vadd.f32 %v1157, %v1333
    %v1335 = vpop.f32.mrb[0].mxu0
    %1336 = vmatprep.mubr.bf16.mxu0 0
    %1337 = vmatmul.mubr.bf16.gmra.mrb[0].mxu0 %v1194
    %v1338 = vpop.f32.mrb[0].mxu0
    %v1339 = vadd.f32 %v1157, %v1338
    %v1340 = vpop.f32.mrb[0].mxu0
    %v1341 = vpop.f32.mrb[0].mxu0
    %v1342 = vadd.f32 %v1157, %v1341
    %v1343 = vpop.f32.mrb[0].mxu0
    %1344 = vmatprep.mubr.bf16.mxu0 0
    %1345 = vmatmul.mubr.bf16.gmra.mrb[0].mxu0 %v1197
    %v1346 = vpop.f32.mrb[0].mxu0
    %v1347 = vadd.f32 %v1157, %v1346
    %v1348 = vpop.f32.mrb[0].mxu0
    %v1349 = vpop.f32.mrb[0].mxu0
    %v1350 = vadd.f32 %v1157, %v1349
    %v1351 = vpop.f32.mrb[0].mxu0
    %1352 = vmatprep.mubr.bf16.mxu0 0
    %1353 = vmatmul.mubr.bf16.gmra.mrb[0].mxu0 %v1200
    %v1354 = vpop.f32.mrb[0].mxu0
    %v1355 = vadd.f32 %v1157, %v1354
    %v1356 = vpop.f32.mrb[0].mxu0
    %v1357 = vpop.f32.mrb[0].mxu0
    %v1358 = vadd.f32 %v1157, %v1357
    %v1359 = vpop.f32.mrb[0].mxu0
    %1360 = vmatprep.mubr.bf16.mxu0 0
    %1361 = vmatmul.mubr.bf16.gmra.mrb[0].mxu0 %v1203
    %v1362 = vpop.f32.mrb[0].mxu0
    %v1363 = vadd.f32 %v1157, %v1362
    %v1364 = vpop.f32.mrb[0].mxu0
    %v1365 = vpop.f32.mrb[0].mxu0
    %v1366 = vadd.f32 %v1157, %v1365
    %v1367 = vpop.f32.mrb[0].mxu0
    %1368 = vmatprep.mubr.bf16.mxu0 0
    %1369 = vmatmul.mubr.bf16.gmra.mrb[0].mxu0 %v1206
    %v1370 = vpop.f32.mrb[0].mxu0
    %v1371 = vadd.f32 %v1157, %v1370
    %v1372 = vpop.f32.mrb[0].mxu0
    %v1373 = vpop.f32.mrb[0].mxu0
    %v1374 = vadd.f32 %v1157, %v1373
    %v1375 = vpop.f32.mrb[0].mxu0
    %1376 = vmatprep.mubr.bf16.mxu0 0
    %1377 = vmatmul.mubr.bf16.gmra.mrb[0].mxu0 %v1209
    %v1378 = vpop.f32.mrb[0].mxu0
    %v1379 = vadd.f32 %v1157, %v1378
    %v1380 = vpop.f32.mrb[0].mxu0
    %v1381 = vpop.f32.mrb[0].mxu0
    %v1382 = vadd.f32 %v1157, %v1381
    %v1383 = vpop.f32.mrb[0].mxu0
    %1384 = vmatprep.mubr.bf16.mxu0 0
    %1385 = vmatmul.mubr.bf16.gmra.mrb[0].mxu0 %v1212
    %v1386 = vpop.f32.mrb[0].mxu0
    %v1387 = vadd.f32 %v1157, %v1386
    %v1388 = vpop.f32.mrb[0].mxu0
    %v1389 = vpop.f32.mrb[0].mxu0
    %v1390 = vadd.f32 %v1157, %v1389
    %v1391 = vpop.f32.mrb[0].mxu0
    %1392 = vmatprep.mubr.bf16.mxu0 0
    %1393 = vmatmul.mubr.bf16.gmra.mrb[0].mxu0 %v1215
    %v1394 = vpop.f32.mrb[0].mxu0
    %v1395 = vadd.f32 %v1157, %v1394
    %v1396 = vpop.f32.mrb[0].mxu0
    %v1397 = vpop.f32.mrb[0].mxu0
    %v1398 = vadd.f32 %v1157, %v1397
    %v1399 = vpop.f32.mrb[0].mxu0
    %1400 = vmatprep.mubr.bf16.mxu0 0
    %1401 = vmatmul.mubr.bf16.gmra.mrb[0].mxu0 %v1218
    %v1402 = vpop.f32.mrb[0].mxu0
    %v1403 = vadd.f32 %v1157, %v1402
    %v1404 = vpop.f32.mrb[0].mxu0
    %v1405 = vpop.f32.mrb[0].mxu0
    %v1406 = vadd.f32 %v1157, %v1405
    %v1407 = vpop.f32.mrb[0].mxu0
    %1408 = vmatprep.mubr.bf16.mxu0 0
    %1409 = vmatmul.mubr.bf16.gmra.mrb[0].mxu0 %v1221
    %v1410 = vpop.f32.mrb[0].mxu0
    %v1411 = vadd.f32 %v1157, %v1410
    %v1412 = vpop.f32.mrb[0].mxu0
    %v1413 = vpop.f32.mrb[0].mxu0
    %v1414 = vadd.f32 %v1157, %v1413
    %v1415 = vpop.f32.mrb[0].mxu0
    %1416 = vmatprep.mubr.bf16.mxu0 0
    %1417 = vmatmul.mubr.bf16.gmra.mrb[0].mxu0 %v1224
    %v1418 = vpop.f32.mrb[0].mxu0
    %v1419 = vadd.f32 %v1157, %v1418
    %v1420 = vpop.f32.mrb[0].mxu0
    %v1421 = vpop.f32.mrb[0].mxu0
    %v1422 = vadd.f32 %v1157, %v1421
    %v1423 = vpop.f32.mrb[0].mxu0
    %1424 = vmatprep.mubr.bf16.mxu0 0
    %1425 = vmatmul.mubr.bf16.gmra.mrb[0].mxu0 %v1227
    %v1426 = vpop.f32.mrb[0].mxu0
    %v1427 = vadd.f32 %v1157, %v1426
    %v1428 = vpop.f32.mrb[0].mxu0
    %v1429 = vpop.f32.mrb[0].mxu0
    %v1430 = vadd.f32 %v1157, %v1429
    %v1431 = vpop.f32.mrb[0].mxu0
    %1432 = vmatprep.mubr.bf16.mxu0 0
    %1433 = vmatmul.mubr.bf16.gmra.mrb[0].mxu0 %v1230
    %v1434 = vpop.f32.mrb[0].mxu0
    %v1435 = vadd.f32 %v1157, %v1434
    %v1436 = vpop.f32.mrb[0].mxu0
    %v1437 = vpop.f32.mrb[0].mxu0
    %v1438 = vadd.f32 %v1157, %v1437
    %v1439 = vpop.f32.mrb[0].mxu0
    %1440 = vmatprep.mubr.bf16.mxu0 0
    %1441 = vmatmul.mubr.bf16.gmra.mrb[0].mxu0 %v1233
    %v1442 = vpop.f32.mrb[0].mxu0
    %v1443 = vadd.f32 %v1157, %v1442
    %v1444 = vpop.f32.mrb[0].mxu0
    %v1445 = vpop.f32.mrb[0].mxu0
    %v1446 = vadd.f32 %v1157, %v1445
    %v1447 = vpop.f32.mrb[0].mxu0
    %1448 = vmatprep.mubr.bf16.mxu0 0
    %1449 = vmatmul.mubr.bf16.gmra.mrb[0].mxu0 %v1236
    %v1450 = vpop.f32.mrb[0].mxu0
    %v1451 = vadd.f32 %v1157, %v1450
    %v1452 = vpop.f32.mrb[0].mxu0
    %v1453 = vpop.f32.mrb[0].mxu0
    %v1454 = vadd.f32 %v1157, %v1453
    %v1455 = vpop.f32.mrb[0].mxu0
    %1456 = vmatprep.mubr.bf16.mxu0 0
    %1457 = vmatmul.mubr.bf16.gmra.mrb[0].mxu0 %v1239
    %v1458 = vpop.f32.mrb[0].mxu0
    %v1459 = vadd.f32 %v1157, %v1458
    %v1460 = vpop.f32.mrb[0].mxu0
    %v1461 = vpop.f32.mrb[0].mxu0
    %v1462 = vadd.f32 %v1157, %v1461
    %v1463 = vpop.f32.mrb[0].mxu0
    %1464 = vmatprep.mubr.bf16.mxu0 0
    %1465 = vmatmul.mubr.bf16.gmra.mrb[0].mxu0 %v1242
    %v1466 = vpop.f32.mrb[0].mxu0
    %v1467 = vadd.f32 %v1157, %v1466
    %v1468 = vpop.f32.mrb[0].mxu0
    %v1469 = vpop.f32.mrb[0].mxu0
    %v1470 = vadd.f32 %v1157, %v1469
    %v1471 = vpop.f32.mrb[0].mxu0
    %1472 = vmatprep.mubr.bf16.mxu0 0
    %1473 = vmatmul.mubr.bf16.gmra.mrb[0].mxu0 %v1245
    %v1474 = vpop.f32.mrb[0].mxu0
    %v1475 = vadd.f32 %v1157, %v1474
    %v1476 = vpop.f32.mrb[0].mxu0
    %v1477 = vpop.f32.mrb[0].mxu0
    %v1478 = vadd.f32 %v1157, %v1477
    %v1479 = vpop.f32.mrb[0].mxu0
    %1480 = vmatprep.mubr.bf16.mxu0 0
    %1481 = vmatmul.mubr.bf16.gmra.mrb[0].mxu0 %v1248
    %v1482 = vpop.f32.mrb[0].mxu0
    %v1483 = vadd.f32 %v1157, %v1482
    %v1484 = vpop.f32.mrb[0].mxu0
    %v1485 = vpop.f32.mrb[0].mxu0
    %v1486 = vadd.f32 %v1157, %v1485
    %v1487 = vpop.f32.mrb[0].mxu0
    %1488 = vmatprep.mubr.bf16.mxu0 0
    %1489 = vmatmul.mubr.bf16.gmra.mrb[0].mxu0 %v1251
    %v1490 = vpop.f32.mrb[0].mxu0
    %v1491 = vadd.f32 %v1157, %v1490
    %v1492 = vpop.f32.mrb[0].mxu0
    %v1493 = vpop.f32.mrb[0].mxu0
    %v1494 = vadd.f32 %v1157, %v1493
    %v1495 = vpop.f32.mrb[0].mxu0
    %1496 = vmatprep.mubr.bf16.mxu0 0
    %1497 = vmatmul.mubr.bf16.gmra.mrb[0].mxu0 %v1254
    %v1498 = vpop.f32.mrb[0].mxu0
    %v1499 = vadd.f32 %v1157, %v1498
    %v1500 = vpop.f32.mrb[0].mxu0
    %v1501 = vpop.f32.mrb[0].mxu0
    %v1502 = vadd.f32 %v1157, %v1501
    %v1503 = vpop.f32.mrb[0].mxu0
    %1504 = vmatprep.mubr.bf16.mxu0 0
    %1505 = vmatmul.mubr.bf16.gmra.mrb[0].mxu0 %v1257
    %v1506 = vpop.f32.mrb[0].mxu0
    %v1507 = vadd.f32 %v1157, %v1506
    %v1508 = vpop.f32.mrb[0].mxu0
    %v1509 = vpop.f32.mrb[0].mxu0
    %v1510 = vadd.f32 %v1157, %v1509
    %v1511 = vpop.f32.mrb[0].mxu0
    %1512 = vmatprep.mubr.bf16.mxu0 0
    %1513 = vmatmul.mubr.bf16.gmra.mrb[0].mxu0 %v1260
    %v1514 = vpop.f32.mrb[0].mxu0
    %v1515 = vadd.f32 %v1157, %v1514
    %v1516 = vpop.f32.mrb[0].mxu0
    %v1517 = vpop.f32.mrb[0].mxu0
    %v1518 = vadd.f32 %v1157, %v1517
    %v1519 = vpop.f32.mrb[0].mxu0
    %1520 = vmatprep.mubr.bf16.mxu0 0
    %1521 = vmatmul.mubr.bf16.gmra.mrb[0].mxu0 %v1263
    %v1522 = vpop.f32.mrb[0].mxu0
    %v1523 = vadd.f32 %v1157, %v1522
    %v1524 = vpop.f32.mrb[0].mxu0
    %v1525 = vpop.f32.mrb[0].mxu0
    %v1526 = vadd.f32 %v1157, %v1525
    %v1527 = vpop.f32.mrb[0].mxu0
    %1528 = vmatprep.mubr.bf16.mxu0 0
    %1529 = vmatmul.mubr.bf16.gmra.mrb[0].mxu0 %v1266
    %v1530 = vpop.f32.mrb[0].mxu0
    %v1531 = vadd.f32 %v1157, %v1530
    %v1532 = vpop.f32.mrb[0].mxu0
    %v1533 = vpop.f32.mrb[0].mxu0
    %v1534 = vadd.f32 %v1157, %v1533
    %v1535 = vpop.f32.mrb[0].mxu0
    %1536 = vmatprep.mubr.bf16.mxu0 0
    %1537 = vmatmul.mubr.bf16.gmra.mrb[0].mxu0 %v1269
    %v1538 = vpop.f32.mrb[0].mxu0
    %v1539 = vadd.f32 %v1157, %v1538
    %v1540 = vpop.f32.mrb[0].mxu0
    %v1541 = vpop.f32.mrb[0].mxu0
    %v1542 = vadd.f32 %v1157, %v1541
    %v1543 = vpop.f32.mrb[0].mxu0
    %1544 = vmatprep.mubr.bf16.mxu0 0
    %1545 = vmatmul.mubr.bf16.gmra.mrb[0].mxu0 %v1272
    %v1546 = vpop.f32.mrb[0].mxu0
    %v1547 = vadd.f32 %v1157, %v1546
    %v1548 = vpop.f32.mrb[0].mxu0
    %v1549 = vpop.f32.mrb[0].mxu0
    %v1550 = vadd.f32 %v1157, %v1549
    %v1551 = vpop.f32.mrb[0].mxu0
    %1552 = vmatprep.mubr.bf16.mxu0 0
    %1553 = vmatmul.mubr.bf16.gmra.mrb[0].mxu0 %v1275
    %v1554 = vpop.f32.mrb[0].mxu0
    %v1555 = vadd.f32 %v1157, %v1554
    %v1556 = vpop.f32.mrb[0].mxu0
    %v1557 = vpop.f32.mrb[0].mxu0
    %v1558 = vadd.f32 %v1157, %v1557
    %v1559 = vpop.f32.mrb[0].mxu0
    %1560 = vmatprep.mubr.bf16.mxu0 0
    %1561 = vmatmul.mubr.bf16.gmra.mrb[0].mxu0 %v1278
    %v1562 = vpop.f32.mrb[0].mxu0
    %v1563 = vadd.f32 %v1157, %v1562
    %v1564 = vpop.f32.mrb[0].mxu0
    %v1565 = vpop.f32.mrb[0].mxu0
    %v1566 = vadd.f32 %v1157, %v1565
    %v1567 = vpop.f32.mrb[0].mxu0
    %1568 = vdwg.mxu0
    %v1569 = vmax.f32 %v1315, -60.0
    %v1570 = vmax.f32 %v1318, -60.0
    %v1571 = vmax.f32 %v1323, -60.0
    %v1572 = vmax.f32 %v1326, -60.0
    %v1573 = vmax.f32 %v1331, -60.0
    %v1574 = vmax.f32 %v1334, -60.0
    %v1575 = vmax.f32 %v1339, -60.0
    %v1576 = vmax.f32 %v1342, -60.0
    %v1577 = vmax.f32 %v1347, -60.0
    %v1578 = vmax.f32 %v1350, -60.0
    %v1579 = vmax.f32 %v1355, -60.0
    %v1580 = vmax.f32 %v1358, -60.0
    %v1581 = vmax.f32 %v1363, -60.0
    %v1582 = vmax.f32 %v1366, -60.0
    %v1583 = vmax.f32 %v1371, -60.0
    %v1584 = vmax.f32 %v1374, -60.0
    %v1585 = vmax.f32 %v1379, -60.0
    %v1586 = vmax.f32 %v1382, -60.0
    %v1587 = vmax.f32 %v1387, -60.0
    %v1588 = vmax.f32 %v1390, -60.0
    %v1589 = vmax.f32 %v1395, -60.0
    %v1590 = vmax.f32 %v1398, -60.0
    %v1591 = vmax.f32 %v1403, -60.0
    %v1592 = vmax.f32 %v1406, -60.0
    %v1593 = vmax.f32 %v1411, -60.0
    %v1594 = vmax.f32 %v1414, -60.0
    %v1595 = vmax.f32 %v1419, -60.0
    %v1596 = vmax.f32 %v1422, -60.0
    %v1597 = vmax.f32 %v1427, -60.0
    %v1598 = vmax.f32 %v1430, -60.0
    %v1599 = vmax.f32 %v1435, -60.0
    %v1600 = vmax.f32 %v1438, -60.0
    %v1601 = vmax.f32 %v1443, -60.0
    %v1602 = vmax.f32 %v1446, -60.0
    %v1603 = vmax.f32 %v1451, -60.0
    %v1604 = vmax.f32 %v1454, -60.0
    %v1605 = vmax.f32 %v1459, -60.0
    %v1606 = vmax.f32 %v1462, -60.0
    %v1607 = vmax.f32 %v1467, -60.0
    %v1608 = vmax.f32 %v1470, -60.0
    %v1609 = vmax.f32 %v1475, -60.0
    %v1610 = vmax.f32 %v1478, -60.0
    %v1611 = vmax.f32 %v1483, -60.0
    %v1612 = vmax.f32 %v1486, -60.0
    %v1613 = vmax.f32 %v1491, -60.0
    %v1614 = vmax.f32 %v1494, -60.0
    %v1615 = vmax.f32 %v1499, -60.0
    %v1616 = vmax.f32 %v1502, -60.0
    %v1617 = vmax.f32 %v1507, -60.0
    %v1618 = vmax.f32 %v1510, -60.0
    %v1619 = vmax.f32 %v1515, -60.0
    %v1620 = vmax.f32 %v1518, -60.0
    %v1621 = vmax.f32 %v1523, -60.0
    %v1622 = vmax.f32 %v1526, -60.0
    %v1623 = vmax.f32 %v1531, -60.0
    %v1624 = vmax.f32 %v1534, -60.0
    %v1625 = vmax.f32 %v1539, -60.0
    %v1626 = vmax.f32 %v1542, -60.0
    %v1627 = vmax.f32 %v1547, -60.0
    %v1628 = vmax.f32 %v1550, -60.0
    %v1629 = vmax.f32 %v1555, -60.0
    %v1630 = vmax.f32 %v1558, -60.0
    %v1631 = vmax.f32 %v1563, -60.0
    %v1632 = vmax.f32 %v1566, -60.0
    %v1633 = vmin.f32 %v1569, 60.0
    %v1634 = vmin.f32 %v1570, 60.0
    %v1635 = vmin.f32 %v1571, 60.0
    %v1636 = vmin.f32 %v1572, 60.0
    %v1637 = vmin.f32 %v1573, 60.0
    %v1638 = vmin.f32 %v1574, 60.0
    %v1639 = vmin.f32 %v1575, 60.0
    %v1640 = vmin.f32 %v1576, 60.0
    %v1641 = vmin.f32 %v1577, 60.0
    %v1642 = vmin.f32 %v1578, 60.0
    %v1643 = vmin.f32 %v1579, 60.0
    %v1644 = vmin.f32 %v1580, 60.0
    %v1645 = vmin.f32 %v1581, 60.0
    %v1646 = vmin.f32 %v1582, 60.0
    %v1647 = vmin.f32 %v1583, 60.0
    %v1648 = vmin.f32 %v1584, 60.0
    %v1649 = vmin.f32 %v1585, 60.0
    %v1650 = vmin.f32 %v1586, 60.0
    %v1651 = vmin.f32 %v1587, 60.0
    %v1652 = vmin.f32 %v1588, 60.0
    %v1653 = vmin.f32 %v1589, 60.0
    %v1654 = vmin.f32 %v1590, 60.0
    %v1655 = vmin.f32 %v1591, 60.0
    %v1656 = vmin.f32 %v1592, 60.0
    %v1657 = vmin.f32 %v1593, 60.0
    %v1658 = vmin.f32 %v1594, 60.0
    %v1659 = vmin.f32 %v1595, 60.0
    %v1660 = vmin.f32 %v1596, 60.0
    %v1661 = vmin.f32 %v1597, 60.0
    %v1662 = vmin.f32 %v1598, 60.0
    %v1663 = vmin.f32 %v1599, 60.0
    %v1664 = vmin.f32 %v1600, 60.0
    %v1665 = vmin.f32 %v1601, 60.0
    %v1666 = vmin.f32 %v1602, 60.0
    %v1667 = vmin.f32 %v1603, 60.0
    %v1668 = vmin.f32 %v1604, 60.0
    %v1669 = vmin.f32 %v1605, 60.0
    %v1670 = vmin.f32 %v1606, 60.0
    %v1671 = vmin.f32 %v1607, 60.0
    %v1672 = vmin.f32 %v1608, 60.0
    %v1673 = vmin.f32 %v1609, 60.0
    %v1674 = vmin.f32 %v1610, 60.0
    %v1675 = vmin.f32 %v1611, 60.0
    %v1676 = vmin.f32 %v1612, 60.0
    %v1677 = vmin.f32 %v1613, 60.0
    %v1678 = vmin.f32 %v1614, 60.0
    %v1679 = vmin.f32 %v1615, 60.0
    %v1680 = vmin.f32 %v1616, 60.0
    %v1681 = vmin.f32 %v1617, 60.0
    %v1682 = vmin.f32 %v1618, 60.0
    %v1683 = vmin.f32 %v1619, 60.0
    %v1684 = vmin.f32 %v1620, 60.0
    %v1685 = vmin.f32 %v1621, 60.0
    %v1686 = vmin.f32 %v1622, 60.0
    %v1687 = vmin.f32 %v1623, 60.0
    %v1688 = vmin.f32 %v1624, 60.0
    %v1689 = vmin.f32 %v1625, 60.0
    %v1690 = vmin.f32 %v1626, 60.0
    %v1691 = vmin.f32 %v1627, 60.0
    %v1692 = vmin.f32 %v1628, 60.0
    %v1693 = vmin.f32 %v1629, 60.0
    %v1694 = vmin.f32 %v1630, 60.0
    %v1695 = vmin.f32 %v1631, 60.0
    %v1696 = vmin.f32 %v1632, 60.0
    %v1697 = vsub.f32 0.0, %v1633
    %v1698 = vsub.f32 0.0, %v1634
    %v1699 = vsub.f32 0.0, %v1635
    %v1700 = vsub.f32 0.0, %v1636
    %v1701 = vsub.f32 0.0, %v1637
    %v1702 = vsub.f32 0.0, %v1638
    %v1703 = vsub.f32 0.0, %v1639
    %v1704 = vsub.f32 0.0, %v1640
    %v1705 = vsub.f32 0.0, %v1641
    %v1706 = vsub.f32 0.0, %v1642
    %v1707 = vsub.f32 0.0, %v1643
    %v1708 = vsub.f32 0.0, %v1644
    %v1709 = vsub.f32 0.0, %v1645
    %v1710 = vsub.f32 0.0, %v1646
    %v1711 = vsub.f32 0.0, %v1647
    %v1712 = vsub.f32 0.0, %v1648
    %v1713 = vsub.f32 0.0, %v1649
    %v1714 = vsub.f32 0.0, %v1650
    %v1715 = vsub.f32 0.0, %v1651
    %v1716 = vsub.f32 0.0, %v1652
    %v1717 = vsub.f32 0.0, %v1653
    %v1718 = vsub.f32 0.0, %v1654
    %v1719 = vsub.f32 0.0, %v1655
    %v1720 = vsub.f32 0.0, %v1656
    %v1721 = vsub.f32 0.0, %v1657
    %v1722 = vsub.f32 0.0, %v1658
    %v1723 = vsub.f32 0.0, %v1659
    %v1724 = vsub.f32 0.0, %v1660
    %v1725 = vsub.f32 0.0, %v1661
    %v1726 = vsub.f32 0.0, %v1662
    %v1727 = vsub.f32 0.0, %v1663
    %v1728 = vsub.f32 0.0, %v1664
    %v1729 = vsub.f32 0.0, %v1665
    %v1730 = vsub.f32 0.0, %v1666
    %v1731 = vsub.f32 0.0, %v1667
    %v1732 = vsub.f32 0.0, %v1668
    %v1733 = vsub.f32 0.0, %v1669
    %v1734 = vsub.f32 0.0, %v1670
    %v1735 = vsub.f32 0.0, %v1671
    %v1736 = vsub.f32 0.0, %v1672
    %v1737 = vsub.f32 0.0, %v1673
    %v1738 = vsub.f32 0.0, %v1674
    %v1739 = vsub.f32 0.0, %v1675
    %v1740 = vsub.f32 0.0, %v1676
    %v1741 = vsub.f32 0.0, %v1677
    %v1742 = vsub.f32 0.0, %v1678
    %v1743 = vsub.f32 0.0, %v1679
    %v1744 = vsub.f32 0.0, %v1680
    %v1745 = vsub.f32 0.0, %v1681
    %v1746 = vsub.f32 0.0, %v1682
    %v1747 = vsub.f32 0.0, %v1683
    %v1748 = vsub.f32 0.0, %v1684
    %v1749 = vsub.f32 0.0, %v1685
    %v1750 = vsub.f32 0.0, %v1686
    %v1751 = vsub.f32 0.0, %v1687
    %v1752 = vsub.f32 0.0, %v1688
    %v1753 = vsub.f32 0.0, %v1689
    %v1754 = vsub.f32 0.0, %v1690
    %v1755 = vsub.f32 0.0, %v1691
    %v1756 = vsub.f32 0.0, %v1692
    %v1757 = vsub.f32 0.0, %v1693
    %v1758 = vsub.f32 0.0, %v1694
    %v1759 = vsub.f32 0.0, %v1695
    %v1760 = vsub.f32 0.0, %v1696
    %v1761 = vmul.f32 %v1697, 1.442695
    %v1762 = vpow.pop %v1761
    %v1763 = vmul.f32 %v1698, 1.442695
    %v1764 = vpow.pop %v1763
    %v1765 = vmul.f32 %v1699, 1.442695
    %v1766 = vpow.pop %v1765
    %v1767 = vmul.f32 %v1700, 1.442695
    %v1768 = vpow.pop %v1767
    %v1769 = vmul.f32 %v1701, 1.442695
    %v1770 = vpow.pop %v1769
    %v1771 = vmul.f32 %v1702, 1.442695
    %v1772 = vpow.pop %v1771
    %v1773 = vmul.f32 %v1703, 1.442695
    %v1774 = vpow.pop %v1773
    %v1775 = vmul.f32 %v1704, 1.442695
    %v1776 = vpow.pop %v1775
    %v1777 = vmul.f32 %v1705, 1.442695
    %v1778 = vpow.pop %v1777
    %v1779 = vmul.f32 %v1706, 1.442695
    %v1780 = vpow.pop %v1779
    %v1781 = vmul.f32 %v1707, 1.442695
    %v1782 = vpow.pop %v1781
    %v1783 = vmul.f32 %v1708, 1.442695
    %v1784 = vpow.pop %v1783
    %v1785 = vmul.f32 %v1709, 1.442695
    %v1786 = vpow.pop %v1785
    %v1787 = vmul.f32 %v1710, 1.442695
    %v1788 = vpow.pop %v1787
    %v1789 = vmul.f32 %v1711, 1.442695
    %v1790 = vpow.pop %v1789
    %v1791 = vmul.f32 %v1712, 1.442695
    %v1792 = vpow.pop %v1791
    %v1793 = vmul.f32 %v1713, 1.442695
    %v1794 = vpow.pop %v1793
    %v1795 = vmul.f32 %v1714, 1.442695
    %v1796 = vpow.pop %v1795
    %v1797 = vmul.f32 %v1715, 1.442695
    %v1798 = vpow.pop %v1797
    %v1799 = vmul.f32 %v1716, 1.442695
    %v1800 = vpow.pop %v1799
    %v1801 = vmul.f32 %v1717, 1.442695
    %v1802 = vpow.pop %v1801
    %v1803 = vmul.f32 %v1718, 1.442695
    %v1804 = vpow.pop %v1803
    %v1805 = vmul.f32 %v1719, 1.442695
    %v1806 = vpow.pop %v1805
    %v1807 = vmul.f32 %v1720, 1.442695
    %v1808 = vpow.pop %v1807
    %v1809 = vmul.f32 %v1721, 1.442695
    %v1810 = vpow.pop %v1809
    %v1811 = vmul.f32 %v1722, 1.442695
    %v1812 = vpow.pop %v1811
    %v1813 = vmul.f32 %v1723, 1.442695
    %v1814 = vpow.pop %v1813
    %v1815 = vmul.f32 %v1724, 1.442695
    %v1816 = vpow.pop %v1815
    %v1817 = vmul.f32 %v1725, 1.442695
    %v1818 = vpow.pop %v1817
    %v1819 = vmul.f32 %v1726, 1.442695
    %v1820 = vpow.pop %v1819
    %v1821 = vmul.f32 %v1727, 1.442695
    %v1822 = vpow.pop %v1821
    %v1823 = vmul.f32 %v1728, 1.442695
    %v1824 = vpow.pop %v1823
    %v1825 = vmul.f32 %v1729, 1.442695
    %v1826 = vpow.pop %v1825
    %v1827 = vmul.f32 %v1730, 1.442695
    %v1828 = vpow.pop %v1827
    %v1829 = vmul.f32 %v1731, 1.442695
    %v1830 = vpow.pop %v1829
    %v1831 = vmul.f32 %v1732, 1.442695
    %v1832 = vpow.pop %v1831
    %v1833 = vmul.f32 %v1733, 1.442695
    %v1834 = vpow.pop %v1833
    %v1835 = vmul.f32 %v1734, 1.442695
    %v1836 = vpow.pop %v1835
    %v1837 = vmul.f32 %v1735, 1.442695
    %v1838 = vpow.pop %v1837
    %v1839 = vmul.f32 %v1736, 1.442695
    %v1840 = vpow.pop %v1839
    %v1841 = vmul.f32 %v1737, 1.442695
    %v1842 = vpow.pop %v1841
    %v1843 = vmul.f32 %v1738, 1.442695
    %v1844 = vpow.pop %v1843
    %v1845 = vmul.f32 %v1739, 1.442695
    %v1846 = vpow.pop %v1845
    %v1847 = vmul.f32 %v1740, 1.442695
    %v1848 = vpow.pop %v1847
    %v1849 = vmul.f32 %v1741, 1.442695
    %v1850 = vpow.pop %v1849
    %v1851 = vmul.f32 %v1742, 1.442695
    %v1852 = vpow.pop %v1851
    %v1853 = vmul.f32 %v1743, 1.442695
    %v1854 = vpow.pop %v1853
    %v1855 = vmul.f32 %v1744, 1.442695
    %v1856 = vpow.pop %v1855
    %v1857 = vmul.f32 %v1745, 1.442695
    %v1858 = vpow.pop %v1857
    %v1859 = vmul.f32 %v1746, 1.442695
    %v1860 = vpow.pop %v1859
    %v1861 = vmul.f32 %v1747, 1.442695
    %v1862 = vpow.pop %v1861
    %v1863 = vmul.f32 %v1748, 1.442695
    %v1864 = vpow.pop %v1863
    %v1865 = vmul.f32 %v1749, 1.442695
    %v1866 = vpow.pop %v1865
    %v1867 = vmul.f32 %v1750, 1.442695
    %v1868 = vpow.pop %v1867
    %v1869 = vmul.f32 %v1751, 1.442695
    %v1870 = vpow.pop %v1869
    %v1871 = vmul.f32 %v1752, 1.442695
    %v1872 = vpow.pop %v1871
    %v1873 = vmul.f32 %v1753, 1.442695
    %v1874 = vpow.pop %v1873
    %v1875 = vmul.f32 %v1754, 1.442695
    %v1876 = vpow.pop %v1875
    %v1877 = vmul.f32 %v1755, 1.442695
    %v1878 = vpow.pop %v1877
    %v1879 = vmul.f32 %v1756, 1.442695
    %v1880 = vpow.pop %v1879
    %v1881 = vmul.f32 %v1757, 1.442695
    %v1882 = vpow.pop %v1881
    %v1883 = vmul.f32 %v1758, 1.442695
    %v1884 = vpow.pop %v1883
    %v1885 = vmul.f32 %v1759, 1.442695
    %v1886 = vpow.pop %v1885
    %v1887 = vmul.f32 %v1760, 1.442695
    %v1888 = vpow.pop %v1887
    %v1889 = vadd.f32 %v1762, 1.0
    %v1890 = vadd.f32 %v1764, 1.0
    %v1891 = vadd.f32 %v1766, 1.0
    %v1892 = vadd.f32 %v1768, 1.0
    %v1893 = vadd.f32 %v1770, 1.0
    %v1894 = vadd.f32 %v1772, 1.0
    %v1895 = vadd.f32 %v1774, 1.0
    %v1896 = vadd.f32 %v1776, 1.0
    %v1897 = vadd.f32 %v1778, 1.0
    %v1898 = vadd.f32 %v1780, 1.0
    %v1899 = vadd.f32 %v1782, 1.0
    %v1900 = vadd.f32 %v1784, 1.0
    %v1901 = vadd.f32 %v1786, 1.0
    %v1902 = vadd.f32 %v1788, 1.0
    %v1903 = vadd.f32 %v1790, 1.0
    %v1904 = vadd.f32 %v1792, 1.0
    %v1905 = vadd.f32 %v1794, 1.0
    %v1906 = vadd.f32 %v1796, 1.0
    %v1907 = vadd.f32 %v1798, 1.0
    %v1908 = vadd.f32 %v1800, 1.0
    %v1909 = vadd.f32 %v1802, 1.0
    %v1910 = vadd.f32 %v1804, 1.0
    %v1911 = vadd.f32 %v1806, 1.0
    %v1912 = vadd.f32 %v1808, 1.0
    %v1913 = vadd.f32 %v1810, 1.0
    %v1914 = vadd.f32 %v1812, 1.0
    %v1915 = vadd.f32 %v1814, 1.0
    %v1916 = vadd.f32 %v1816, 1.0
    %v1917 = vadd.f32 %v1818, 1.0
    %v1918 = vadd.f32 %v1820, 1.0
    %v1919 = vadd.f32 %v1822, 1.0
    %v1920 = vadd.f32 %v1824, 1.0
    %v1921 = vadd.f32 %v1826, 1.0
    %v1922 = vadd.f32 %v1828, 1.0
    %v1923 = vadd.f32 %v1830, 1.0
    %v1924 = vadd.f32 %v1832, 1.0
    %v1925 = vadd.f32 %v1834, 1.0
    %v1926 = vadd.f32 %v1836, 1.0
    %v1927 = vadd.f32 %v1838, 1.0
    %v1928 = vadd.f32 %v1840, 1.0
    %v1929 = vadd.f32 %v1842, 1.0
    %v1930 = vadd.f32 %v1844, 1.0
    %v1931 = vadd.f32 %v1846, 1.0
    %v1932 = vadd.f32 %v1848, 1.0
    %v1933 = vadd.f32 %v1850, 1.0
    %v1934 = vadd.f32 %v1852, 1.0
    %v1935 = vadd.f32 %v1854, 1.0
    %v1936 = vadd.f32 %v1856, 1.0
    %v1937 = vadd.f32 %v1858, 1.0
    %v1938 = vadd.f32 %v1860, 1.0
    %v1939 = vadd.f32 %v1862, 1.0
    %v1940 = vadd.f32 %v1864, 1.0
    %v1941 = vadd.f32 %v1866, 1.0
    %v1942 = vadd.f32 %v1868, 1.0
    %v1943 = vadd.f32 %v1870, 1.0
    %v1944 = vadd.f32 %v1872, 1.0
    %v1945 = vadd.f32 %v1874, 1.0
    %v1946 = vadd.f32 %v1876, 1.0
    %v1947 = vadd.f32 %v1878, 1.0
    %v1948 = vadd.f32 %v1880, 1.0
    %v1949 = vadd.f32 %v1882, 1.0
    %v1950 = vadd.f32 %v1884, 1.0
    %v1951 = vadd.f32 %v1886, 1.0
    %v1952 = vadd.f32 %v1888, 1.0
    %v1953 = vrcp.pop %v1889
    %v1954 = vrcp.pop %v1890
    %v1955 = vrcp.pop %v1891
    %v1956 = vrcp.pop %v1892
    %v1957 = vrcp.pop %v1893
    %v1958 = vrcp.pop %v1894
    %v1959 = vrcp.pop %v1895
    %v1960 = vrcp.pop %v1896
    %v1961 = vrcp.pop %v1897
    %v1962 = vrcp.pop %v1898
    %v1963 = vrcp.pop %v1899
    %v1964 = vrcp.pop %v1900
    %v1965 = vrcp.pop %v1901
    %v1966 = vrcp.pop %v1902
    %v1967 = vrcp.pop %v1903
    %v1968 = vrcp.pop %v1904
    %v1969 = vrcp.pop %v1905
    %v1970 = vrcp.pop %v1906
    %v1971 = vrcp.pop %v1907
    %v1972 = vrcp.pop %v1908
    %v1973 = vrcp.pop %v1909
    %v1974 = vrcp.pop %v1910
    %v1975 = vrcp.pop %v1911
    %v1976 = vrcp.pop %v1912
    %v1977 = vrcp.pop %v1913
    %v1978 = vrcp.pop %v1914
    %v1979 = vrcp.pop %v1915
    %v1980 = vrcp.pop %v1916
    %v1981 = vrcp.pop %v1917
    %v1982 = vrcp.pop %v1918
    %v1983 = vrcp.pop %v1919
    %v1984 = vrcp.pop %v1920
    %v1985 = vrcp.pop %v1921
    %v1986 = vrcp.pop %v1922
    %v1987 = vrcp.pop %v1923
    %v1988 = vrcp.pop %v1924
    %v1989 = vrcp.pop %v1925
    %v1990 = vrcp.pop %v1926
    %v1991 = vrcp.pop %v1927
    %v1992 = vrcp.pop %v1928
    %v1993 = vrcp.pop %v1929
    %v1994 = vrcp.pop %v1930
    %v1995 = vrcp.pop %v1931
    %v1996 = vrcp.pop %v1932
    %v1997 = vrcp.pop %v1933
    %v1998 = vrcp.pop %v1934
    %v1999 = vrcp.pop %v1935
    %v2000 = vrcp.pop %v1936
    %v2001 = vrcp.pop %v1937
    %v2002 = vrcp.pop %v1938
    %v2003 = vrcp.pop %v1939
    %v2004 = vrcp.pop %v1940
    %v2005 = vrcp.pop %v1941
    %v2006 = vrcp.pop %v1942
    %v2007 = vrcp.pop %v1943
    %v2008 = vrcp.pop %v1944
    %v2009 = vrcp.pop %v1945
    %v2010 = vrcp.pop %v1946
    %v2011 = vrcp.pop %v1947
    %v2012 = vrcp.pop %v1948
    %v2013 = vrcp.pop %v1949
    %v2014 = vrcp.pop %v1950
    %v2015 = vrcp.pop %v1951
    %v2016 = vrcp.pop %v1952
    %v2017 = vpack.c.bf16 %v1954, %v1953
    %v2018 = vpack.c.bf16 %v1956, %v1955
    %v2019 = vpack.c.bf16 %v1958, %v1957
    %v2020 = vpack.c.bf16 %v1960, %v1959
    %v2021 = vpack.c.bf16 %v1962, %v1961
    %v2022 = vpack.c.bf16 %v1964, %v1963
    %v2023 = vpack.c.bf16 %v1966, %v1965
    %v2024 = vpack.c.bf16 %v1968, %v1967
    %v2025 = vpack.c.bf16 %v1970, %v1969
    %v2026 = vpack.c.bf16 %v1972, %v1971
    %v2027 = vpack.c.bf16 %v1974, %v1973
    %v2028 = vpack.c.bf16 %v1976, %v1975
    %v2029 = vpack.c.bf16 %v1978, %v1977
    %v2030 = vpack.c.bf16 %v1980, %v1979
    %v2031 = vpack.c.bf16 %v1982, %v1981
    %v2032 = vpack.c.bf16 %v1984, %v1983
    %v2033 = vpack.c.bf16 %v1986, %v1985
    %v2034 = vpack.c.bf16 %v1988, %v1987
    %v2035 = vpack.c.bf16 %v1990, %v1989
    %v2036 = vpack.c.bf16 %v1992, %v1991
    %v2037 = vpack.c.bf16 %v1994, %v1993
    %v2038 = vpack.c.bf16 %v1996, %v1995
    %v2039 = vpack.c.bf16 %v1998, %v1997
    %v2040 = vpack.c.bf16 %v2000, %v1999
    %v2041 = vpack.c.bf16 %v2002, %v2001
    %v2042 = vpack.c.bf16 %v2004, %v2003
    %v2043 = vpack.c.bf16 %v2006, %v2005
    %v2044 = vpack.c.bf16 %v2008, %v2007
    %v2045 = vpack.c.bf16 %v2010, %v2009
    %v2046 = vpack.c.bf16 %v2012, %v2011
    %v2047 = vpack.c.bf16 %v2014, %v2013
    %v2048 = vpack.c.bf16 %v2016, %v2015
    %v2049 = vld [vmem:[%s5] sm:$0xf]
    %v2050 = vld [vmem:[%s5 + $0x4] sm:$0xf]
    %v2051 = vld [vmem:[%s5 + $0x8] sm:$0xf]
    %v2052 = vld [vmem:[%s5 + $0xc] sm:$0xf]
    %v2053 = vld [vmem:[%s6] sm:$0x1]
    %v2055 = vlaneseq
    %v2056 = vshrl.u32 %v2055, 7
    %v2057 = vsub.s32 0, %v2056
    %v2058 = vrot.slane %v2053, %v2057
    %v2064 = vunpack.c.l.b16 %v2049
    %v2065 = vunpack.c.l.b16 %v2050
    %v2066 = vunpack.c.l.b16 %v2051
    %v2067 = vunpack.c.l.b16 %v2052
    %v2068 = vpack.c.b16 %v2065, %v2064
    %v2069 = vpack.c.b16 %v2067, %v2066
    %vm2072 = vcmask 261120
    %v2074 = vsel %vm2072, %v2017, 0
    %v2077 = vsel %vm2072, %v2018, 0
    %v2080 = vsel %vm2072, %v2019, 0
    %v2083 = vsel %vm2072, %v2020, 0
    %v2086 = vsel %vm2072, %v2021, 0
    %v2089 = vsel %vm2072, %v2022, 0
    %v2092 = vsel %vm2072, %v2023, 0
    %v2095 = vsel %vm2072, %v2024, 0
    %v2098 = vsel %vm2072, %v2025, 0
    %v2101 = vsel %vm2072, %v2026, 0
    %v2104 = vsel %vm2072, %v2027, 0
    %v2107 = vsel %vm2072, %v2028, 0
    %v2110 = vsel %vm2072, %v2029, 0
    %v2113 = vsel %vm2072, %v2030, 0
    %v2116 = vsel %vm2072, %v2031, 0
    %v2119 = vsel %vm2072, %v2032, 0
    %v2122 = vsel %vm2072, %v2033, 0
    %v2125 = vsel %vm2072, %v2034, 0
    %v2128 = vsel %vm2072, %v2035, 0
    %v2131 = vsel %vm2072, %v2036, 0
    %v2134 = vsel %vm2072, %v2037, 0
    %v2137 = vsel %vm2072, %v2038, 0
    %v2140 = vsel %vm2072, %v2039, 0
    %v2143 = vsel %vm2072, %v2040, 0
    %v2146 = vsel %vm2072, %v2041, 0
    %v2149 = vsel %vm2072, %v2042, 0
    %v2152 = vsel %vm2072, %v2043, 0
    %v2155 = vsel %vm2072, %v2044, 0
    %v2158 = vsel %vm2072, %v2045, 0
    %v2161 = vsel %vm2072, %v2046, 0
    %v2164 = vsel %vm2072, %v2047, 0
    %v2167 = vsel %vm2072, %v2048, 0
    %2169 = vmatprep.subr.bf16.mxu0 0
    %2170 = vmatpush1.bf16.msra.mxu0 %v2068
    %2171 = vmatprep.subr.bf16.mxu0 0
    %2172 = vmatpush1.bf16.msra.mxu0 %v2069
    %2173 = vmatprep.subr.bf16.mxu0 0
    %2174 = vmatpush1.bf16.msra.mxu0 0
    %2175 = vmatprep.subr.bf16.mxu0 0
    %2176 = vmatpush1.bf16.msra.mxu0 0
    %2177 = vmatprep.subr.bf16.mxu0 0
    %2178 = vmatpush1.bf16.msra.mxu0 0
    %2179 = vmatprep.subr.bf16.mxu0 0
    %2180 = vmatpush1.bf16.msra.mxu0 0
    %2181 = vmatprep.subr.bf16.mxu0 0
    %2182 = vmatpush1.bf16.msra.mxu0 0
    %2183 = vmatprep.subr.bf16.mxu0 0
    %2184 = vmatpush1.bf16.msra.mxu0 0
    %2185 = vmatprep.subr.bf16.mxu0 0
    %2186 = vmatpush1.bf16.msra.mxu0 0
    %2187 = vmatprep.subr.bf16.mxu0 0
    %2188 = vmatpush1.bf16.msra.mxu0 0
    %2189 = vmatprep.subr.bf16.mxu0 0
    %2190 = vmatpush1.bf16.msra.mxu0 0
    %2191 = vmatprep.subr.bf16.mxu0 0
    %2192 = vmatpush1.bf16.msra.mxu0 0
    %2193 = vmatprep.subr.bf16.mxu0 0
    %2194 = vmatpush1.bf16.msra.mxu0 0
    %2195 = vmatprep.subr.bf16.mxu0 0
    %2196 = vmatpush1.bf16.msra.mxu0 0
    %2197 = vmatprep.subr.bf16.mxu0 0
    %2198 = vmatpush1.bf16.msra.mxu0 0
    %2199 = vmatprep.subr.bf16.mxu0 0
    %2200 = vmatpush1.bf16.msra.mxu0 0
    %2201 = vmatprep.mubr.bf16.mxu0 0
    %2202 = vmatmul.mubr.bf16.gmra.mrb[0].mxu0 %v2074
    %v2203 = vpop.f32.mrb[0].mxu0
    %v2204 = vadd.f32 %v2058, %v2203
    %v2205 = vpop.f32.mrb[0].mxu0
    %v2206 = vpop.f32.mrb[0].mxu0
    %v2207 = vadd.f32 %v2058, %v2206
    %v2208 = vpop.f32.mrb[0].mxu0
    %2209 = vmatprep.mubr.bf16.mxu0 0
    %2210 = vmatmul.mubr.bf16.gmra.mrb[0].mxu0 %v2077
    %v2211 = vpop.f32.mrb[0].mxu0
    %v2212 = vadd.f32 %v2058, %v2211
    %v2213 = vpop.f32.mrb[0].mxu0
    %v2214 = vpop.f32.mrb[0].mxu0
    %v2215 = vadd.f32 %v2058, %v2214
    %v2216 = vpop.f32.mrb[0].mxu0
    %2217 = vmatprep.mubr.bf16.mxu0 0
    %2218 = vmatmul.mubr.bf16.gmra.mrb[0].mxu0 %v2080
    %v2219 = vpop.f32.mrb[0].mxu0
    %v2220 = vadd.f32 %v2058, %v2219
    %v2221 = vpop.f32.mrb[0].mxu0
    %v2222 = vpop.f32.mrb[0].mxu0
    %v2223 = vadd.f32 %v2058, %v2222
    %v2224 = vpop.f32.mrb[0].mxu0
    %2225 = vmatprep.mubr.bf16.mxu0 0
    %2226 = vmatmul.mubr.bf16.gmra.mrb[0].mxu0 %v2083
    %v2227 = vpop.f32.mrb[0].mxu0
    %v2228 = vadd.f32 %v2058, %v2227
    %v2229 = vpop.f32.mrb[0].mxu0
    %v2230 = vpop.f32.mrb[0].mxu0
    %v2231 = vadd.f32 %v2058, %v2230
    %v2232 = vpop.f32.mrb[0].mxu0
    %2233 = vmatprep.mubr.bf16.mxu0 0
    %2234 = vmatmul.mubr.bf16.gmra.mrb[0].mxu0 %v2086
    %v2235 = vpop.f32.mrb[0].mxu0
    %v2236 = vadd.f32 %v2058, %v2235
    %v2237 = vpop.f32.mrb[0].mxu0
    %v2238 = vpop.f32.mrb[0].mxu0
    %v2239 = vadd.f32 %v2058, %v2238
    %v2240 = vpop.f32.mrb[0].mxu0
    %2241 = vmatprep.mubr.bf16.mxu0 0
    %2242 = vmatmul.mubr.bf16.gmra.mrb[0].mxu0 %v2089
    %v2243 = vpop.f32.mrb[0].mxu0
    %v2244 = vadd.f32 %v2058, %v2243
    %v2245 = vpop.f32.mrb[0].mxu0
    %v2246 = vpop.f32.mrb[0].mxu0
    %v2247 = vadd.f32 %v2058, %v2246
    %v2248 = vpop.f32.mrb[0].mxu0
    %2249 = vmatprep.mubr.bf16.mxu0 0
    %2250 = vmatmul.mubr.bf16.gmra.mrb[0].mxu0 %v2092
    %v2251 = vpop.f32.mrb[0].mxu0
    %v2252 = vadd.f32 %v2058, %v2251
    %v2253 = vpop.f32.mrb[0].mxu0
    %v2254 = vpop.f32.mrb[0].mxu0
    %v2255 = vadd.f32 %v2058, %v2254
    %v2256 = vpop.f32.mrb[0].mxu0
    %2257 = vmatprep.mubr.bf16.mxu0 0
    %2258 = vmatmul.mubr.bf16.gmra.mrb[0].mxu0 %v2095
    %v2259 = vpop.f32.mrb[0].mxu0
    %v2260 = vadd.f32 %v2058, %v2259
    %v2261 = vpop.f32.mrb[0].mxu0
    %v2262 = vpop.f32.mrb[0].mxu0
    %v2263 = vadd.f32 %v2058, %v2262
    %v2264 = vpop.f32.mrb[0].mxu0
    %2265 = vmatprep.mubr.bf16.mxu0 0
    %2266 = vmatmul.mubr.bf16.gmra.mrb[0].mxu0 %v2098
    %v2267 = vpop.f32.mrb[0].mxu0
    %v2268 = vadd.f32 %v2058, %v2267
    %v2269 = vpop.f32.mrb[0].mxu0
    %v2270 = vpop.f32.mrb[0].mxu0
    %v2271 = vadd.f32 %v2058, %v2270
    %v2272 = vpop.f32.mrb[0].mxu0
    %2273 = vmatprep.mubr.bf16.mxu0 0
    %2274 = vmatmul.mubr.bf16.gmra.mrb[0].mxu0 %v2101
    %v2275 = vpop.f32.mrb[0].mxu0
    %v2276 = vadd.f32 %v2058, %v2275
    %v2277 = vpop.f32.mrb[0].mxu0
    %v2278 = vpop.f32.mrb[0].mxu0
    %v2279 = vadd.f32 %v2058, %v2278
    %v2280 = vpop.f32.mrb[0].mxu0
    %2281 = vmatprep.mubr.bf16.mxu0 0
    %2282 = vmatmul.mubr.bf16.gmra.mrb[0].mxu0 %v2104
    %v2283 = vpop.f32.mrb[0].mxu0
    %v2284 = vadd.f32 %v2058, %v2283
    %v2285 = vpop.f32.mrb[0].mxu0
    %v2286 = vpop.f32.mrb[0].mxu0
    %v2287 = vadd.f32 %v2058, %v2286
    %v2288 = vpop.f32.mrb[0].mxu0
    %2289 = vmatprep.mubr.bf16.mxu0 0
    %2290 = vmatmul.mubr.bf16.gmra.mrb[0].mxu0 %v2107
    %v2291 = vpop.f32.mrb[0].mxu0
    %v2292 = vadd.f32 %v2058, %v2291
    %v2293 = vpop.f32.mrb[0].mxu0
    %v2294 = vpop.f32.mrb[0].mxu0
    %v2295 = vadd.f32 %v2058, %v2294
    %v2296 = vpop.f32.mrb[0].mxu0
    %2297 = vmatprep.mubr.bf16.mxu0 0
    %2298 = vmatmul.mubr.bf16.gmra.mrb[0].mxu0 %v2110
    %v2299 = vpop.f32.mrb[0].mxu0
    %v2300 = vadd.f32 %v2058, %v2299
    %v2301 = vpop.f32.mrb[0].mxu0
    %v2302 = vpop.f32.mrb[0].mxu0
    %v2303 = vadd.f32 %v2058, %v2302
    %v2304 = vpop.f32.mrb[0].mxu0
    %2305 = vmatprep.mubr.bf16.mxu0 0
    %2306 = vmatmul.mubr.bf16.gmra.mrb[0].mxu0 %v2113
    %v2307 = vpop.f32.mrb[0].mxu0
    %v2308 = vadd.f32 %v2058, %v2307
    %v2309 = vpop.f32.mrb[0].mxu0
    %v2310 = vpop.f32.mrb[0].mxu0
    %v2311 = vadd.f32 %v2058, %v2310
    %v2312 = vpop.f32.mrb[0].mxu0
    %2313 = vmatprep.mubr.bf16.mxu0 0
    %2314 = vmatmul.mubr.bf16.gmra.mrb[0].mxu0 %v2116
    %v2315 = vpop.f32.mrb[0].mxu0
    %v2316 = vadd.f32 %v2058, %v2315
    %v2317 = vpop.f32.mrb[0].mxu0
    %v2318 = vpop.f32.mrb[0].mxu0
    %v2319 = vadd.f32 %v2058, %v2318
    %v2320 = vpop.f32.mrb[0].mxu0
    %2321 = vmatprep.mubr.bf16.mxu0 0
    %2322 = vmatmul.mubr.bf16.gmra.mrb[0].mxu0 %v2119
    %v2323 = vpop.f32.mrb[0].mxu0
    %v2324 = vadd.f32 %v2058, %v2323
    %v2325 = vpop.f32.mrb[0].mxu0
    %v2326 = vpop.f32.mrb[0].mxu0
    %v2327 = vadd.f32 %v2058, %v2326
    %v2328 = vpop.f32.mrb[0].mxu0
    %2329 = vmatprep.mubr.bf16.mxu0 0
    %2330 = vmatmul.mubr.bf16.gmra.mrb[0].mxu0 %v2122
    %v2331 = vpop.f32.mrb[0].mxu0
    %v2332 = vadd.f32 %v2058, %v2331
    %v2333 = vpop.f32.mrb[0].mxu0
    %v2334 = vpop.f32.mrb[0].mxu0
    %v2335 = vadd.f32 %v2058, %v2334
    %v2336 = vpop.f32.mrb[0].mxu0
    %2337 = vmatprep.mubr.bf16.mxu0 0
    %2338 = vmatmul.mubr.bf16.gmra.mrb[0].mxu0 %v2125
    %v2339 = vpop.f32.mrb[0].mxu0
    %v2340 = vadd.f32 %v2058, %v2339
    %v2341 = vpop.f32.mrb[0].mxu0
    %v2342 = vpop.f32.mrb[0].mxu0
    %v2343 = vadd.f32 %v2058, %v2342
    %v2344 = vpop.f32.mrb[0].mxu0
    %2345 = vmatprep.mubr.bf16.mxu0 0
    %2346 = vmatmul.mubr.bf16.gmra.mrb[0].mxu0 %v2128
    %v2347 = vpop.f32.mrb[0].mxu0
    %v2348 = vadd.f32 %v2058, %v2347
    %v2349 = vpop.f32.mrb[0].mxu0
    %v2350 = vpop.f32.mrb[0].mxu0
    %v2351 = vadd.f32 %v2058, %v2350
    %v2352 = vpop.f32.mrb[0].mxu0
    %2353 = vmatprep.mubr.bf16.mxu0 0
    %2354 = vmatmul.mubr.bf16.gmra.mrb[0].mxu0 %v2131
    %v2355 = vpop.f32.mrb[0].mxu0
    %v2356 = vadd.f32 %v2058, %v2355
    %v2357 = vpop.f32.mrb[0].mxu0
    %v2358 = vpop.f32.mrb[0].mxu0
    %v2359 = vadd.f32 %v2058, %v2358
    %v2360 = vpop.f32.mrb[0].mxu0
    %2361 = vmatprep.mubr.bf16.mxu0 0
    %2362 = vmatmul.mubr.bf16.gmra.mrb[0].mxu0 %v2134
    %v2363 = vpop.f32.mrb[0].mxu0
    %v2364 = vadd.f32 %v2058, %v2363
    %v2365 = vpop.f32.mrb[0].mxu0
    %v2366 = vpop.f32.mrb[0].mxu0
    %v2367 = vadd.f32 %v2058, %v2366
    %v2368 = vpop.f32.mrb[0].mxu0
    %2369 = vmatprep.mubr.bf16.mxu0 0
    %2370 = vmatmul.mubr.bf16.gmra.mrb[0].mxu0 %v2137
    %v2371 = vpop.f32.mrb[0].mxu0
    %v2372 = vadd.f32 %v2058, %v2371
    %v2373 = vpop.f32.mrb[0].mxu0
    %v2374 = vpop.f32.mrb[0].mxu0
    %v2375 = vadd.f32 %v2058, %v2374
    %v2376 = vpop.f32.mrb[0].mxu0
    %2377 = vmatprep.mubr.bf16.mxu0 0
    %2378 = vmatmul.mubr.bf16.gmra.mrb[0].mxu0 %v2140
    %v2379 = vpop.f32.mrb[0].mxu0
    %v2380 = vadd.f32 %v2058, %v2379
    %v2381 = vpop.f32.mrb[0].mxu0
    %v2382 = vpop.f32.mrb[0].mxu0
    %v2383 = vadd.f32 %v2058, %v2382
    %v2384 = vpop.f32.mrb[0].mxu0
    %2385 = vmatprep.mubr.bf16.mxu0 0
    %2386 = vmatmul.mubr.bf16.gmra.mrb[0].mxu0 %v2143
    %v2387 = vpop.f32.mrb[0].mxu0
    %v2388 = vadd.f32 %v2058, %v2387
    %v2389 = vpop.f32.mrb[0].mxu0
    %v2390 = vpop.f32.mrb[0].mxu0
    %v2391 = vadd.f32 %v2058, %v2390
    %v2392 = vpop.f32.mrb[0].mxu0
    %2393 = vmatprep.mubr.bf16.mxu0 0
    %2394 = vmatmul.mubr.bf16.gmra.mrb[0].mxu0 %v2146
    %v2395 = vpop.f32.mrb[0].mxu0
    %v2396 = vadd.f32 %v2058, %v2395
    %v2397 = vpop.f32.mrb[0].mxu0
    %v2398 = vpop.f32.mrb[0].mxu0
    %v2399 = vadd.f32 %v2058, %v2398
    %v2400 = vpop.f32.mrb[0].mxu0
    %2401 = vmatprep.mubr.bf16.mxu0 0
    %2402 = vmatmul.mubr.bf16.gmra.mrb[0].mxu0 %v2149
    %v2403 = vpop.f32.mrb[0].mxu0
    %v2404 = vadd.f32 %v2058, %v2403
    %v2405 = vpop.f32.mrb[0].mxu0
    %v2406 = vpop.f32.mrb[0].mxu0
    %v2407 = vadd.f32 %v2058, %v2406
    %v2408 = vpop.f32.mrb[0].mxu0
    %2409 = vmatprep.mubr.bf16.mxu0 0
    %2410 = vmatmul.mubr.bf16.gmra.mrb[0].mxu0 %v2152
    %v2411 = vpop.f32.mrb[0].mxu0
    %v2412 = vadd.f32 %v2058, %v2411
    %v2413 = vpop.f32.mrb[0].mxu0
    %v2414 = vpop.f32.mrb[0].mxu0
    %v2415 = vadd.f32 %v2058, %v2414
    %v2416 = vpop.f32.mrb[0].mxu0
    %2417 = vmatprep.mubr.bf16.mxu0 0
    %2418 = vmatmul.mubr.bf16.gmra.mrb[0].mxu0 %v2155
    %v2419 = vpop.f32.mrb[0].mxu0
    %v2420 = vadd.f32 %v2058, %v2419
    %v2421 = vpop.f32.mrb[0].mxu0
    %v2422 = vpop.f32.mrb[0].mxu0
    %v2423 = vadd.f32 %v2058, %v2422
    %v2424 = vpop.f32.mrb[0].mxu0
    %2425 = vmatprep.mubr.bf16.mxu0 0
    %2426 = vmatmul.mubr.bf16.gmra.mrb[0].mxu0 %v2158
    %v2427 = vpop.f32.mrb[0].mxu0
    %v2428 = vadd.f32 %v2058, %v2427
    %v2429 = vpop.f32.mrb[0].mxu0
    %v2430 = vpop.f32.mrb[0].mxu0
    %v2431 = vadd.f32 %v2058, %v2430
    %v2432 = vpop.f32.mrb[0].mxu0
    %2433 = vmatprep.mubr.bf16.mxu0 0
    %2434 = vmatmul.mubr.bf16.gmra.mrb[0].mxu0 %v2161
    %v2435 = vpop.f32.mrb[0].mxu0
    %v2436 = vadd.f32 %v2058, %v2435
    %v2437 = vpop.f32.mrb[0].mxu0
    %v2438 = vpop.f32.mrb[0].mxu0
    %v2439 = vadd.f32 %v2058, %v2438
    %v2440 = vpop.f32.mrb[0].mxu0
    %2441 = vmatprep.mubr.bf16.mxu0 0
    %2442 = vmatmul.mubr.bf16.gmra.mrb[0].mxu0 %v2164
    %v2443 = vpop.f32.mrb[0].mxu0
    %v2444 = vadd.f32 %v2058, %v2443
    %v2445 = vpop.f32.mrb[0].mxu0
    %v2446 = vpop.f32.mrb[0].mxu0
    %v2447 = vadd.f32 %v2058, %v2446
    %v2448 = vpop.f32.mrb[0].mxu0
    %2449 = vmatprep.mubr.bf16.mxu0 0
    %2450 = vmatmul.mubr.bf16.gmra.mrb[0].mxu0 %v2167
    %v2451 = vpop.f32.mrb[0].mxu0
    %v2452 = vadd.f32 %v2058, %v2451
    %v2453 = vpop.f32.mrb[0].mxu0
    %v2454 = vpop.f32.mrb[0].mxu0
    %v2455 = vadd.f32 %v2058, %v2454
    %v2456 = vpop.f32.mrb[0].mxu0
    %2457 = vdwg.mxu0
    %vm2458 = vcmask 64512
    %2459 = vst.msk [vmem:[%s14] sm:$0xff] %vm2458, %v2204
    %2460 = vst.msk [vmem:[%s14 + $0x8] sm:$0xff] %vm2458, %v2207
    %2461 = vst.msk [vmem:[%s14 + $0x10] sm:$0xff] %vm2458, %v2212
    %2462 = vst.msk [vmem:[%s14 + $0x18] sm:$0xff] %vm2458, %v2215
    %2463 = vst.msk [vmem:[%s14 + $0x20] sm:$0xff] %vm2458, %v2220
    %2464 = vst.msk [vmem:[%s14 + $0x28] sm:$0xff] %vm2458, %v2223
    %2465 = vst.msk [vmem:[%s14 + $0x30] sm:$0xff] %vm2458, %v2228
    %2466 = vst.msk [vmem:[%s14 + $0x38] sm:$0xff] %vm2458, %v2231
    %2467 = vst.msk [vmem:[%s14 + $0x40] sm:$0xff] %vm2458, %v2236
    %2468 = vst.msk [vmem:[%s14 + $0x48] sm:$0xff] %vm2458, %v2239
    %2469 = vst.msk [vmem:[%s14 + $0x50] sm:$0xff] %vm2458, %v2244
    %2470 = vst.msk [vmem:[%s14 + $0x58] sm:$0xff] %vm2458, %v2247
    %2471 = vst.msk [vmem:[%s14 + $0x60] sm:$0xff] %vm2458, %v2252
    %2472 = vst.msk [vmem:[%s14 + $0x68] sm:$0xff] %vm2458, %v2255
    %2473 = vst.msk [vmem:[%s14 + $0x70] sm:$0xff] %vm2458, %v2260
    %2474 = vst.msk [vmem:[%s14 + $0x78] sm:$0xff] %vm2458, %v2263
    %2475 = vst.msk [vmem:[%s14 + $0x80] sm:$0xff] %vm2458, %v2268
    %2476 = vst.msk [vmem:[%s14 + $0x88] sm:$0xff] %vm2458, %v2271
    %2477 = vst.msk [vmem:[%s14 + $0x90] sm:$0xff] %vm2458, %v2276
    %2478 = vst.msk [vmem:[%s14 + $0x98] sm:$0xff] %vm2458, %v2279
    %2479 = vst.msk [vmem:[%s14 + $0xa0] sm:$0xff] %vm2458, %v2284
    %2480 = vst.msk [vmem:[%s14 + $0xa8] sm:$0xff] %vm2458, %v2287
    %2481 = vst.msk [vmem:[%s14 + $0xb0] sm:$0xff] %vm2458, %v2292
    %2482 = vst.msk [vmem:[%s14 + $0xb8] sm:$0xff] %vm2458, %v2295
    %2483 = vst.msk [vmem:[%s14 + $0xc0] sm:$0xff] %vm2458, %v2300
    %2484 = vst.msk [vmem:[%s14 + $0xc8] sm:$0xff] %vm2458, %v2303
    %2485 = vst.msk [vmem:[%s14 + $0xd0] sm:$0xff] %vm2458, %v2308
    %2486 = vst.msk [vmem:[%s14 + $0xd8] sm:$0xff] %vm2458, %v2311
    %2487 = vst.msk [vmem:[%s14 + $0xe0] sm:$0xff] %vm2458, %v2316
    %2488 = vst.msk [vmem:[%s14 + $0xe8] sm:$0xff] %vm2458, %v2319
    %2489 = vst.msk [vmem:[%s14 + $0xf0] sm:$0xff] %vm2458, %v2324
    %2490 = vst.msk [vmem:[%s14 + $0xf8] sm:$0xff] %vm2458, %v2327
    %2491 = vst.msk [vmem:[%s14 + $0x100] sm:$0xff] %vm2458, %v2332
    %2492 = vst.msk [vmem:[%s14 + $0x108] sm:$0xff] %vm2458, %v2335
    %2493 = vst.msk [vmem:[%s14 + $0x110] sm:$0xff] %vm2458, %v2340
    %2494 = vst.msk [vmem:[%s14 + $0x118] sm:$0xff] %vm2458, %v2343
    %2495 = vst.msk [vmem:[%s14 + $0x120] sm:$0xff] %vm2458, %v2348
    %2496 = vst.msk [vmem:[%s14 + $0x128] sm:$0xff] %vm2458, %v2351
    %2497 = vst.msk [vmem:[%s14 + $0x130] sm:$0xff] %vm2458, %v2356
    %2498 = vst.msk [vmem:[%s14 + $0x138] sm:$0xff] %vm2458, %v2359
    %2499 = vst.msk [vmem:[%s14 + $0x140] sm:$0xff] %vm2458, %v2364
    %2500 = vst.msk [vmem:[%s14 + $0x148] sm:$0xff] %vm2458, %v2367
    %2501 = vst.msk [vmem:[%s14 + $0x150] sm:$0xff] %vm2458, %v2372
    %2502 = vst.msk [vmem:[%s14 + $0x158] sm:$0xff] %vm2458, %v2375
    %2503 = vst.msk [vmem:[%s14 + $0x160] sm:$0xff] %vm2458, %v2380
    %2504 = vst.msk [vmem:[%s14 + $0x168] sm:$0xff] %vm2458, %v2383
    %2505 = vst.msk [vmem:[%s14 + $0x170] sm:$0xff] %vm2458, %v2388
    %2506 = vst.msk [vmem:[%s14 + $0x178] sm:$0xff] %vm2458, %v2391
    %2507 = vst.msk [vmem:[%s14 + $0x180] sm:$0xff] %vm2458, %v2396
    %2508 = vst.msk [vmem:[%s14 + $0x188] sm:$0xff] %vm2458, %v2399
    %2509 = vst.msk [vmem:[%s14 + $0x190] sm:$0xff] %vm2458, %v2404
    %2510 = vst.msk [vmem:[%s14 + $0x198] sm:$0xff] %vm2458, %v2407
    %2511 = vst.msk [vmem:[%s14 + $0x1a0] sm:$0xff] %vm2458, %v2412
    %2512 = vst.msk [vmem:[%s14 + $0x1a8] sm:$0xff] %vm2458, %v2415
    %2513 = vst.msk [vmem:[%s14 + $0x1b0] sm:$0xff] %vm2458, %v2420
    %2514 = vst.msk [vmem:[%s14 + $0x1b8] sm:$0xff] %vm2458, %v2423
    %2515 = vst.msk [vmem:[%s14 + $0x1c0] sm:$0xff] %vm2458, %v2428
    %2516 = vst.msk [vmem:[%s14 + $0x1c8] sm:$0xff] %vm2458, %v2431
    %2517 = vst.msk [vmem:[%s14 + $0x1d0] sm:$0xff] %vm2458, %v2436
    %2518 = vst.msk [vmem:[%s14 + $0x1d8] sm:$0xff] %vm2458, %v2439
    %2519 = vst.msk [vmem:[%s14 + $0x1e0] sm:$0xff] %vm2458, %v2444
    %2520 = vst.msk [vmem:[%s14 + $0x1e8] sm:$0xff] %vm2458, %v2447
    %2521 = vst.msk [vmem:[%s14 + $0x1f0] sm:$0xff] %vm2458, %v2452
    %2522 = vst.msk [vmem:[%s14 + $0x1f8] sm:$0xff] %vm2458, %v2455
    %v2523 = vld [vmem:[%s7] sm:$0xf]
    %v2524 = vld [vmem:[%s7 + $0x4] sm:$0xf]
    %v2525 = vld [vmem:[%s7 + $0x8] sm:$0xf]
    %v2526 = vld [vmem:[%s7 + $0xc] sm:$0xf]
    %v2527 = vld [vmem:[%s8] sm:$0x1]
    %v2529 = vlaneseq
    %v2530 = vshrl.u32 %v2529, 7
    %v2531 = vsub.s32 0, %v2530
    %v2532 = vrot.slane %v2527, %v2531
    %v2538 = vunpack.c.l.b16 %v2523
    %v2539 = vunpack.c.l.b16 %v2524
    %v2540 = vunpack.c.l.b16 %v2525
    %v2541 = vunpack.c.l.b16 %v2526
    %v2542 = vpack.c.b16 %v2539, %v2538
    %v2543 = vpack.c.b16 %v2541, %v2540
    %2546 = vmatprep.subr.bf16.mxu0 0
    %2547 = vmatpush1.bf16.msra.mxu0 %v2542
    %2548 = vmatprep.subr.bf16.mxu0 0
    %2549 = vmatpush1.bf16.msra.mxu0 %v2543
    %2550 = vmatprep.subr.bf16.mxu0 0
    %2551 = vmatpush1.bf16.msra.mxu0 0
    %2552 = vmatprep.subr.bf16.mxu0 0
    %2553 = vmatpush1.bf16.msra.mxu0 0
    %2554 = vmatprep.subr.bf16.mxu0 0
    %2555 = vmatpush1.bf16.msra.mxu0 0
    %2556 = vmatprep.subr.bf16.mxu0 0
    %2557 = vmatpush1.bf16.msra.mxu0 0
    %2558 = vmatprep.subr.bf16.mxu0 0
    %2559 = vmatpush1.bf16.msra.mxu0 0
    %2560 = vmatprep.subr.bf16.mxu0 0
    %2561 = vmatpush1.bf16.msra.mxu0 0
    %2562 = vmatprep.subr.bf16.mxu0 0
    %2563 = vmatpush1.bf16.msra.mxu0 0
    %2564 = vmatprep.subr.bf16.mxu0 0
    %2565 = vmatpush1.bf16.msra.mxu0 0
    %2566 = vmatprep.subr.bf16.mxu0 0
    %2567 = vmatpush1.bf16.msra.mxu0 0
    %2568 = vmatprep.subr.bf16.mxu0 0
    %2569 = vmatpush1.bf16.msra.mxu0 0
    %2570 = vmatprep.subr.bf16.mxu0 0
    %2571 = vmatpush1.bf16.msra.mxu0 0
    %2572 = vmatprep.subr.bf16.mxu0 0
    %2573 = vmatpush1.bf16.msra.mxu0 0
    %2574 = vmatprep.subr.bf16.mxu0 0
    %2575 = vmatpush1.bf16.msra.mxu0 0
    %2576 = vmatprep.subr.bf16.mxu0 0
    %2577 = vmatpush1.bf16.msra.mxu0 0
    %2578 = vmatprep.mubr.bf16.mxu0 0
    %2579 = vmatmul.mubr.bf16.gmra.mrb[0].mxu0 %v2074
    %v2580 = vpop.f32.mrb[0].mxu0
    %v2581 = vadd.f32 %v2532, %v2580
    %v2582 = vpop.f32.mrb[0].mxu0
    %v2583 = vpop.f32.mrb[0].mxu0
    %v2584 = vadd.f32 %v2532, %v2583
    %v2585 = vpop.f32.mrb[0].mxu0
    %2586 = vmatprep.mubr.bf16.mxu0 0
    %2587 = vmatmul.mubr.bf16.gmra.mrb[0].mxu0 %v2077
    %v2588 = vpop.f32.mrb[0].mxu0
    %v2589 = vadd.f32 %v2532, %v2588
    %v2590 = vpop.f32.mrb[0].mxu0
    %v2591 = vpop.f32.mrb[0].mxu0
    %v2592 = vadd.f32 %v2532, %v2591
    %v2593 = vpop.f32.mrb[0].mxu0
    %2594 = vmatprep.mubr.bf16.mxu0 0
    %2595 = vmatmul.mubr.bf16.gmra.mrb[0].mxu0 %v2080
    %v2596 = vpop.f32.mrb[0].mxu0
    %v2597 = vadd.f32 %v2532, %v2596
    %v2598 = vpop.f32.mrb[0].mxu0
    %v2599 = vpop.f32.mrb[0].mxu0
    %v2600 = vadd.f32 %v2532, %v2599
    %v2601 = vpop.f32.mrb[0].mxu0
    %2602 = vmatprep.mubr.bf16.mxu0 0
    %2603 = vmatmul.mubr.bf16.gmra.mrb[0].mxu0 %v2083
    %v2604 = vpop.f32.mrb[0].mxu0
    %v2605 = vadd.f32 %v2532, %v2604
    %v2606 = vpop.f32.mrb[0].mxu0
    %v2607 = vpop.f32.mrb[0].mxu0
    %v2608 = vadd.f32 %v2532, %v2607
    %v2609 = vpop.f32.mrb[0].mxu0
    %2610 = vmatprep.mubr.bf16.mxu0 0
    %2611 = vmatmul.mubr.bf16.gmra.mrb[0].mxu0 %v2086
    %v2612 = vpop.f32.mrb[0].mxu0
    %v2613 = vadd.f32 %v2532, %v2612
    %v2614 = vpop.f32.mrb[0].mxu0
    %v2615 = vpop.f32.mrb[0].mxu0
    %v2616 = vadd.f32 %v2532, %v2615
    %v2617 = vpop.f32.mrb[0].mxu0
    %2618 = vmatprep.mubr.bf16.mxu0 0
    %2619 = vmatmul.mubr.bf16.gmra.mrb[0].mxu0 %v2089
    %v2620 = vpop.f32.mrb[0].mxu0
    %v2621 = vadd.f32 %v2532, %v2620
    %v2622 = vpop.f32.mrb[0].mxu0
    %v2623 = vpop.f32.mrb[0].mxu0
    %v2624 = vadd.f32 %v2532, %v2623
    %v2625 = vpop.f32.mrb[0].mxu0
    %2626 = vmatprep.mubr.bf16.mxu0 0
    %2627 = vmatmul.mubr.bf16.gmra.mrb[0].mxu0 %v2092
    %v2628 = vpop.f32.mrb[0].mxu0
    %v2629 = vadd.f32 %v2532, %v2628
    %v2630 = vpop.f32.mrb[0].mxu0
    %v2631 = vpop.f32.mrb[0].mxu0
    %v2632 = vadd.f32 %v2532, %v2631
    %v2633 = vpop.f32.mrb[0].mxu0
    %2634 = vmatprep.mubr.bf16.mxu0 0
    %2635 = vmatmul.mubr.bf16.gmra.mrb[0].mxu0 %v2095
    %v2636 = vpop.f32.mrb[0].mxu0
    %v2637 = vadd.f32 %v2532, %v2636
    %v2638 = vpop.f32.mrb[0].mxu0
    %v2639 = vpop.f32.mrb[0].mxu0
    %v2640 = vadd.f32 %v2532, %v2639
    %v2641 = vpop.f32.mrb[0].mxu0
    %2642 = vmatprep.mubr.bf16.mxu0 0
    %2643 = vmatmul.mubr.bf16.gmra.mrb[0].mxu0 %v2098
    %v2644 = vpop.f32.mrb[0].mxu0
    %v2645 = vadd.f32 %v2532, %v2644
    %v2646 = vpop.f32.mrb[0].mxu0
    %v2647 = vpop.f32.mrb[0].mxu0
    %v2648 = vadd.f32 %v2532, %v2647
    %v2649 = vpop.f32.mrb[0].mxu0
    %2650 = vmatprep.mubr.bf16.mxu0 0
    %2651 = vmatmul.mubr.bf16.gmra.mrb[0].mxu0 %v2101
    %v2652 = vpop.f32.mrb[0].mxu0
    %v2653 = vadd.f32 %v2532, %v2652
    %v2654 = vpop.f32.mrb[0].mxu0
    %v2655 = vpop.f32.mrb[0].mxu0
    %v2656 = vadd.f32 %v2532, %v2655
    %v2657 = vpop.f32.mrb[0].mxu0
    %2658 = vmatprep.mubr.bf16.mxu0 0
    %2659 = vmatmul.mubr.bf16.gmra.mrb[0].mxu0 %v2104
    %v2660 = vpop.f32.mrb[0].mxu0
    %v2661 = vadd.f32 %v2532, %v2660
    %v2662 = vpop.f32.mrb[0].mxu0
    %v2663 = vpop.f32.mrb[0].mxu0
    %v2664 = vadd.f32 %v2532, %v2663
    %v2665 = vpop.f32.mrb[0].mxu0
    %2666 = vmatprep.mubr.bf16.mxu0 0
    %2667 = vmatmul.mubr.bf16.gmra.mrb[0].mxu0 %v2107
    %v2668 = vpop.f32.mrb[0].mxu0
    %v2669 = vadd.f32 %v2532, %v2668
    %v2670 = vpop.f32.mrb[0].mxu0
    %v2671 = vpop.f32.mrb[0].mxu0
    %v2672 = vadd.f32 %v2532, %v2671
    %v2673 = vpop.f32.mrb[0].mxu0
    %2674 = vmatprep.mubr.bf16.mxu0 0
    %2675 = vmatmul.mubr.bf16.gmra.mrb[0].mxu0 %v2110
    %v2676 = vpop.f32.mrb[0].mxu0
    %v2677 = vadd.f32 %v2532, %v2676
    %v2678 = vpop.f32.mrb[0].mxu0
    %v2679 = vpop.f32.mrb[0].mxu0
    %v2680 = vadd.f32 %v2532, %v2679
    %v2681 = vpop.f32.mrb[0].mxu0
    %2682 = vmatprep.mubr.bf16.mxu0 0
    %2683 = vmatmul.mubr.bf16.gmra.mrb[0].mxu0 %v2113
    %v2684 = vpop.f32.mrb[0].mxu0
    %v2685 = vadd.f32 %v2532, %v2684
    %v2686 = vpop.f32.mrb[0].mxu0
    %v2687 = vpop.f32.mrb[0].mxu0
    %v2688 = vadd.f32 %v2532, %v2687
    %v2689 = vpop.f32.mrb[0].mxu0
    %2690 = vmatprep.mubr.bf16.mxu0 0
    %2691 = vmatmul.mubr.bf16.gmra.mrb[0].mxu0 %v2116
    %v2692 = vpop.f32.mrb[0].mxu0
    %v2693 = vadd.f32 %v2532, %v2692
    %v2694 = vpop.f32.mrb[0].mxu0
    %v2695 = vpop.f32.mrb[0].mxu0
    %v2696 = vadd.f32 %v2532, %v2695
    %v2697 = vpop.f32.mrb[0].mxu0
    %2698 = vmatprep.mubr.bf16.mxu0 0
    %2699 = vmatmul.mubr.bf16.gmra.mrb[0].mxu0 %v2119
    %v2700 = vpop.f32.mrb[0].mxu0
    %v2701 = vadd.f32 %v2532, %v2700
    %v2702 = vpop.f32.mrb[0].mxu0
    %v2703 = vpop.f32.mrb[0].mxu0
    %v2704 = vadd.f32 %v2532, %v2703
    %v2705 = vpop.f32.mrb[0].mxu0
    %2706 = vmatprep.mubr.bf16.mxu0 0
    %2707 = vmatmul.mubr.bf16.gmra.mrb[0].mxu0 %v2122
    %v2708 = vpop.f32.mrb[0].mxu0
    %v2709 = vadd.f32 %v2532, %v2708
    %v2710 = vpop.f32.mrb[0].mxu0
    %v2711 = vpop.f32.mrb[0].mxu0
    %v2712 = vadd.f32 %v2532, %v2711
    %v2713 = vpop.f32.mrb[0].mxu0
    %2714 = vmatprep.mubr.bf16.mxu0 0
    %2715 = vmatmul.mubr.bf16.gmra.mrb[0].mxu0 %v2125
    %v2716 = vpop.f32.mrb[0].mxu0
    %v2717 = vadd.f32 %v2532, %v2716
    %v2718 = vpop.f32.mrb[0].mxu0
    %v2719 = vpop.f32.mrb[0].mxu0
    %v2720 = vadd.f32 %v2532, %v2719
    %v2721 = vpop.f32.mrb[0].mxu0
    %2722 = vmatprep.mubr.bf16.mxu0 0
    %2723 = vmatmul.mubr.bf16.gmra.mrb[0].mxu0 %v2128
    %v2724 = vpop.f32.mrb[0].mxu0
    %v2725 = vadd.f32 %v2532, %v2724
    %v2726 = vpop.f32.mrb[0].mxu0
    %v2727 = vpop.f32.mrb[0].mxu0
    %v2728 = vadd.f32 %v2532, %v2727
    %v2729 = vpop.f32.mrb[0].mxu0
    %2730 = vmatprep.mubr.bf16.mxu0 0
    %2731 = vmatmul.mubr.bf16.gmra.mrb[0].mxu0 %v2131
    %v2732 = vpop.f32.mrb[0].mxu0
    %v2733 = vadd.f32 %v2532, %v2732
    %v2734 = vpop.f32.mrb[0].mxu0
    %v2735 = vpop.f32.mrb[0].mxu0
    %v2736 = vadd.f32 %v2532, %v2735
    %v2737 = vpop.f32.mrb[0].mxu0
    %2738 = vmatprep.mubr.bf16.mxu0 0
    %2739 = vmatmul.mubr.bf16.gmra.mrb[0].mxu0 %v2134
    %v2740 = vpop.f32.mrb[0].mxu0
    %v2741 = vadd.f32 %v2532, %v2740
    %v2742 = vpop.f32.mrb[0].mxu0
    %v2743 = vpop.f32.mrb[0].mxu0
    %v2744 = vadd.f32 %v2532, %v2743
    %v2745 = vpop.f32.mrb[0].mxu0
    %2746 = vmatprep.mubr.bf16.mxu0 0
    %2747 = vmatmul.mubr.bf16.gmra.mrb[0].mxu0 %v2137
    %v2748 = vpop.f32.mrb[0].mxu0
    %v2749 = vadd.f32 %v2532, %v2748
    %v2750 = vpop.f32.mrb[0].mxu0
    %v2751 = vpop.f32.mrb[0].mxu0
    %v2752 = vadd.f32 %v2532, %v2751
    %v2753 = vpop.f32.mrb[0].mxu0
    %2754 = vmatprep.mubr.bf16.mxu0 0
    %2755 = vmatmul.mubr.bf16.gmra.mrb[0].mxu0 %v2140
    %v2756 = vpop.f32.mrb[0].mxu0
    %v2757 = vadd.f32 %v2532, %v2756
    %v2758 = vpop.f32.mrb[0].mxu0
    %v2759 = vpop.f32.mrb[0].mxu0
    %v2760 = vadd.f32 %v2532, %v2759
    %v2761 = vpop.f32.mrb[0].mxu0
    %2762 = vmatprep.mubr.bf16.mxu0 0
    %2763 = vmatmul.mubr.bf16.gmra.mrb[0].mxu0 %v2143
    %v2764 = vpop.f32.mrb[0].mxu0
    %v2765 = vadd.f32 %v2532, %v2764
    %v2766 = vpop.f32.mrb[0].mxu0
    %v2767 = vpop.f32.mrb[0].mxu0
    %v2768 = vadd.f32 %v2532, %v2767
    %v2769 = vpop.f32.mrb[0].mxu0
    %2770 = vmatprep.mubr.bf16.mxu0 0
    %2771 = vmatmul.mubr.bf16.gmra.mrb[0].mxu0 %v2146
    %v2772 = vpop.f32.mrb[0].mxu0
    %v2773 = vadd.f32 %v2532, %v2772
    %v2774 = vpop.f32.mrb[0].mxu0
    %v2775 = vpop.f32.mrb[0].mxu0
    %v2776 = vadd.f32 %v2532, %v2775
    %v2777 = vpop.f32.mrb[0].mxu0
    %2778 = vmatprep.mubr.bf16.mxu0 0
    %2779 = vmatmul.mubr.bf16.gmra.mrb[0].mxu0 %v2149
    %v2780 = vpop.f32.mrb[0].mxu0
    %v2781 = vadd.f32 %v2532, %v2780
    %v2782 = vpop.f32.mrb[0].mxu0
    %v2783 = vpop.f32.mrb[0].mxu0
    %v2784 = vadd.f32 %v2532, %v2783
    %v2785 = vpop.f32.mrb[0].mxu0
    %2786 = vmatprep.mubr.bf16.mxu0 0
    %2787 = vmatmul.mubr.bf16.gmra.mrb[0].mxu0 %v2152
    %v2788 = vpop.f32.mrb[0].mxu0
    %v2789 = vadd.f32 %v2532, %v2788
    %v2790 = vpop.f32.mrb[0].mxu0
    %v2791 = vpop.f32.mrb[0].mxu0
    %v2792 = vadd.f32 %v2532, %v2791
    %v2793 = vpop.f32.mrb[0].mxu0
    %2794 = vmatprep.mubr.bf16.mxu0 0
    %2795 = vmatmul.mubr.bf16.gmra.mrb[0].mxu0 %v2155
    %v2796 = vpop.f32.mrb[0].mxu0
    %v2797 = vadd.f32 %v2532, %v2796
    %v2798 = vpop.f32.mrb[0].mxu0
    %v2799 = vpop.f32.mrb[0].mxu0
    %v2800 = vadd.f32 %v2532, %v2799
    %v2801 = vpop.f32.mrb[0].mxu0
    %2802 = vmatprep.mubr.bf16.mxu0 0
    %2803 = vmatmul.mubr.bf16.gmra.mrb[0].mxu0 %v2158
    %v2804 = vpop.f32.mrb[0].mxu0
    %v2805 = vadd.f32 %v2532, %v2804
    %v2806 = vpop.f32.mrb[0].mxu0
    %v2807 = vpop.f32.mrb[0].mxu0
    %v2808 = vadd.f32 %v2532, %v2807
    %v2809 = vpop.f32.mrb[0].mxu0
    %2810 = vmatprep.mubr.bf16.mxu0 0
    %2811 = vmatmul.mubr.bf16.gmra.mrb[0].mxu0 %v2161
    %v2812 = vpop.f32.mrb[0].mxu0
    %v2813 = vadd.f32 %v2532, %v2812
    %v2814 = vpop.f32.mrb[0].mxu0
    %v2815 = vpop.f32.mrb[0].mxu0
    %v2816 = vadd.f32 %v2532, %v2815
    %v2817 = vpop.f32.mrb[0].mxu0
    %2818 = vmatprep.mubr.bf16.mxu0 0
    %2819 = vmatmul.mubr.bf16.gmra.mrb[0].mxu0 %v2164
    %v2820 = vpop.f32.mrb[0].mxu0
    %v2821 = vadd.f32 %v2532, %v2820
    %v2822 = vpop.f32.mrb[0].mxu0
    %v2823 = vpop.f32.mrb[0].mxu0
    %v2824 = vadd.f32 %v2532, %v2823
    %v2825 = vpop.f32.mrb[0].mxu0
    %2826 = vmatprep.mubr.bf16.mxu0 0
    %2827 = vmatmul.mubr.bf16.gmra.mrb[0].mxu0 %v2167
    %v2828 = vpop.f32.mrb[0].mxu0
    %v2829 = vadd.f32 %v2532, %v2828
    %v2830 = vpop.f32.mrb[0].mxu0
    %v2831 = vpop.f32.mrb[0].mxu0
    %v2832 = vadd.f32 %v2532, %v2831
    %v2833 = vpop.f32.mrb[0].mxu0
    %2834 = vdwg.mxu0
    %v2835 = vmax.f32 %v2581, -60.0
    %v2836 = vmax.f32 %v2584, -60.0
    %v2837 = vmax.f32 %v2589, -60.0
    %v2838 = vmax.f32 %v2592, -60.0
    %v2839 = vmax.f32 %v2597, -60.0
    %v2840 = vmax.f32 %v2600, -60.0
    %v2841 = vmax.f32 %v2605, -60.0
    %v2842 = vmax.f32 %v2608, -60.0
    %v2843 = vmax.f32 %v2613, -60.0
    %v2844 = vmax.f32 %v2616, -60.0
    %v2845 = vmax.f32 %v2621, -60.0
    %v2846 = vmax.f32 %v2624, -60.0
    %v2847 = vmax.f32 %v2629, -60.0
    %v2848 = vmax.f32 %v2632, -60.0
    %v2849 = vmax.f32 %v2637, -60.0
    %v2850 = vmax.f32 %v2640, -60.0
    %v2851 = vmax.f32 %v2645, -60.0
    %v2852 = vmax.f32 %v2648, -60.0
    %v2853 = vmax.f32 %v2653, -60.0
    %v2854 = vmax.f32 %v2656, -60.0
    %v2855 = vmax.f32 %v2661, -60.0
    %v2856 = vmax.f32 %v2664, -60.0
    %v2857 = vmax.f32 %v2669, -60.0
    %v2858 = vmax.f32 %v2672, -60.0
    %v2859 = vmax.f32 %v2677, -60.0
    %v2860 = vmax.f32 %v2680, -60.0
    %v2861 = vmax.f32 %v2685, -60.0
    %v2862 = vmax.f32 %v2688, -60.0
    %v2863 = vmax.f32 %v2693, -60.0
    %v2864 = vmax.f32 %v2696, -60.0
    %v2865 = vmax.f32 %v2701, -60.0
    %v2866 = vmax.f32 %v2704, -60.0
    %v2867 = vmax.f32 %v2709, -60.0
    %v2868 = vmax.f32 %v2712, -60.0
    %v2869 = vmax.f32 %v2717, -60.0
    %v2870 = vmax.f32 %v2720, -60.0
    %v2871 = vmax.f32 %v2725, -60.0
    %v2872 = vmax.f32 %v2728, -60.0
    %v2873 = vmax.f32 %v2733, -60.0
    %v2874 = vmax.f32 %v2736, -60.0
    %v2875 = vmax.f32 %v2741, -60.0
    %v2876 = vmax.f32 %v2744, -60.0
    %v2877 = vmax.f32 %v2749, -60.0
    %v2878 = vmax.f32 %v2752, -60.0
    %v2879 = vmax.f32 %v2757, -60.0
    %v2880 = vmax.f32 %v2760, -60.0
    %v2881 = vmax.f32 %v2765, -60.0
    %v2882 = vmax.f32 %v2768, -60.0
    %v2883 = vmax.f32 %v2773, -60.0
    %v2884 = vmax.f32 %v2776, -60.0
    %v2885 = vmax.f32 %v2781, -60.0
    %v2886 = vmax.f32 %v2784, -60.0
    %v2887 = vmax.f32 %v2789, -60.0
    %v2888 = vmax.f32 %v2792, -60.0
    %v2889 = vmax.f32 %v2797, -60.0
    %v2890 = vmax.f32 %v2800, -60.0
    %v2891 = vmax.f32 %v2805, -60.0
    %v2892 = vmax.f32 %v2808, -60.0
    %v2893 = vmax.f32 %v2813, -60.0
    %v2894 = vmax.f32 %v2816, -60.0
    %v2895 = vmax.f32 %v2821, -60.0
    %v2896 = vmax.f32 %v2824, -60.0
    %v2897 = vmax.f32 %v2829, -60.0
    %v2898 = vmax.f32 %v2832, -60.0
    %v2899 = vmin.f32 %v2835, 60.0
    %v2900 = vmin.f32 %v2836, 60.0
    %v2901 = vmin.f32 %v2837, 60.0
    %v2902 = vmin.f32 %v2838, 60.0
    %v2903 = vmin.f32 %v2839, 60.0
    %v2904 = vmin.f32 %v2840, 60.0
    %v2905 = vmin.f32 %v2841, 60.0
    %v2906 = vmin.f32 %v2842, 60.0
    %v2907 = vmin.f32 %v2843, 60.0
    %v2908 = vmin.f32 %v2844, 60.0
    %v2909 = vmin.f32 %v2845, 60.0
    %v2910 = vmin.f32 %v2846, 60.0
    %v2911 = vmin.f32 %v2847, 60.0
    %v2912 = vmin.f32 %v2848, 60.0
    %v2913 = vmin.f32 %v2849, 60.0
    %v2914 = vmin.f32 %v2850, 60.0
    %v2915 = vmin.f32 %v2851, 60.0
    %v2916 = vmin.f32 %v2852, 60.0
    %v2917 = vmin.f32 %v2853, 60.0
    %v2918 = vmin.f32 %v2854, 60.0
    %v2919 = vmin.f32 %v2855, 60.0
    %v2920 = vmin.f32 %v2856, 60.0
    %v2921 = vmin.f32 %v2857, 60.0
    %v2922 = vmin.f32 %v2858, 60.0
    %v2923 = vmin.f32 %v2859, 60.0
    %v2924 = vmin.f32 %v2860, 60.0
    %v2925 = vmin.f32 %v2861, 60.0
    %v2926 = vmin.f32 %v2862, 60.0
    %v2927 = vmin.f32 %v2863, 60.0
    %v2928 = vmin.f32 %v2864, 60.0
    %v2929 = vmin.f32 %v2865, 60.0
    %v2930 = vmin.f32 %v2866, 60.0
    %v2931 = vmin.f32 %v2867, 60.0
    %v2932 = vmin.f32 %v2868, 60.0
    %v2933 = vmin.f32 %v2869, 60.0
    %v2934 = vmin.f32 %v2870, 60.0
    %v2935 = vmin.f32 %v2871, 60.0
    %v2936 = vmin.f32 %v2872, 60.0
    %v2937 = vmin.f32 %v2873, 60.0
    %v2938 = vmin.f32 %v2874, 60.0
    %v2939 = vmin.f32 %v2875, 60.0
    %v2940 = vmin.f32 %v2876, 60.0
    %v2941 = vmin.f32 %v2877, 60.0
    %v2942 = vmin.f32 %v2878, 60.0
    %v2943 = vmin.f32 %v2879, 60.0
    %v2944 = vmin.f32 %v2880, 60.0
    %v2945 = vmin.f32 %v2881, 60.0
    %v2946 = vmin.f32 %v2882, 60.0
    %v2947 = vmin.f32 %v2883, 60.0
    %v2948 = vmin.f32 %v2884, 60.0
    %v2949 = vmin.f32 %v2885, 60.0
    %v2950 = vmin.f32 %v2886, 60.0
    %v2951 = vmin.f32 %v2887, 60.0
    %v2952 = vmin.f32 %v2888, 60.0
    %v2953 = vmin.f32 %v2889, 60.0
    %v2954 = vmin.f32 %v2890, 60.0
    %v2955 = vmin.f32 %v2891, 60.0
    %v2956 = vmin.f32 %v2892, 60.0
    %v2957 = vmin.f32 %v2893, 60.0
    %v2958 = vmin.f32 %v2894, 60.0
    %v2959 = vmin.f32 %v2895, 60.0
    %v2960 = vmin.f32 %v2896, 60.0
    %v2961 = vmin.f32 %v2897, 60.0
    %v2962 = vmin.f32 %v2898, 60.0
    %v2963 = vsub.f32 0.0, %v2899
    %v2964 = vsub.f32 0.0, %v2900
    %v2965 = vsub.f32 0.0, %v2901
    %v2966 = vsub.f32 0.0, %v2902
    %v2967 = vsub.f32 0.0, %v2903
    %v2968 = vsub.f32 0.0, %v2904
    %v2969 = vsub.f32 0.0, %v2905
    %v2970 = vsub.f32 0.0, %v2906
    %v2971 = vsub.f32 0.0, %v2907
    %v2972 = vsub.f32 0.0, %v2908
    %v2973 = vsub.f32 0.0, %v2909
    %v2974 = vsub.f32 0.0, %v2910
    %v2975 = vsub.f32 0.0, %v2911
    %v2976 = vsub.f32 0.0, %v2912
    %v2977 = vsub.f32 0.0, %v2913
    %v2978 = vsub.f32 0.0, %v2914
    %v2979 = vsub.f32 0.0, %v2915
    %v2980 = vsub.f32 0.0, %v2916
    %v2981 = vsub.f32 0.0, %v2917
    %v2982 = vsub.f32 0.0, %v2918
    %v2983 = vsub.f32 0.0, %v2919
    %v2984 = vsub.f32 0.0, %v2920
    %v2985 = vsub.f32 0.0, %v2921
    %v2986 = vsub.f32 0.0, %v2922
    %v2987 = vsub.f32 0.0, %v2923
    %v2988 = vsub.f32 0.0, %v2924
    %v2989 = vsub.f32 0.0, %v2925
    %v2990 = vsub.f32 0.0, %v2926
    %v2991 = vsub.f32 0.0, %v2927
    %v2992 = vsub.f32 0.0, %v2928
    %v2993 = vsub.f32 0.0, %v2929
    %v2994 = vsub.f32 0.0, %v2930
    %v2995 = vsub.f32 0.0, %v2931
    %v2996 = vsub.f32 0.0, %v2932
    %v2997 = vsub.f32 0.0, %v2933
    %v2998 = vsub.f32 0.0, %v2934
    %v2999 = vsub.f32 0.0, %v2935
    %v3000 = vsub.f32 0.0, %v2936
    %v3001 = vsub.f32 0.0, %v2937
    %v3002 = vsub.f32 0.0, %v2938
    %v3003 = vsub.f32 0.0, %v2939
    %v3004 = vsub.f32 0.0, %v2940
    %v3005 = vsub.f32 0.0, %v2941
    %v3006 = vsub.f32 0.0, %v2942
    %v3007 = vsub.f32 0.0, %v2943
    %v3008 = vsub.f32 0.0, %v2944
    %v3009 = vsub.f32 0.0, %v2945
    %v3010 = vsub.f32 0.0, %v2946
    %v3011 = vsub.f32 0.0, %v2947
    %v3012 = vsub.f32 0.0, %v2948
    %v3013 = vsub.f32 0.0, %v2949
    %v3014 = vsub.f32 0.0, %v2950
    %v3015 = vsub.f32 0.0, %v2951
    %v3016 = vsub.f32 0.0, %v2952
    %v3017 = vsub.f32 0.0, %v2953
    %v3018 = vsub.f32 0.0, %v2954
    %v3019 = vsub.f32 0.0, %v2955
    %v3020 = vsub.f32 0.0, %v2956
    %v3021 = vsub.f32 0.0, %v2957
    %v3022 = vsub.f32 0.0, %v2958
    %v3023 = vsub.f32 0.0, %v2959
    %v3024 = vsub.f32 0.0, %v2960
    %v3025 = vsub.f32 0.0, %v2961
    %v3026 = vsub.f32 0.0, %v2962
    %v3027 = vmul.f32 %v2963, 1.442695
    %v3028 = vpow.pop %v3027
    %v3029 = vmul.f32 %v2964, 1.442695
    %v3030 = vpow.pop %v3029
    %v3031 = vmul.f32 %v2965, 1.442695
    %v3032 = vpow.pop %v3031
    %v3033 = vmul.f32 %v2966, 1.442695
    %v3034 = vpow.pop %v3033
    %v3035 = vmul.f32 %v2967, 1.442695
    %v3036 = vpow.pop %v3035
    %v3037 = vmul.f32 %v2968, 1.442695
    %v3038 = vpow.pop %v3037
    %v3039 = vmul.f32 %v2969, 1.442695
    %v3040 = vpow.pop %v3039
    %v3041 = vmul.f32 %v2970, 1.442695
    %v3042 = vpow.pop %v3041
    %v3043 = vmul.f32 %v2971, 1.442695
    %v3044 = vpow.pop %v3043
    %v3045 = vmul.f32 %v2972, 1.442695
    %v3046 = vpow.pop %v3045
    %v3047 = vmul.f32 %v2973, 1.442695
    %v3048 = vpow.pop %v3047
    %v3049 = vmul.f32 %v2974, 1.442695
    %v3050 = vpow.pop %v3049
    %v3051 = vmul.f32 %v2975, 1.442695
    %v3052 = vpow.pop %v3051
    %v3053 = vmul.f32 %v2976, 1.442695
    %v3054 = vpow.pop %v3053
    %v3055 = vmul.f32 %v2977, 1.442695
    %v3056 = vpow.pop %v3055
    %v3057 = vmul.f32 %v2978, 1.442695
    %v3058 = vpow.pop %v3057
    %v3059 = vmul.f32 %v2979, 1.442695
    %v3060 = vpow.pop %v3059
    %v3061 = vmul.f32 %v2980, 1.442695
    %v3062 = vpow.pop %v3061
    %v3063 = vmul.f32 %v2981, 1.442695
    %v3064 = vpow.pop %v3063
    %v3065 = vmul.f32 %v2982, 1.442695
    %v3066 = vpow.pop %v3065
    %v3067 = vmul.f32 %v2983, 1.442695
    %v3068 = vpow.pop %v3067
    %v3069 = vmul.f32 %v2984, 1.442695
    %v3070 = vpow.pop %v3069
    %v3071 = vmul.f32 %v2985, 1.442695
    %v3072 = vpow.pop %v3071
    %v3073 = vmul.f32 %v2986, 1.442695
    %v3074 = vpow.pop %v3073
    %v3075 = vmul.f32 %v2987, 1.442695
    %v3076 = vpow.pop %v3075
    %v3077 = vmul.f32 %v2988, 1.442695
    %v3078 = vpow.pop %v3077
    %v3079 = vmul.f32 %v2989, 1.442695
    %v3080 = vpow.pop %v3079
    %v3081 = vmul.f32 %v2990, 1.442695
    %v3082 = vpow.pop %v3081
    %v3083 = vmul.f32 %v2991, 1.442695
    %v3084 = vpow.pop %v3083
    %v3085 = vmul.f32 %v2992, 1.442695
    %v3086 = vpow.pop %v3085
    %v3087 = vmul.f32 %v2993, 1.442695
    %v3088 = vpow.pop %v3087
    %v3089 = vmul.f32 %v2994, 1.442695
    %v3090 = vpow.pop %v3089
    %v3091 = vmul.f32 %v2995, 1.442695
    %v3092 = vpow.pop %v3091
    %v3093 = vmul.f32 %v2996, 1.442695
    %v3094 = vpow.pop %v3093
    %v3095 = vmul.f32 %v2997, 1.442695
    %v3096 = vpow.pop %v3095
    %v3097 = vmul.f32 %v2998, 1.442695
    %v3098 = vpow.pop %v3097
    %v3099 = vmul.f32 %v2999, 1.442695
    %v3100 = vpow.pop %v3099
    %v3101 = vmul.f32 %v3000, 1.442695
    %v3102 = vpow.pop %v3101
    %v3103 = vmul.f32 %v3001, 1.442695
    %v3104 = vpow.pop %v3103
    %v3105 = vmul.f32 %v3002, 1.442695
    %v3106 = vpow.pop %v3105
    %v3107 = vmul.f32 %v3003, 1.442695
    %v3108 = vpow.pop %v3107
    %v3109 = vmul.f32 %v3004, 1.442695
    %v3110 = vpow.pop %v3109
    %v3111 = vmul.f32 %v3005, 1.442695
    %v3112 = vpow.pop %v3111
    %v3113 = vmul.f32 %v3006, 1.442695
    %v3114 = vpow.pop %v3113
    %v3115 = vmul.f32 %v3007, 1.442695
    %v3116 = vpow.pop %v3115
    %v3117 = vmul.f32 %v3008, 1.442695
    %v3118 = vpow.pop %v3117
    %v3119 = vmul.f32 %v3009, 1.442695
    %v3120 = vpow.pop %v3119
    %v3121 = vmul.f32 %v3010, 1.442695
    %v3122 = vpow.pop %v3121
    %v3123 = vmul.f32 %v3011, 1.442695
    %v3124 = vpow.pop %v3123
    %v3125 = vmul.f32 %v3012, 1.442695
    %v3126 = vpow.pop %v3125
    %v3127 = vmul.f32 %v3013, 1.442695
    %v3128 = vpow.pop %v3127
    %v3129 = vmul.f32 %v3014, 1.442695
    %v3130 = vpow.pop %v3129
    %v3131 = vmul.f32 %v3015, 1.442695
    %v3132 = vpow.pop %v3131
    %v3133 = vmul.f32 %v3016, 1.442695
    %v3134 = vpow.pop %v3133
    %v3135 = vmul.f32 %v3017, 1.442695
    %v3136 = vpow.pop %v3135
    %v3137 = vmul.f32 %v3018, 1.442695
    %v3138 = vpow.pop %v3137
    %v3139 = vmul.f32 %v3019, 1.442695
    %v3140 = vpow.pop %v3139
    %v3141 = vmul.f32 %v3020, 1.442695
    %v3142 = vpow.pop %v3141
    %v3143 = vmul.f32 %v3021, 1.442695
    %v3144 = vpow.pop %v3143
    %v3145 = vmul.f32 %v3022, 1.442695
    %v3146 = vpow.pop %v3145
    %v3147 = vmul.f32 %v3023, 1.442695
    %v3148 = vpow.pop %v3147
    %v3149 = vmul.f32 %v3024, 1.442695
    %v3150 = vpow.pop %v3149
    %v3151 = vmul.f32 %v3025, 1.442695
    %v3152 = vpow.pop %v3151
    %v3153 = vmul.f32 %v3026, 1.442695
    %v3154 = vpow.pop %v3153
    %v3155 = vadd.f32 %v3028, 1.0
    %v3156 = vadd.f32 %v3030, 1.0
    %v3157 = vadd.f32 %v3032, 1.0
    %v3158 = vadd.f32 %v3034, 1.0
    %v3159 = vadd.f32 %v3036, 1.0
    %v3160 = vadd.f32 %v3038, 1.0
    %v3161 = vadd.f32 %v3040, 1.0
    %v3162 = vadd.f32 %v3042, 1.0
    %v3163 = vadd.f32 %v3044, 1.0
    %v3164 = vadd.f32 %v3046, 1.0
    %v3165 = vadd.f32 %v3048, 1.0
    %v3166 = vadd.f32 %v3050, 1.0
    %v3167 = vadd.f32 %v3052, 1.0
    %v3168 = vadd.f32 %v3054, 1.0
    %v3169 = vadd.f32 %v3056, 1.0
    %v3170 = vadd.f32 %v3058, 1.0
    %v3171 = vadd.f32 %v3060, 1.0
    %v3172 = vadd.f32 %v3062, 1.0
    %v3173 = vadd.f32 %v3064, 1.0
    %v3174 = vadd.f32 %v3066, 1.0
    %v3175 = vadd.f32 %v3068, 1.0
    %v3176 = vadd.f32 %v3070, 1.0
    %v3177 = vadd.f32 %v3072, 1.0
    %v3178 = vadd.f32 %v3074, 1.0
    %v3179 = vadd.f32 %v3076, 1.0
    %v3180 = vadd.f32 %v3078, 1.0
    %v3181 = vadd.f32 %v3080, 1.0
    %v3182 = vadd.f32 %v3082, 1.0
    %v3183 = vadd.f32 %v3084, 1.0
    %v3184 = vadd.f32 %v3086, 1.0
    %v3185 = vadd.f32 %v3088, 1.0
    %v3186 = vadd.f32 %v3090, 1.0
    %v3187 = vadd.f32 %v3092, 1.0
    %v3188 = vadd.f32 %v3094, 1.0
    %v3189 = vadd.f32 %v3096, 1.0
    %v3190 = vadd.f32 %v3098, 1.0
    %v3191 = vadd.f32 %v3100, 1.0
    %v3192 = vadd.f32 %v3102, 1.0
    %v3193 = vadd.f32 %v3104, 1.0
    %v3194 = vadd.f32 %v3106, 1.0
    %v3195 = vadd.f32 %v3108, 1.0
    %v3196 = vadd.f32 %v3110, 1.0
    %v3197 = vadd.f32 %v3112, 1.0
    %v3198 = vadd.f32 %v3114, 1.0
    %v3199 = vadd.f32 %v3116, 1.0
    %v3200 = vadd.f32 %v3118, 1.0
    %v3201 = vadd.f32 %v3120, 1.0
    %v3202 = vadd.f32 %v3122, 1.0
    %v3203 = vadd.f32 %v3124, 1.0
    %v3204 = vadd.f32 %v3126, 1.0
    %v3205 = vadd.f32 %v3128, 1.0
    %v3206 = vadd.f32 %v3130, 1.0
    %v3207 = vadd.f32 %v3132, 1.0
    %v3208 = vadd.f32 %v3134, 1.0
    %v3209 = vadd.f32 %v3136, 1.0
    %v3210 = vadd.f32 %v3138, 1.0
    %v3211 = vadd.f32 %v3140, 1.0
    %v3212 = vadd.f32 %v3142, 1.0
    %v3213 = vadd.f32 %v3144, 1.0
    %v3214 = vadd.f32 %v3146, 1.0
    %v3215 = vadd.f32 %v3148, 1.0
    %v3216 = vadd.f32 %v3150, 1.0
    %v3217 = vadd.f32 %v3152, 1.0
    %v3218 = vadd.f32 %v3154, 1.0
    %v3219 = vrcp.pop %v3155
    %v3220 = vrcp.pop %v3156
    %v3221 = vrcp.pop %v3157
    %v3222 = vrcp.pop %v3158
    %v3223 = vrcp.pop %v3159
    %v3224 = vrcp.pop %v3160
    %v3225 = vrcp.pop %v3161
    %v3226 = vrcp.pop %v3162
    %v3227 = vrcp.pop %v3163
    %v3228 = vrcp.pop %v3164
    %v3229 = vrcp.pop %v3165
    %v3230 = vrcp.pop %v3166
    %v3231 = vrcp.pop %v3167
    %v3232 = vrcp.pop %v3168
    %v3233 = vrcp.pop %v3169
    %v3234 = vrcp.pop %v3170
    %v3235 = vrcp.pop %v3171
    %v3236 = vrcp.pop %v3172
    %v3237 = vrcp.pop %v3173
    %v3238 = vrcp.pop %v3174
    %v3239 = vrcp.pop %v3175
    %v3240 = vrcp.pop %v3176
    %v3241 = vrcp.pop %v3177
    %v3242 = vrcp.pop %v3178
    %v3243 = vrcp.pop %v3179
    %v3244 = vrcp.pop %v3180
    %v3245 = vrcp.pop %v3181
    %v3246 = vrcp.pop %v3182
    %v3247 = vrcp.pop %v3183
    %v3248 = vrcp.pop %v3184
    %v3249 = vrcp.pop %v3185
    %v3250 = vrcp.pop %v3186
    %v3251 = vrcp.pop %v3187
    %v3252 = vrcp.pop %v3188
    %v3253 = vrcp.pop %v3189
    %v3254 = vrcp.pop %v3190
    %v3255 = vrcp.pop %v3191
    %v3256 = vrcp.pop %v3192
    %v3257 = vrcp.pop %v3193
    %v3258 = vrcp.pop %v3194
    %v3259 = vrcp.pop %v3195
    %v3260 = vrcp.pop %v3196
    %v3261 = vrcp.pop %v3197
    %v3262 = vrcp.pop %v3198
    %v3263 = vrcp.pop %v3199
    %v3264 = vrcp.pop %v3200
    %v3265 = vrcp.pop %v3201
    %v3266 = vrcp.pop %v3202
    %v3267 = vrcp.pop %v3203
    %v3268 = vrcp.pop %v3204
    %v3269 = vrcp.pop %v3205
    %v3270 = vrcp.pop %v3206
    %v3271 = vrcp.pop %v3207
    %v3272 = vrcp.pop %v3208
    %v3273 = vrcp.pop %v3209
    %v3274 = vrcp.pop %v3210
    %v3275 = vrcp.pop %v3211
    %v3276 = vrcp.pop %v3212
    %v3277 = vrcp.pop %v3213
    %v3278 = vrcp.pop %v3214
    %v3279 = vrcp.pop %v3215
    %v3280 = vrcp.pop %v3216
    %v3281 = vrcp.pop %v3217
    %v3282 = vrcp.pop %v3218
    %v3283 = vpack.c.bf16 %v3220, %v3219
    %v3284 = vpack.c.bf16 %v3222, %v3221
    %v3285 = vpack.c.bf16 %v3224, %v3223
    %v3286 = vpack.c.bf16 %v3226, %v3225
    %v3287 = vpack.c.bf16 %v3228, %v3227
    %v3288 = vpack.c.bf16 %v3230, %v3229
    %v3289 = vpack.c.bf16 %v3232, %v3231
    %v3290 = vpack.c.bf16 %v3234, %v3233
    %v3291 = vpack.c.bf16 %v3236, %v3235
    %v3292 = vpack.c.bf16 %v3238, %v3237
    %v3293 = vpack.c.bf16 %v3240, %v3239
    %v3294 = vpack.c.bf16 %v3242, %v3241
    %v3295 = vpack.c.bf16 %v3244, %v3243
    %v3296 = vpack.c.bf16 %v3246, %v3245
    %v3297 = vpack.c.bf16 %v3248, %v3247
    %v3298 = vpack.c.bf16 %v3250, %v3249
    %v3299 = vpack.c.bf16 %v3252, %v3251
    %v3300 = vpack.c.bf16 %v3254, %v3253
    %v3301 = vpack.c.bf16 %v3256, %v3255
    %v3302 = vpack.c.bf16 %v3258, %v3257
    %v3303 = vpack.c.bf16 %v3260, %v3259
    %v3304 = vpack.c.bf16 %v3262, %v3261
    %v3305 = vpack.c.bf16 %v3264, %v3263
    %v3306 = vpack.c.bf16 %v3266, %v3265
    %v3307 = vpack.c.bf16 %v3268, %v3267
    %v3308 = vpack.c.bf16 %v3270, %v3269
    %v3309 = vpack.c.bf16 %v3272, %v3271
    %v3310 = vpack.c.bf16 %v3274, %v3273
    %v3311 = vpack.c.bf16 %v3276, %v3275
    %v3312 = vpack.c.bf16 %v3278, %v3277
    %v3313 = vpack.c.bf16 %v3280, %v3279
    %v3314 = vpack.c.bf16 %v3282, %v3281
    %v3315 = vld [vmem:[%s9] sm:$0xf]
    %v3316 = vld [vmem:[%s9 + $0x4] sm:$0xf]
    %v3317 = vld [vmem:[%s9 + $0x8] sm:$0xf]
    %v3318 = vld [vmem:[%s9 + $0xc] sm:$0xf]
    %v3319 = vld [vmem:[%s10] sm:$0x1]
    %v3321 = vlaneseq
    %v3322 = vshrl.u32 %v3321, 7
    %v3323 = vsub.s32 0, %v3322
    %v3324 = vrot.slane %v3319, %v3323
    %v3330 = vunpack.c.l.b16 %v3315
    %v3331 = vunpack.c.l.b16 %v3316
    %v3332 = vunpack.c.l.b16 %v3317
    %v3333 = vunpack.c.l.b16 %v3318
    %v3334 = vpack.c.b16 %v3331, %v3330
    %v3335 = vpack.c.b16 %v3333, %v3332
    %v3339 = vsel %vm2072, %v3283, 0
    %v3342 = vsel %vm2072, %v3284, 0
    %v3345 = vsel %vm2072, %v3285, 0
    %v3348 = vsel %vm2072, %v3286, 0
    %v3351 = vsel %vm2072, %v3287, 0
    %v3354 = vsel %vm2072, %v3288, 0
    %v3357 = vsel %vm2072, %v3289, 0
    %v3360 = vsel %vm2072, %v3290, 0
    %v3363 = vsel %vm2072, %v3291, 0
    %v3366 = vsel %vm2072, %v3292, 0
    %v3369 = vsel %vm2072, %v3293, 0
    %v3372 = vsel %vm2072, %v3294, 0
    %v3375 = vsel %vm2072, %v3295, 0
    %v3378 = vsel %vm2072, %v3296, 0
    %v3381 = vsel %vm2072, %v3297, 0
    %v3384 = vsel %vm2072, %v3298, 0
    %v3387 = vsel %vm2072, %v3299, 0
    %v3390 = vsel %vm2072, %v3300, 0
    %v3393 = vsel %vm2072, %v3301, 0
    %v3396 = vsel %vm2072, %v3302, 0
    %v3399 = vsel %vm2072, %v3303, 0
    %v3402 = vsel %vm2072, %v3304, 0
    %v3405 = vsel %vm2072, %v3305, 0
    %v3408 = vsel %vm2072, %v3306, 0
    %v3411 = vsel %vm2072, %v3307, 0
    %v3414 = vsel %vm2072, %v3308, 0
    %v3417 = vsel %vm2072, %v3309, 0
    %v3420 = vsel %vm2072, %v3310, 0
    %v3423 = vsel %vm2072, %v3311, 0
    %v3426 = vsel %vm2072, %v3312, 0
    %v3429 = vsel %vm2072, %v3313, 0
    %v3432 = vsel %vm2072, %v3314, 0
    %3434 = vmatprep.subr.bf16.mxu0 0
    %3435 = vmatpush1.bf16.msra.mxu0 %v3334
    %3436 = vmatprep.subr.bf16.mxu0 0
    %3437 = vmatpush1.bf16.msra.mxu0 %v3335
    %3438 = vmatprep.subr.bf16.mxu0 0
    %3439 = vmatpush1.bf16.msra.mxu0 0
    %3440 = vmatprep.subr.bf16.mxu0 0
    %3441 = vmatpush1.bf16.msra.mxu0 0
    %3442 = vmatprep.subr.bf16.mxu0 0
    %3443 = vmatpush1.bf16.msra.mxu0 0
    %3444 = vmatprep.subr.bf16.mxu0 0
    %3445 = vmatpush1.bf16.msra.mxu0 0
    %3446 = vmatprep.subr.bf16.mxu0 0
    %3447 = vmatpush1.bf16.msra.mxu0 0
    %3448 = vmatprep.subr.bf16.mxu0 0
    %3449 = vmatpush1.bf16.msra.mxu0 0
    %3450 = vmatprep.subr.bf16.mxu0 0
    %3451 = vmatpush1.bf16.msra.mxu0 0
    %3452 = vmatprep.subr.bf16.mxu0 0
    %3453 = vmatpush1.bf16.msra.mxu0 0
    %3454 = vmatprep.subr.bf16.mxu0 0
    %3455 = vmatpush1.bf16.msra.mxu0 0
    %3456 = vmatprep.subr.bf16.mxu0 0
    %3457 = vmatpush1.bf16.msra.mxu0 0
    %3458 = vmatprep.subr.bf16.mxu0 0
    %3459 = vmatpush1.bf16.msra.mxu0 0
    %3460 = vmatprep.subr.bf16.mxu0 0
    %3461 = vmatpush1.bf16.msra.mxu0 0
    %3462 = vmatprep.subr.bf16.mxu0 0
    %3463 = vmatpush1.bf16.msra.mxu0 0
    %3464 = vmatprep.subr.bf16.mxu0 0
    %3465 = vmatpush1.bf16.msra.mxu0 0
    %3466 = vmatprep.mubr.bf16.mxu0 0
    %3467 = vmatmul.mubr.bf16.gmra.mrb[0].mxu0 %v3339
    %v3468 = vpop.f32.mrb[0].mxu0
    %v3469 = vadd.f32 %v3324, %v3468
    %v3470 = vpop.f32.mrb[0].mxu0
    %v3471 = vpop.f32.mrb[0].mxu0
    %v3472 = vadd.f32 %v3324, %v3471
    %v3473 = vpop.f32.mrb[0].mxu0
    %3474 = vmatprep.mubr.bf16.mxu0 0
    %3475 = vmatmul.mubr.bf16.gmra.mrb[0].mxu0 %v3342
    %v3476 = vpop.f32.mrb[0].mxu0
    %v3477 = vadd.f32 %v3324, %v3476
    %v3478 = vpop.f32.mrb[0].mxu0
    %v3479 = vpop.f32.mrb[0].mxu0
    %v3480 = vadd.f32 %v3324, %v3479
    %v3481 = vpop.f32.mrb[0].mxu0
    %3482 = vmatprep.mubr.bf16.mxu0 0
    %3483 = vmatmul.mubr.bf16.gmra.mrb[0].mxu0 %v3345
    %v3484 = vpop.f32.mrb[0].mxu0
    %v3485 = vadd.f32 %v3324, %v3484
    %v3486 = vpop.f32.mrb[0].mxu0
    %v3487 = vpop.f32.mrb[0].mxu0
    %v3488 = vadd.f32 %v3324, %v3487
    %v3489 = vpop.f32.mrb[0].mxu0
    %3490 = vmatprep.mubr.bf16.mxu0 0
    %3491 = vmatmul.mubr.bf16.gmra.mrb[0].mxu0 %v3348
    %v3492 = vpop.f32.mrb[0].mxu0
    %v3493 = vadd.f32 %v3324, %v3492
    %v3494 = vpop.f32.mrb[0].mxu0
    %v3495 = vpop.f32.mrb[0].mxu0
    %v3496 = vadd.f32 %v3324, %v3495
    %v3497 = vpop.f32.mrb[0].mxu0
    %3498 = vmatprep.mubr.bf16.mxu0 0
    %3499 = vmatmul.mubr.bf16.gmra.mrb[0].mxu0 %v3351
    %v3500 = vpop.f32.mrb[0].mxu0
    %v3501 = vadd.f32 %v3324, %v3500
    %v3502 = vpop.f32.mrb[0].mxu0
    %v3503 = vpop.f32.mrb[0].mxu0
    %v3504 = vadd.f32 %v3324, %v3503
    %v3505 = vpop.f32.mrb[0].mxu0
    %3506 = vmatprep.mubr.bf16.mxu0 0
    %3507 = vmatmul.mubr.bf16.gmra.mrb[0].mxu0 %v3354
    %v3508 = vpop.f32.mrb[0].mxu0
    %v3509 = vadd.f32 %v3324, %v3508
    %v3510 = vpop.f32.mrb[0].mxu0
    %v3511 = vpop.f32.mrb[0].mxu0
    %v3512 = vadd.f32 %v3324, %v3511
    %v3513 = vpop.f32.mrb[0].mxu0
    %3514 = vmatprep.mubr.bf16.mxu0 0
    %3515 = vmatmul.mubr.bf16.gmra.mrb[0].mxu0 %v3357
    %v3516 = vpop.f32.mrb[0].mxu0
    %v3517 = vadd.f32 %v3324, %v3516
    %v3518 = vpop.f32.mrb[0].mxu0
    %v3519 = vpop.f32.mrb[0].mxu0
    %v3520 = vadd.f32 %v3324, %v3519
    %v3521 = vpop.f32.mrb[0].mxu0
    %3522 = vmatprep.mubr.bf16.mxu0 0
    %3523 = vmatmul.mubr.bf16.gmra.mrb[0].mxu0 %v3360
    %v3524 = vpop.f32.mrb[0].mxu0
    %v3525 = vadd.f32 %v3324, %v3524
    %v3526 = vpop.f32.mrb[0].mxu0
    %v3527 = vpop.f32.mrb[0].mxu0
    %v3528 = vadd.f32 %v3324, %v3527
    %v3529 = vpop.f32.mrb[0].mxu0
    %3530 = vmatprep.mubr.bf16.mxu0 0
    %3531 = vmatmul.mubr.bf16.gmra.mrb[0].mxu0 %v3363
    %v3532 = vpop.f32.mrb[0].mxu0
    %v3533 = vadd.f32 %v3324, %v3532
    %v3534 = vpop.f32.mrb[0].mxu0
    %v3535 = vpop.f32.mrb[0].mxu0
    %v3536 = vadd.f32 %v3324, %v3535
    %v3537 = vpop.f32.mrb[0].mxu0
    %3538 = vmatprep.mubr.bf16.mxu0 0
    %3539 = vmatmul.mubr.bf16.gmra.mrb[0].mxu0 %v3366
    %v3540 = vpop.f32.mrb[0].mxu0
    %v3541 = vadd.f32 %v3324, %v3540
    %v3542 = vpop.f32.mrb[0].mxu0
    %v3543 = vpop.f32.mrb[0].mxu0
    %v3544 = vadd.f32 %v3324, %v3543
    %v3545 = vpop.f32.mrb[0].mxu0
    %3546 = vmatprep.mubr.bf16.mxu0 0
    %3547 = vmatmul.mubr.bf16.gmra.mrb[0].mxu0 %v3369
    %v3548 = vpop.f32.mrb[0].mxu0
    %v3549 = vadd.f32 %v3324, %v3548
    %v3550 = vpop.f32.mrb[0].mxu0
    %v3551 = vpop.f32.mrb[0].mxu0
    %v3552 = vadd.f32 %v3324, %v3551
    %v3553 = vpop.f32.mrb[0].mxu0
    %3554 = vmatprep.mubr.bf16.mxu0 0
    %3555 = vmatmul.mubr.bf16.gmra.mrb[0].mxu0 %v3372
    %v3556 = vpop.f32.mrb[0].mxu0
    %v3557 = vadd.f32 %v3324, %v3556
    %v3558 = vpop.f32.mrb[0].mxu0
    %v3559 = vpop.f32.mrb[0].mxu0
    %v3560 = vadd.f32 %v3324, %v3559
    %v3561 = vpop.f32.mrb[0].mxu0
    %3562 = vmatprep.mubr.bf16.mxu0 0
    %3563 = vmatmul.mubr.bf16.gmra.mrb[0].mxu0 %v3375
    %v3564 = vpop.f32.mrb[0].mxu0
    %v3565 = vadd.f32 %v3324, %v3564
    %v3566 = vpop.f32.mrb[0].mxu0
    %v3567 = vpop.f32.mrb[0].mxu0
    %v3568 = vadd.f32 %v3324, %v3567
    %v3569 = vpop.f32.mrb[0].mxu0
    %3570 = vmatprep.mubr.bf16.mxu0 0
    %3571 = vmatmul.mubr.bf16.gmra.mrb[0].mxu0 %v3378
    %v3572 = vpop.f32.mrb[0].mxu0
    %v3573 = vadd.f32 %v3324, %v3572
    %v3574 = vpop.f32.mrb[0].mxu0
    %v3575 = vpop.f32.mrb[0].mxu0
    %v3576 = vadd.f32 %v3324, %v3575
    %v3577 = vpop.f32.mrb[0].mxu0
    %3578 = vmatprep.mubr.bf16.mxu0 0
    %3579 = vmatmul.mubr.bf16.gmra.mrb[0].mxu0 %v3381
    %v3580 = vpop.f32.mrb[0].mxu0
    %v3581 = vadd.f32 %v3324, %v3580
    %v3582 = vpop.f32.mrb[0].mxu0
    %v3583 = vpop.f32.mrb[0].mxu0
    %v3584 = vadd.f32 %v3324, %v3583
    %v3585 = vpop.f32.mrb[0].mxu0
    %3586 = vmatprep.mubr.bf16.mxu0 0
    %3587 = vmatmul.mubr.bf16.gmra.mrb[0].mxu0 %v3384
    %v3588 = vpop.f32.mrb[0].mxu0
    %v3589 = vadd.f32 %v3324, %v3588
    %v3590 = vpop.f32.mrb[0].mxu0
    %v3591 = vpop.f32.mrb[0].mxu0
    %v3592 = vadd.f32 %v3324, %v3591
    %v3593 = vpop.f32.mrb[0].mxu0
    %3594 = vmatprep.mubr.bf16.mxu0 0
    %3595 = vmatmul.mubr.bf16.gmra.mrb[0].mxu0 %v3387
    %v3596 = vpop.f32.mrb[0].mxu0
    %v3597 = vadd.f32 %v3324, %v3596
    %v3598 = vpop.f32.mrb[0].mxu0
    %v3599 = vpop.f32.mrb[0].mxu0
    %v3600 = vadd.f32 %v3324, %v3599
    %v3601 = vpop.f32.mrb[0].mxu0
    %3602 = vmatprep.mubr.bf16.mxu0 0
    %3603 = vmatmul.mubr.bf16.gmra.mrb[0].mxu0 %v3390
    %v3604 = vpop.f32.mrb[0].mxu0
    %v3605 = vadd.f32 %v3324, %v3604
    %v3606 = vpop.f32.mrb[0].mxu0
    %v3607 = vpop.f32.mrb[0].mxu0
    %v3608 = vadd.f32 %v3324, %v3607
    %v3609 = vpop.f32.mrb[0].mxu0
    %3610 = vmatprep.mubr.bf16.mxu0 0
    %3611 = vmatmul.mubr.bf16.gmra.mrb[0].mxu0 %v3393
    %v3612 = vpop.f32.mrb[0].mxu0
    %v3613 = vadd.f32 %v3324, %v3612
    %v3614 = vpop.f32.mrb[0].mxu0
    %v3615 = vpop.f32.mrb[0].mxu0
    %v3616 = vadd.f32 %v3324, %v3615
    %v3617 = vpop.f32.mrb[0].mxu0
    %3618 = vmatprep.mubr.bf16.mxu0 0
    %3619 = vmatmul.mubr.bf16.gmra.mrb[0].mxu0 %v3396
    %v3620 = vpop.f32.mrb[0].mxu0
    %v3621 = vadd.f32 %v3324, %v3620
    %v3622 = vpop.f32.mrb[0].mxu0
    %v3623 = vpop.f32.mrb[0].mxu0
    %v3624 = vadd.f32 %v3324, %v3623
    %v3625 = vpop.f32.mrb[0].mxu0
    %3626 = vmatprep.mubr.bf16.mxu0 0
    %3627 = vmatmul.mubr.bf16.gmra.mrb[0].mxu0 %v3399
    %v3628 = vpop.f32.mrb[0].mxu0
    %v3629 = vadd.f32 %v3324, %v3628
    %v3630 = vpop.f32.mrb[0].mxu0
    %v3631 = vpop.f32.mrb[0].mxu0
    %v3632 = vadd.f32 %v3324, %v3631
    %v3633 = vpop.f32.mrb[0].mxu0
    %3634 = vmatprep.mubr.bf16.mxu0 0
    %3635 = vmatmul.mubr.bf16.gmra.mrb[0].mxu0 %v3402
    %v3636 = vpop.f32.mrb[0].mxu0
    %v3637 = vadd.f32 %v3324, %v3636
    %v3638 = vpop.f32.mrb[0].mxu0
    %v3639 = vpop.f32.mrb[0].mxu0
    %v3640 = vadd.f32 %v3324, %v3639
    %v3641 = vpop.f32.mrb[0].mxu0
    %3642 = vmatprep.mubr.bf16.mxu0 0
    %3643 = vmatmul.mubr.bf16.gmra.mrb[0].mxu0 %v3405
    %v3644 = vpop.f32.mrb[0].mxu0
    %v3645 = vadd.f32 %v3324, %v3644
    %v3646 = vpop.f32.mrb[0].mxu0
    %v3647 = vpop.f32.mrb[0].mxu0
    %v3648 = vadd.f32 %v3324, %v3647
    %v3649 = vpop.f32.mrb[0].mxu0
    %3650 = vmatprep.mubr.bf16.mxu0 0
    %3651 = vmatmul.mubr.bf16.gmra.mrb[0].mxu0 %v3408
    %v3652 = vpop.f32.mrb[0].mxu0
    %v3653 = vadd.f32 %v3324, %v3652
    %v3654 = vpop.f32.mrb[0].mxu0
    %v3655 = vpop.f32.mrb[0].mxu0
    %v3656 = vadd.f32 %v3324, %v3655
    %v3657 = vpop.f32.mrb[0].mxu0
    %3658 = vmatprep.mubr.bf16.mxu0 0
    %3659 = vmatmul.mubr.bf16.gmra.mrb[0].mxu0 %v3411
    %v3660 = vpop.f32.mrb[0].mxu0
    %v3661 = vadd.f32 %v3324, %v3660
    %v3662 = vpop.f32.mrb[0].mxu0
    %v3663 = vpop.f32.mrb[0].mxu0
    %v3664 = vadd.f32 %v3324, %v3663
    %v3665 = vpop.f32.mrb[0].mxu0
    %3666 = vmatprep.mubr.bf16.mxu0 0
    %3667 = vmatmul.mubr.bf16.gmra.mrb[0].mxu0 %v3414
    %v3668 = vpop.f32.mrb[0].mxu0
    %v3669 = vadd.f32 %v3324, %v3668
    %v3670 = vpop.f32.mrb[0].mxu0
    %v3671 = vpop.f32.mrb[0].mxu0
    %v3672 = vadd.f32 %v3324, %v3671
    %v3673 = vpop.f32.mrb[0].mxu0
    %3674 = vmatprep.mubr.bf16.mxu0 0
    %3675 = vmatmul.mubr.bf16.gmra.mrb[0].mxu0 %v3417
    %v3676 = vpop.f32.mrb[0].mxu0
    %v3677 = vadd.f32 %v3324, %v3676
    %v3678 = vpop.f32.mrb[0].mxu0
    %v3679 = vpop.f32.mrb[0].mxu0
    %v3680 = vadd.f32 %v3324, %v3679
    %v3681 = vpop.f32.mrb[0].mxu0
    %3682 = vmatprep.mubr.bf16.mxu0 0
    %3683 = vmatmul.mubr.bf16.gmra.mrb[0].mxu0 %v3420
    %v3684 = vpop.f32.mrb[0].mxu0
    %v3685 = vadd.f32 %v3324, %v3684
    %v3686 = vpop.f32.mrb[0].mxu0
    %v3687 = vpop.f32.mrb[0].mxu0
    %v3688 = vadd.f32 %v3324, %v3687
    %v3689 = vpop.f32.mrb[0].mxu0
    %3690 = vmatprep.mubr.bf16.mxu0 0
    %3691 = vmatmul.mubr.bf16.gmra.mrb[0].mxu0 %v3423
    %v3692 = vpop.f32.mrb[0].mxu0
    %v3693 = vadd.f32 %v3324, %v3692
    %v3694 = vpop.f32.mrb[0].mxu0
    %v3695 = vpop.f32.mrb[0].mxu0
    %v3696 = vadd.f32 %v3324, %v3695
    %v3697 = vpop.f32.mrb[0].mxu0
    %3698 = vmatprep.mubr.bf16.mxu0 0
    %3699 = vmatmul.mubr.bf16.gmra.mrb[0].mxu0 %v3426
    %v3700 = vpop.f32.mrb[0].mxu0
    %v3701 = vadd.f32 %v3324, %v3700
    %v3702 = vpop.f32.mrb[0].mxu0
    %v3703 = vpop.f32.mrb[0].mxu0
    %v3704 = vadd.f32 %v3324, %v3703
    %v3705 = vpop.f32.mrb[0].mxu0
    %3706 = vmatprep.mubr.bf16.mxu0 0
    %3707 = vmatmul.mubr.bf16.gmra.mrb[0].mxu0 %v3429
    %v3708 = vpop.f32.mrb[0].mxu0
    %v3709 = vadd.f32 %v3324, %v3708
    %v3710 = vpop.f32.mrb[0].mxu0
    %v3711 = vpop.f32.mrb[0].mxu0
    %v3712 = vadd.f32 %v3324, %v3711
    %v3713 = vpop.f32.mrb[0].mxu0
    %3714 = vmatprep.mubr.bf16.mxu0 0
    %3715 = vmatmul.mubr.bf16.gmra.mrb[0].mxu0 %v3432
    %v3716 = vpop.f32.mrb[0].mxu0
    %v3717 = vadd.f32 %v3324, %v3716
    %v3718 = vpop.f32.mrb[0].mxu0
    %v3719 = vpop.f32.mrb[0].mxu0
    %v3720 = vadd.f32 %v3324, %v3719
    %v3721 = vpop.f32.mrb[0].mxu0
    %3722 = vdwg.mxu0
    %v3723 = vmax.f32 %v3469, -60.0
    %v3724 = vmax.f32 %v3472, -60.0
    %v3725 = vmax.f32 %v3477, -60.0
    %v3726 = vmax.f32 %v3480, -60.0
    %v3727 = vmax.f32 %v3485, -60.0
    %v3728 = vmax.f32 %v3488, -60.0
    %v3729 = vmax.f32 %v3493, -60.0
    %v3730 = vmax.f32 %v3496, -60.0
    %v3731 = vmax.f32 %v3501, -60.0
    %v3732 = vmax.f32 %v3504, -60.0
    %v3733 = vmax.f32 %v3509, -60.0
    %v3734 = vmax.f32 %v3512, -60.0
    %v3735 = vmax.f32 %v3517, -60.0
    %v3736 = vmax.f32 %v3520, -60.0
    %v3737 = vmax.f32 %v3525, -60.0
    %v3738 = vmax.f32 %v3528, -60.0
    %v3739 = vmax.f32 %v3533, -60.0
    %v3740 = vmax.f32 %v3536, -60.0
    %v3741 = vmax.f32 %v3541, -60.0
    %v3742 = vmax.f32 %v3544, -60.0
    %v3743 = vmax.f32 %v3549, -60.0
    %v3744 = vmax.f32 %v3552, -60.0
    %v3745 = vmax.f32 %v3557, -60.0
    %v3746 = vmax.f32 %v3560, -60.0
    %v3747 = vmax.f32 %v3565, -60.0
    %v3748 = vmax.f32 %v3568, -60.0
    %v3749 = vmax.f32 %v3573, -60.0
    %v3750 = vmax.f32 %v3576, -60.0
    %v3751 = vmax.f32 %v3581, -60.0
    %v3752 = vmax.f32 %v3584, -60.0
    %v3753 = vmax.f32 %v3589, -60.0
    %v3754 = vmax.f32 %v3592, -60.0
    %v3755 = vmax.f32 %v3597, -60.0
    %v3756 = vmax.f32 %v3600, -60.0
    %v3757 = vmax.f32 %v3605, -60.0
    %v3758 = vmax.f32 %v3608, -60.0
    %v3759 = vmax.f32 %v3613, -60.0
    %v3760 = vmax.f32 %v3616, -60.0
    %v3761 = vmax.f32 %v3621, -60.0
    %v3762 = vmax.f32 %v3624, -60.0
    %v3763 = vmax.f32 %v3629, -60.0
    %v3764 = vmax.f32 %v3632, -60.0
    %v3765 = vmax.f32 %v3637, -60.0
    %v3766 = vmax.f32 %v3640, -60.0
    %v3767 = vmax.f32 %v3645, -60.0
    %v3768 = vmax.f32 %v3648, -60.0
    %v3769 = vmax.f32 %v3653, -60.0
    %v3770 = vmax.f32 %v3656, -60.0
    %v3771 = vmax.f32 %v3661, -60.0
    %v3772 = vmax.f32 %v3664, -60.0
    %v3773 = vmax.f32 %v3669, -60.0
    %v3774 = vmax.f32 %v3672, -60.0
    %v3775 = vmax.f32 %v3677, -60.0
    %v3776 = vmax.f32 %v3680, -60.0
    %v3777 = vmax.f32 %v3685, -60.0
    %v3778 = vmax.f32 %v3688, -60.0
    %v3779 = vmax.f32 %v3693, -60.0
    %v3780 = vmax.f32 %v3696, -60.0
    %v3781 = vmax.f32 %v3701, -60.0
    %v3782 = vmax.f32 %v3704, -60.0
    %v3783 = vmax.f32 %v3709, -60.0
    %v3784 = vmax.f32 %v3712, -60.0
    %v3785 = vmax.f32 %v3717, -60.0
    %v3786 = vmax.f32 %v3720, -60.0
    %v3787 = vmin.f32 %v3723, 60.0
    %v3788 = vmin.f32 %v3724, 60.0
    %v3789 = vmin.f32 %v3725, 60.0
    %v3790 = vmin.f32 %v3726, 60.0
    %v3791 = vmin.f32 %v3727, 60.0
    %v3792 = vmin.f32 %v3728, 60.0
    %v3793 = vmin.f32 %v3729, 60.0
    %v3794 = vmin.f32 %v3730, 60.0
    %v3795 = vmin.f32 %v3731, 60.0
    %v3796 = vmin.f32 %v3732, 60.0
    %v3797 = vmin.f32 %v3733, 60.0
    %v3798 = vmin.f32 %v3734, 60.0
    %v3799 = vmin.f32 %v3735, 60.0
    %v3800 = vmin.f32 %v3736, 60.0
    %v3801 = vmin.f32 %v3737, 60.0
    %v3802 = vmin.f32 %v3738, 60.0
    %v3803 = vmin.f32 %v3739, 60.0
    %v3804 = vmin.f32 %v3740, 60.0
    %v3805 = vmin.f32 %v3741, 60.0
    %v3806 = vmin.f32 %v3742, 60.0
    %v3807 = vmin.f32 %v3743, 60.0
    %v3808 = vmin.f32 %v3744, 60.0
    %v3809 = vmin.f32 %v3745, 60.0
    %v3810 = vmin.f32 %v3746, 60.0
    %v3811 = vmin.f32 %v3747, 60.0
    %v3812 = vmin.f32 %v3748, 60.0
    %v3813 = vmin.f32 %v3749, 60.0
    %v3814 = vmin.f32 %v3750, 60.0
    %v3815 = vmin.f32 %v3751, 60.0
    %v3816 = vmin.f32 %v3752, 60.0
    %v3817 = vmin.f32 %v3753, 60.0
    %v3818 = vmin.f32 %v3754, 60.0
    %v3819 = vmin.f32 %v3755, 60.0
    %v3820 = vmin.f32 %v3756, 60.0
    %v3821 = vmin.f32 %v3757, 60.0
    %v3822 = vmin.f32 %v3758, 60.0
    %v3823 = vmin.f32 %v3759, 60.0
    %v3824 = vmin.f32 %v3760, 60.0
    %v3825 = vmin.f32 %v3761, 60.0
    %v3826 = vmin.f32 %v3762, 60.0
    %v3827 = vmin.f32 %v3763, 60.0
    %v3828 = vmin.f32 %v3764, 60.0
    %v3829 = vmin.f32 %v3765, 60.0
    %v3830 = vmin.f32 %v3766, 60.0
    %v3831 = vmin.f32 %v3767, 60.0
    %v3832 = vmin.f32 %v3768, 60.0
    %v3833 = vmin.f32 %v3769, 60.0
    %v3834 = vmin.f32 %v3770, 60.0
    %v3835 = vmin.f32 %v3771, 60.0
    %v3836 = vmin.f32 %v3772, 60.0
    %v3837 = vmin.f32 %v3773, 60.0
    %v3838 = vmin.f32 %v3774, 60.0
    %v3839 = vmin.f32 %v3775, 60.0
    %v3840 = vmin.f32 %v3776, 60.0
    %v3841 = vmin.f32 %v3777, 60.0
    %v3842 = vmin.f32 %v3778, 60.0
    %v3843 = vmin.f32 %v3779, 60.0
    %v3844 = vmin.f32 %v3780, 60.0
    %v3845 = vmin.f32 %v3781, 60.0
    %v3846 = vmin.f32 %v3782, 60.0
    %v3847 = vmin.f32 %v3783, 60.0
    %v3848 = vmin.f32 %v3784, 60.0
    %v3849 = vmin.f32 %v3785, 60.0
    %v3850 = vmin.f32 %v3786, 60.0
    %v3851 = vsub.f32 0.0, %v3787
    %v3852 = vsub.f32 0.0, %v3788
    %v3853 = vsub.f32 0.0, %v3789
    %v3854 = vsub.f32 0.0, %v3790
    %v3855 = vsub.f32 0.0, %v3791
    %v3856 = vsub.f32 0.0, %v3792
    %v3857 = vsub.f32 0.0, %v3793
    %v3858 = vsub.f32 0.0, %v3794
    %v3859 = vsub.f32 0.0, %v3795
    %v3860 = vsub.f32 0.0, %v3796
    %v3861 = vsub.f32 0.0, %v3797
    %v3862 = vsub.f32 0.0, %v3798
    %v3863 = vsub.f32 0.0, %v3799
    %v3864 = vsub.f32 0.0, %v3800
    %v3865 = vsub.f32 0.0, %v3801
    %v3866 = vsub.f32 0.0, %v3802
    %v3867 = vsub.f32 0.0, %v3803
    %v3868 = vsub.f32 0.0, %v3804
    %v3869 = vsub.f32 0.0, %v3805
    %v3870 = vsub.f32 0.0, %v3806
    %v3871 = vsub.f32 0.0, %v3807
    %v3872 = vsub.f32 0.0, %v3808
    %v3873 = vsub.f32 0.0, %v3809
    %v3874 = vsub.f32 0.0, %v3810
    %v3875 = vsub.f32 0.0, %v3811
    %v3876 = vsub.f32 0.0, %v3812
    %v3877 = vsub.f32 0.0, %v3813
    %v3878 = vsub.f32 0.0, %v3814
    %v3879 = vsub.f32 0.0, %v3815
    %v3880 = vsub.f32 0.0, %v3816
    %v3881 = vsub.f32 0.0, %v3817
    %v3882 = vsub.f32 0.0, %v3818
    %v3883 = vsub.f32 0.0, %v3819
    %v3884 = vsub.f32 0.0, %v3820
    %v3885 = vsub.f32 0.0, %v3821
    %v3886 = vsub.f32 0.0, %v3822
    %v3887 = vsub.f32 0.0, %v3823
    %v3888 = vsub.f32 0.0, %v3824
    %v3889 = vsub.f32 0.0, %v3825
    %v3890 = vsub.f32 0.0, %v3826
    %v3891 = vsub.f32 0.0, %v3827
    %v3892 = vsub.f32 0.0, %v3828
    %v3893 = vsub.f32 0.0, %v3829
    %v3894 = vsub.f32 0.0, %v3830
    %v3895 = vsub.f32 0.0, %v3831
    %v3896 = vsub.f32 0.0, %v3832
    %v3897 = vsub.f32 0.0, %v3833
    %v3898 = vsub.f32 0.0, %v3834
    %v3899 = vsub.f32 0.0, %v3835
    %v3900 = vsub.f32 0.0, %v3836
    %v3901 = vsub.f32 0.0, %v3837
    %v3902 = vsub.f32 0.0, %v3838
    %v3903 = vsub.f32 0.0, %v3839
    %v3904 = vsub.f32 0.0, %v3840
    %v3905 = vsub.f32 0.0, %v3841
    %v3906 = vsub.f32 0.0, %v3842
    %v3907 = vsub.f32 0.0, %v3843
    %v3908 = vsub.f32 0.0, %v3844
    %v3909 = vsub.f32 0.0, %v3845
    %v3910 = vsub.f32 0.0, %v3846
    %v3911 = vsub.f32 0.0, %v3847
    %v3912 = vsub.f32 0.0, %v3848
    %v3913 = vsub.f32 0.0, %v3849
    %v3914 = vsub.f32 0.0, %v3850
    %v3915 = vmul.f32 %v3851, 1.442695
    %v3916 = vpow.pop %v3915
    %v3917 = vmul.f32 %v3852, 1.442695
    %v3918 = vpow.pop %v3917
    %v3919 = vmul.f32 %v3853, 1.442695
    %v3920 = vpow.pop %v3919
    %v3921 = vmul.f32 %v3854, 1.442695
    %v3922 = vpow.pop %v3921
    %v3923 = vmul.f32 %v3855, 1.442695
    %v3924 = vpow.pop %v3923
    %v3925 = vmul.f32 %v3856, 1.442695
    %v3926 = vpow.pop %v3925
    %v3927 = vmul.f32 %v3857, 1.442695
    %v3928 = vpow.pop %v3927
    %v3929 = vmul.f32 %v3858, 1.442695
    %v3930 = vpow.pop %v3929
    %v3931 = vmul.f32 %v3859, 1.442695
    %v3932 = vpow.pop %v3931
    %v3933 = vmul.f32 %v3860, 1.442695
    %v3934 = vpow.pop %v3933
    %v3935 = vmul.f32 %v3861, 1.442695
    %v3936 = vpow.pop %v3935
    %v3937 = vmul.f32 %v3862, 1.442695
    %v3938 = vpow.pop %v3937
    %v3939 = vmul.f32 %v3863, 1.442695
    %v3940 = vpow.pop %v3939
    %v3941 = vmul.f32 %v3864, 1.442695
    %v3942 = vpow.pop %v3941
    %v3943 = vmul.f32 %v3865, 1.442695
    %v3944 = vpow.pop %v3943
    %v3945 = vmul.f32 %v3866, 1.442695
    %v3946 = vpow.pop %v3945
    %v3947 = vmul.f32 %v3867, 1.442695
    %v3948 = vpow.pop %v3947
    %v3949 = vmul.f32 %v3868, 1.442695
    %v3950 = vpow.pop %v3949
    %v3951 = vmul.f32 %v3869, 1.442695
    %v3952 = vpow.pop %v3951
    %v3953 = vmul.f32 %v3870, 1.442695
    %v3954 = vpow.pop %v3953
    %v3955 = vmul.f32 %v3871, 1.442695
    %v3956 = vpow.pop %v3955
    %v3957 = vmul.f32 %v3872, 1.442695
    %v3958 = vpow.pop %v3957
    %v3959 = vmul.f32 %v3873, 1.442695
    %v3960 = vpow.pop %v3959
    %v3961 = vmul.f32 %v3874, 1.442695
    %v3962 = vpow.pop %v3961
    %v3963 = vmul.f32 %v3875, 1.442695
    %v3964 = vpow.pop %v3963
    %v3965 = vmul.f32 %v3876, 1.442695
    %v3966 = vpow.pop %v3965
    %v3967 = vmul.f32 %v3877, 1.442695
    %v3968 = vpow.pop %v3967
    %v3969 = vmul.f32 %v3878, 1.442695
    %v3970 = vpow.pop %v3969
    %v3971 = vmul.f32 %v3879, 1.442695
    %v3972 = vpow.pop %v3971
    %v3973 = vmul.f32 %v3880, 1.442695
    %v3974 = vpow.pop %v3973
    %v3975 = vmul.f32 %v3881, 1.442695
    %v3976 = vpow.pop %v3975
    %v3977 = vmul.f32 %v3882, 1.442695
    %v3978 = vpow.pop %v3977
    %v3979 = vmul.f32 %v3883, 1.442695
    %v3980 = vpow.pop %v3979
    %v3981 = vmul.f32 %v3884, 1.442695
    %v3982 = vpow.pop %v3981
    %v3983 = vmul.f32 %v3885, 1.442695
    %v3984 = vpow.pop %v3983
    %v3985 = vmul.f32 %v3886, 1.442695
    %v3986 = vpow.pop %v3985
    %v3987 = vmul.f32 %v3887, 1.442695
    %v3988 = vpow.pop %v3987
    %v3989 = vmul.f32 %v3888, 1.442695
    %v3990 = vpow.pop %v3989
    %v3991 = vmul.f32 %v3889, 1.442695
    %v3992 = vpow.pop %v3991
    %v3993 = vmul.f32 %v3890, 1.442695
    %v3994 = vpow.pop %v3993
    %v3995 = vmul.f32 %v3891, 1.442695
    %v3996 = vpow.pop %v3995
    %v3997 = vmul.f32 %v3892, 1.442695
    %v3998 = vpow.pop %v3997
    %v3999 = vmul.f32 %v3893, 1.442695
    %v4000 = vpow.pop %v3999
    %v4001 = vmul.f32 %v3894, 1.442695
    %v4002 = vpow.pop %v4001
    %v4003 = vmul.f32 %v3895, 1.442695
    %v4004 = vpow.pop %v4003
    %v4005 = vmul.f32 %v3896, 1.442695
    %v4006 = vpow.pop %v4005
    %v4007 = vmul.f32 %v3897, 1.442695
    %v4008 = vpow.pop %v4007
    %v4009 = vmul.f32 %v3898, 1.442695
    %v4010 = vpow.pop %v4009
    %v4011 = vmul.f32 %v3899, 1.442695
    %v4012 = vpow.pop %v4011
    %v4013 = vmul.f32 %v3900, 1.442695
    %v4014 = vpow.pop %v4013
    %v4015 = vmul.f32 %v3901, 1.442695
    %v4016 = vpow.pop %v4015
    %v4017 = vmul.f32 %v3902, 1.442695
    %v4018 = vpow.pop %v4017
    %v4019 = vmul.f32 %v3903, 1.442695
    %v4020 = vpow.pop %v4019
    %v4021 = vmul.f32 %v3904, 1.442695
    %v4022 = vpow.pop %v4021
    %v4023 = vmul.f32 %v3905, 1.442695
    %v4024 = vpow.pop %v4023
    %v4025 = vmul.f32 %v3906, 1.442695
    %v4026 = vpow.pop %v4025
    %v4027 = vmul.f32 %v3907, 1.442695
    %v4028 = vpow.pop %v4027
    %v4029 = vmul.f32 %v3908, 1.442695
    %v4030 = vpow.pop %v4029
    %v4031 = vmul.f32 %v3909, 1.442695
    %v4032 = vpow.pop %v4031
    %v4033 = vmul.f32 %v3910, 1.442695
    %v4034 = vpow.pop %v4033
    %v4035 = vmul.f32 %v3911, 1.442695
    %v4036 = vpow.pop %v4035
    %v4037 = vmul.f32 %v3912, 1.442695
    %v4038 = vpow.pop %v4037
    %v4039 = vmul.f32 %v3913, 1.442695
    %v4040 = vpow.pop %v4039
    %v4041 = vmul.f32 %v3914, 1.442695
    %v4042 = vpow.pop %v4041
    %v4043 = vadd.f32 %v3916, 1.0
    %v4044 = vadd.f32 %v3918, 1.0
    %v4045 = vadd.f32 %v3920, 1.0
    %v4046 = vadd.f32 %v3922, 1.0
    %v4047 = vadd.f32 %v3924, 1.0
    %v4048 = vadd.f32 %v3926, 1.0
    %v4049 = vadd.f32 %v3928, 1.0
    %v4050 = vadd.f32 %v3930, 1.0
    %v4051 = vadd.f32 %v3932, 1.0
    %v4052 = vadd.f32 %v3934, 1.0
    %v4053 = vadd.f32 %v3936, 1.0
    %v4054 = vadd.f32 %v3938, 1.0
    %v4055 = vadd.f32 %v3940, 1.0
    %v4056 = vadd.f32 %v3942, 1.0
    %v4057 = vadd.f32 %v3944, 1.0
    %v4058 = vadd.f32 %v3946, 1.0
    %v4059 = vadd.f32 %v3948, 1.0
    %v4060 = vadd.f32 %v3950, 1.0
    %v4061 = vadd.f32 %v3952, 1.0
    %v4062 = vadd.f32 %v3954, 1.0
    %v4063 = vadd.f32 %v3956, 1.0
    %v4064 = vadd.f32 %v3958, 1.0
    %v4065 = vadd.f32 %v3960, 1.0
    %v4066 = vadd.f32 %v3962, 1.0
    %v4067 = vadd.f32 %v3964, 1.0
    %v4068 = vadd.f32 %v3966, 1.0
    %v4069 = vadd.f32 %v3968, 1.0
    %v4070 = vadd.f32 %v3970, 1.0
    %v4071 = vadd.f32 %v3972, 1.0
    %v4072 = vadd.f32 %v3974, 1.0
    %v4073 = vadd.f32 %v3976, 1.0
    %v4074 = vadd.f32 %v3978, 1.0
    %v4075 = vadd.f32 %v3980, 1.0
    %v4076 = vadd.f32 %v3982, 1.0
    %v4077 = vadd.f32 %v3984, 1.0
    %v4078 = vadd.f32 %v3986, 1.0
    %v4079 = vadd.f32 %v3988, 1.0
    %v4080 = vadd.f32 %v3990, 1.0
    %v4081 = vadd.f32 %v3992, 1.0
    %v4082 = vadd.f32 %v3994, 1.0
    %v4083 = vadd.f32 %v3996, 1.0
    %v4084 = vadd.f32 %v3998, 1.0
    %v4085 = vadd.f32 %v4000, 1.0
    %v4086 = vadd.f32 %v4002, 1.0
    %v4087 = vadd.f32 %v4004, 1.0
    %v4088 = vadd.f32 %v4006, 1.0
    %v4089 = vadd.f32 %v4008, 1.0
    %v4090 = vadd.f32 %v4010, 1.0
    %v4091 = vadd.f32 %v4012, 1.0
    %v4092 = vadd.f32 %v4014, 1.0
    %v4093 = vadd.f32 %v4016, 1.0
    %v4094 = vadd.f32 %v4018, 1.0
    %v4095 = vadd.f32 %v4020, 1.0
    %v4096 = vadd.f32 %v4022, 1.0
    %v4097 = vadd.f32 %v4024, 1.0
    %v4098 = vadd.f32 %v4026, 1.0
    %v4099 = vadd.f32 %v4028, 1.0
    %v4100 = vadd.f32 %v4030, 1.0
    %v4101 = vadd.f32 %v4032, 1.0
    %v4102 = vadd.f32 %v4034, 1.0
    %v4103 = vadd.f32 %v4036, 1.0
    %v4104 = vadd.f32 %v4038, 1.0
    %v4105 = vadd.f32 %v4040, 1.0
    %v4106 = vadd.f32 %v4042, 1.0
    %v4107 = vrcp.pop %v4043
    %v4108 = vrcp.pop %v4044
    %v4109 = vrcp.pop %v4045
    %v4110 = vrcp.pop %v4046
    %v4111 = vrcp.pop %v4047
    %v4112 = vrcp.pop %v4048
    %v4113 = vrcp.pop %v4049
    %v4114 = vrcp.pop %v4050
    %v4115 = vrcp.pop %v4051
    %v4116 = vrcp.pop %v4052
    %v4117 = vrcp.pop %v4053
    %v4118 = vrcp.pop %v4054
    %v4119 = vrcp.pop %v4055
    %v4120 = vrcp.pop %v4056
    %v4121 = vrcp.pop %v4057
    %v4122 = vrcp.pop %v4058
    %v4123 = vrcp.pop %v4059
    %v4124 = vrcp.pop %v4060
    %v4125 = vrcp.pop %v4061
    %v4126 = vrcp.pop %v4062
    %v4127 = vrcp.pop %v4063
    %v4128 = vrcp.pop %v4064
    %v4129 = vrcp.pop %v4065
    %v4130 = vrcp.pop %v4066
    %v4131 = vrcp.pop %v4067
    %v4132 = vrcp.pop %v4068
    %v4133 = vrcp.pop %v4069
    %v4134 = vrcp.pop %v4070
    %v4135 = vrcp.pop %v4071
    %v4136 = vrcp.pop %v4072
    %v4137 = vrcp.pop %v4073
    %v4138 = vrcp.pop %v4074
    %v4139 = vrcp.pop %v4075
    %v4140 = vrcp.pop %v4076
    %v4141 = vrcp.pop %v4077
    %v4142 = vrcp.pop %v4078
    %v4143 = vrcp.pop %v4079
    %v4144 = vrcp.pop %v4080
    %v4145 = vrcp.pop %v4081
    %v4146 = vrcp.pop %v4082
    %v4147 = vrcp.pop %v4083
    %v4148 = vrcp.pop %v4084
    %v4149 = vrcp.pop %v4085
    %v4150 = vrcp.pop %v4086
    %v4151 = vrcp.pop %v4087
    %v4152 = vrcp.pop %v4088
    %v4153 = vrcp.pop %v4089
    %v4154 = vrcp.pop %v4090
    %v4155 = vrcp.pop %v4091
    %v4156 = vrcp.pop %v4092
    %v4157 = vrcp.pop %v4093
    %v4158 = vrcp.pop %v4094
    %v4159 = vrcp.pop %v4095
    %v4160 = vrcp.pop %v4096
    %v4161 = vrcp.pop %v4097
    %v4162 = vrcp.pop %v4098
    %v4163 = vrcp.pop %v4099
    %v4164 = vrcp.pop %v4100
    %v4165 = vrcp.pop %v4101
    %v4166 = vrcp.pop %v4102
    %v4167 = vrcp.pop %v4103
    %v4168 = vrcp.pop %v4104
    %v4169 = vrcp.pop %v4105
    %v4170 = vrcp.pop %v4106
    %v4171 = vpack.c.bf16 %v4108, %v4107
    %v4172 = vpack.c.bf16 %v4110, %v4109
    %v4173 = vpack.c.bf16 %v4112, %v4111
    %v4174 = vpack.c.bf16 %v4114, %v4113
    %v4175 = vpack.c.bf16 %v4116, %v4115
    %v4176 = vpack.c.bf16 %v4118, %v4117
    %v4177 = vpack.c.bf16 %v4120, %v4119
    %v4178 = vpack.c.bf16 %v4122, %v4121
    %v4179 = vpack.c.bf16 %v4124, %v4123
    %v4180 = vpack.c.bf16 %v4126, %v4125
    %v4181 = vpack.c.bf16 %v4128, %v4127
    %v4182 = vpack.c.bf16 %v4130, %v4129
    %v4183 = vpack.c.bf16 %v4132, %v4131
    %v4184 = vpack.c.bf16 %v4134, %v4133
    %v4185 = vpack.c.bf16 %v4136, %v4135
    %v4186 = vpack.c.bf16 %v4138, %v4137
    %v4187 = vpack.c.bf16 %v4140, %v4139
    %v4188 = vpack.c.bf16 %v4142, %v4141
    %v4189 = vpack.c.bf16 %v4144, %v4143
    %v4190 = vpack.c.bf16 %v4146, %v4145
    %v4191 = vpack.c.bf16 %v4148, %v4147
    %v4192 = vpack.c.bf16 %v4150, %v4149
    %v4193 = vpack.c.bf16 %v4152, %v4151
    %v4194 = vpack.c.bf16 %v4154, %v4153
    %v4195 = vpack.c.bf16 %v4156, %v4155
    %v4196 = vpack.c.bf16 %v4158, %v4157
    %v4197 = vpack.c.bf16 %v4160, %v4159
    %v4198 = vpack.c.bf16 %v4162, %v4161
    %v4199 = vpack.c.bf16 %v4164, %v4163
    %v4200 = vpack.c.bf16 %v4166, %v4165
    %v4201 = vpack.c.bf16 %v4168, %v4167
    %v4202 = vpack.c.bf16 %v4170, %v4169
    %v4203 = vld [vmem:[%s11] sm:$0xf]
    %v4204 = vld [vmem:[%s11 + $0x4] sm:$0xf]
    %v4205 = vld [vmem:[%s11 + $0x8] sm:$0xf]
    %v4206 = vld [vmem:[%s11 + $0xc] sm:$0xf]
    %v4207 = vld [vmem:[%s11 + $0x10] sm:$0xf]
    %v4208 = vld [vmem:[%s11 + $0x14] sm:$0xf]
    %v4209 = vld [vmem:[%s11 + $0x18] sm:$0xf]
    %v4210 = vld [vmem:[%s11 + $0x1c] sm:$0xf]
    %v4211 = vld [vmem:[%s12] sm:$0x1]
    %v4213 = vlaneseq
    %v4214 = vshrl.u32 %v4213, 7
    %v4215 = vsub.s32 0, %v4214
    %v4216 = vrot.slane %v4211, %v4215
    %v4226 = vunpack.c.l.b16 %v4203
    %v4227 = vunpack.c.l.b16 %v4204
    %v4228 = vunpack.c.l.b16 %v4205
    %v4229 = vunpack.c.l.b16 %v4206
    %v4230 = vunpack.c.l.b16 %v4207
    %v4231 = vunpack.c.l.b16 %v4208
    %v4232 = vunpack.c.l.b16 %v4209
    %v4233 = vunpack.c.l.b16 %v4210
    %v4234 = vpack.c.b16 %v4227, %v4226
    %v4235 = vpack.c.b16 %v4229, %v4228
    %v4236 = vpack.c.b16 %v4231, %v4230
    %v4237 = vpack.c.b16 %v4233, %v4232
    %v4243 = vsel %vm1183, %v4171, 0
    %v4246 = vsel %vm1183, %v4172, 0
    %v4249 = vsel %vm1183, %v4173, 0
    %v4252 = vsel %vm1183, %v4174, 0
    %v4255 = vsel %vm1183, %v4175, 0
    %v4258 = vsel %vm1183, %v4176, 0
    %v4261 = vsel %vm1183, %v4177, 0
    %v4264 = vsel %vm1183, %v4178, 0
    %v4267 = vsel %vm1183, %v4179, 0
    %v4270 = vsel %vm1183, %v4180, 0
    %v4273 = vsel %vm1183, %v4181, 0
    %v4276 = vsel %vm1183, %v4182, 0
    %v4279 = vsel %vm1183, %v4183, 0
    %v4282 = vsel %vm1183, %v4184, 0
    %v4285 = vsel %vm1183, %v4185, 0
    %v4288 = vsel %vm1183, %v4186, 0
    %v4291 = vsel %vm1183, %v4187, 0
    %v4294 = vsel %vm1183, %v4188, 0
    %v4297 = vsel %vm1183, %v4189, 0
    %v4300 = vsel %vm1183, %v4190, 0
    %v4303 = vsel %vm1183, %v4191, 0
    %v4306 = vsel %vm1183, %v4192, 0
    %v4309 = vsel %vm1183, %v4193, 0
    %v4312 = vsel %vm1183, %v4194, 0
    %v4315 = vsel %vm1183, %v4195, 0
    %v4318 = vsel %vm1183, %v4196, 0
    %v4321 = vsel %vm1183, %v4197, 0
    %v4324 = vsel %vm1183, %v4198, 0
    %v4327 = vsel %vm1183, %v4199, 0
    %v4330 = vsel %vm1183, %v4200, 0
    %v4333 = vsel %vm1183, %v4201, 0
    %v4336 = vsel %vm1183, %v4202, 0
    %4338 = vmatprep.subr.bf16.mxu0 0
    %4339 = vmatpush1.bf16.msra.mxu0 %v4234
    %4340 = vmatprep.subr.bf16.mxu0 0
    %4341 = vmatpush1.bf16.msra.mxu0 %v4235
    %4342 = vmatprep.subr.bf16.mxu0 0
    %4343 = vmatpush1.bf16.msra.mxu0 %v4236
    %4344 = vmatprep.subr.bf16.mxu0 0
    %4345 = vmatpush1.bf16.msra.mxu0 %v4237
    %4346 = vmatprep.subr.bf16.mxu0 0
    %4347 = vmatpush1.bf16.msra.mxu0 0
    %4348 = vmatprep.subr.bf16.mxu0 0
    %4349 = vmatpush1.bf16.msra.mxu0 0
    %4350 = vmatprep.subr.bf16.mxu0 0
    %4351 = vmatpush1.bf16.msra.mxu0 0
    %4352 = vmatprep.subr.bf16.mxu0 0
    %4353 = vmatpush1.bf16.msra.mxu0 0
    %4354 = vmatprep.subr.bf16.mxu0 0
    %4355 = vmatpush1.bf16.msra.mxu0 0
    %4356 = vmatprep.subr.bf16.mxu0 0
    %4357 = vmatpush1.bf16.msra.mxu0 0
    %4358 = vmatprep.subr.bf16.mxu0 0
    %4359 = vmatpush1.bf16.msra.mxu0 0
    %4360 = vmatprep.subr.bf16.mxu0 0
    %4361 = vmatpush1.bf16.msra.mxu0 0
    %4362 = vmatprep.subr.bf16.mxu0 0
    %4363 = vmatpush1.bf16.msra.mxu0 0
    %4364 = vmatprep.subr.bf16.mxu0 0
    %4365 = vmatpush1.bf16.msra.mxu0 0
    %4366 = vmatprep.subr.bf16.mxu0 0
    %4367 = vmatpush1.bf16.msra.mxu0 0
    %4368 = vmatprep.subr.bf16.mxu0 0
    %4369 = vmatpush1.bf16.msra.mxu0 0
    %4370 = vmatprep.mubr.bf16.mxu0 0
    %4371 = vmatmul.mubr.bf16.gmra.mrb[0].mxu0 %v4243
    %v4372 = vpop.f32.mrb[0].mxu0
    %v4373 = vadd.f32 %v4216, %v4372
    %v4374 = vpop.f32.mrb[0].mxu0
    %v4375 = vpop.f32.mrb[0].mxu0
    %v4376 = vadd.f32 %v4216, %v4375
    %v4377 = vpop.f32.mrb[0].mxu0
    %4378 = vmatprep.mubr.bf16.mxu0 0
    %4379 = vmatmul.mubr.bf16.gmra.mrb[0].mxu0 %v4246
    %v4380 = vpop.f32.mrb[0].mxu0
    %v4381 = vadd.f32 %v4216, %v4380
    %v4382 = vpop.f32.mrb[0].mxu0
    %v4383 = vpop.f32.mrb[0].mxu0
    %v4384 = vadd.f32 %v4216, %v4383
    %v4385 = vpop.f32.mrb[0].mxu0
    %4386 = vmatprep.mubr.bf16.mxu0 0
    %4387 = vmatmul.mubr.bf16.gmra.mrb[0].mxu0 %v4249
    %v4388 = vpop.f32.mrb[0].mxu0
    %v4389 = vadd.f32 %v4216, %v4388
    %v4390 = vpop.f32.mrb[0].mxu0
    %v4391 = vpop.f32.mrb[0].mxu0
    %v4392 = vadd.f32 %v4216, %v4391
    %v4393 = vpop.f32.mrb[0].mxu0
    %4394 = vmatprep.mubr.bf16.mxu0 0
    %4395 = vmatmul.mubr.bf16.gmra.mrb[0].mxu0 %v4252
    %v4396 = vpop.f32.mrb[0].mxu0
    %v4397 = vadd.f32 %v4216, %v4396
    %v4398 = vpop.f32.mrb[0].mxu0
    %v4399 = vpop.f32.mrb[0].mxu0
    %v4400 = vadd.f32 %v4216, %v4399
    %v4401 = vpop.f32.mrb[0].mxu0
    %4402 = vmatprep.mubr.bf16.mxu0 0
    %4403 = vmatmul.mubr.bf16.gmra.mrb[0].mxu0 %v4255
    %v4404 = vpop.f32.mrb[0].mxu0
    %v4405 = vadd.f32 %v4216, %v4404
    %v4406 = vpop.f32.mrb[0].mxu0
    %v4407 = vpop.f32.mrb[0].mxu0
    %v4408 = vadd.f32 %v4216, %v4407
    %v4409 = vpop.f32.mrb[0].mxu0
    %4410 = vmatprep.mubr.bf16.mxu0 0
    %4411 = vmatmul.mubr.bf16.gmra.mrb[0].mxu0 %v4258
    %v4412 = vpop.f32.mrb[0].mxu0
    %v4413 = vadd.f32 %v4216, %v4412
    %v4414 = vpop.f32.mrb[0].mxu0
    %v4415 = vpop.f32.mrb[0].mxu0
    %v4416 = vadd.f32 %v4216, %v4415
    %v4417 = vpop.f32.mrb[0].mxu0
    %4418 = vmatprep.mubr.bf16.mxu0 0
    %4419 = vmatmul.mubr.bf16.gmra.mrb[0].mxu0 %v4261
    %v4420 = vpop.f32.mrb[0].mxu0
    %v4421 = vadd.f32 %v4216, %v4420
    %v4422 = vpop.f32.mrb[0].mxu0
    %v4423 = vpop.f32.mrb[0].mxu0
    %v4424 = vadd.f32 %v4216, %v4423
    %v4425 = vpop.f32.mrb[0].mxu0
    %4426 = vmatprep.mubr.bf16.mxu0 0
    %4427 = vmatmul.mubr.bf16.gmra.mrb[0].mxu0 %v4264
    %v4428 = vpop.f32.mrb[0].mxu0
    %v4429 = vadd.f32 %v4216, %v4428
    %v4430 = vpop.f32.mrb[0].mxu0
    %v4431 = vpop.f32.mrb[0].mxu0
    %v4432 = vadd.f32 %v4216, %v4431
    %v4433 = vpop.f32.mrb[0].mxu0
    %4434 = vmatprep.mubr.bf16.mxu0 0
    %4435 = vmatmul.mubr.bf16.gmra.mrb[0].mxu0 %v4267
    %v4436 = vpop.f32.mrb[0].mxu0
    %v4437 = vadd.f32 %v4216, %v4436
    %v4438 = vpop.f32.mrb[0].mxu0
    %v4439 = vpop.f32.mrb[0].mxu0
    %v4440 = vadd.f32 %v4216, %v4439
    %v4441 = vpop.f32.mrb[0].mxu0
    %4442 = vmatprep.mubr.bf16.mxu0 0
    %4443 = vmatmul.mubr.bf16.gmra.mrb[0].mxu0 %v4270
    %v4444 = vpop.f32.mrb[0].mxu0
    %v4445 = vadd.f32 %v4216, %v4444
    %v4446 = vpop.f32.mrb[0].mxu0
    %v4447 = vpop.f32.mrb[0].mxu0
    %v4448 = vadd.f32 %v4216, %v4447
    %v4449 = vpop.f32.mrb[0].mxu0
    %4450 = vmatprep.mubr.bf16.mxu0 0
    %4451 = vmatmul.mubr.bf16.gmra.mrb[0].mxu0 %v4273
    %v4452 = vpop.f32.mrb[0].mxu0
    %v4453 = vadd.f32 %v4216, %v4452
    %v4454 = vpop.f32.mrb[0].mxu0
    %v4455 = vpop.f32.mrb[0].mxu0
    %v4456 = vadd.f32 %v4216, %v4455
    %v4457 = vpop.f32.mrb[0].mxu0
    %4458 = vmatprep.mubr.bf16.mxu0 0
    %4459 = vmatmul.mubr.bf16.gmra.mrb[0].mxu0 %v4276
    %v4460 = vpop.f32.mrb[0].mxu0
    %v4461 = vadd.f32 %v4216, %v4460
    %v4462 = vpop.f32.mrb[0].mxu0
    %v4463 = vpop.f32.mrb[0].mxu0
    %v4464 = vadd.f32 %v4216, %v4463
    %v4465 = vpop.f32.mrb[0].mxu0
    %4466 = vmatprep.mubr.bf16.mxu0 0
    %4467 = vmatmul.mubr.bf16.gmra.mrb[0].mxu0 %v4279
    %v4468 = vpop.f32.mrb[0].mxu0
    %v4469 = vadd.f32 %v4216, %v4468
    %v4470 = vpop.f32.mrb[0].mxu0
    %v4471 = vpop.f32.mrb[0].mxu0
    %v4472 = vadd.f32 %v4216, %v4471
    %v4473 = vpop.f32.mrb[0].mxu0
    %4474 = vmatprep.mubr.bf16.mxu0 0
    %4475 = vmatmul.mubr.bf16.gmra.mrb[0].mxu0 %v4282
    %v4476 = vpop.f32.mrb[0].mxu0
    %v4477 = vadd.f32 %v4216, %v4476
    %v4478 = vpop.f32.mrb[0].mxu0
    %v4479 = vpop.f32.mrb[0].mxu0
    %v4480 = vadd.f32 %v4216, %v4479
    %v4481 = vpop.f32.mrb[0].mxu0
    %4482 = vmatprep.mubr.bf16.mxu0 0
    %4483 = vmatmul.mubr.bf16.gmra.mrb[0].mxu0 %v4285
    %v4484 = vpop.f32.mrb[0].mxu0
    %v4485 = vadd.f32 %v4216, %v4484
    %v4486 = vpop.f32.mrb[0].mxu0
    %v4487 = vpop.f32.mrb[0].mxu0
    %v4488 = vadd.f32 %v4216, %v4487
    %v4489 = vpop.f32.mrb[0].mxu0
    %4490 = vmatprep.mubr.bf16.mxu0 0
    %4491 = vmatmul.mubr.bf16.gmra.mrb[0].mxu0 %v4288
    %v4492 = vpop.f32.mrb[0].mxu0
    %v4493 = vadd.f32 %v4216, %v4492
    %v4494 = vpop.f32.mrb[0].mxu0
    %v4495 = vpop.f32.mrb[0].mxu0
    %v4496 = vadd.f32 %v4216, %v4495
    %v4497 = vpop.f32.mrb[0].mxu0
    %4498 = vmatprep.mubr.bf16.mxu0 0
    %4499 = vmatmul.mubr.bf16.gmra.mrb[0].mxu0 %v4291
    %v4500 = vpop.f32.mrb[0].mxu0
    %v4501 = vadd.f32 %v4216, %v4500
    %v4502 = vpop.f32.mrb[0].mxu0
    %v4503 = vpop.f32.mrb[0].mxu0
    %v4504 = vadd.f32 %v4216, %v4503
    %v4505 = vpop.f32.mrb[0].mxu0
    %4506 = vmatprep.mubr.bf16.mxu0 0
    %4507 = vmatmul.mubr.bf16.gmra.mrb[0].mxu0 %v4294
    %v4508 = vpop.f32.mrb[0].mxu0
    %v4509 = vadd.f32 %v4216, %v4508
    %v4510 = vpop.f32.mrb[0].mxu0
    %v4511 = vpop.f32.mrb[0].mxu0
    %v4512 = vadd.f32 %v4216, %v4511
    %v4513 = vpop.f32.mrb[0].mxu0
    %4514 = vmatprep.mubr.bf16.mxu0 0
    %4515 = vmatmul.mubr.bf16.gmra.mrb[0].mxu0 %v4297
    %v4516 = vpop.f32.mrb[0].mxu0
    %v4517 = vadd.f32 %v4216, %v4516
    %v4518 = vpop.f32.mrb[0].mxu0
    %v4519 = vpop.f32.mrb[0].mxu0
    %v4520 = vadd.f32 %v4216, %v4519
    %v4521 = vpop.f32.mrb[0].mxu0
    %4522 = vmatprep.mubr.bf16.mxu0 0
    %4523 = vmatmul.mubr.bf16.gmra.mrb[0].mxu0 %v4300
    %v4524 = vpop.f32.mrb[0].mxu0
    %v4525 = vadd.f32 %v4216, %v4524
    %v4526 = vpop.f32.mrb[0].mxu0
    %v4527 = vpop.f32.mrb[0].mxu0
    %v4528 = vadd.f32 %v4216, %v4527
    %v4529 = vpop.f32.mrb[0].mxu0
    %4530 = vmatprep.mubr.bf16.mxu0 0
    %4531 = vmatmul.mubr.bf16.gmra.mrb[0].mxu0 %v4303
    %v4532 = vpop.f32.mrb[0].mxu0
    %v4533 = vadd.f32 %v4216, %v4532
    %v4534 = vpop.f32.mrb[0].mxu0
    %v4535 = vpop.f32.mrb[0].mxu0
    %v4536 = vadd.f32 %v4216, %v4535
    %v4537 = vpop.f32.mrb[0].mxu0
    %4538 = vmatprep.mubr.bf16.mxu0 0
    %4539 = vmatmul.mubr.bf16.gmra.mrb[0].mxu0 %v4306
    %v4540 = vpop.f32.mrb[0].mxu0
    %v4541 = vadd.f32 %v4216, %v4540
    %v4542 = vpop.f32.mrb[0].mxu0
    %v4543 = vpop.f32.mrb[0].mxu0
    %v4544 = vadd.f32 %v4216, %v4543
    %v4545 = vpop.f32.mrb[0].mxu0
    %4546 = vmatprep.mubr.bf16.mxu0 0
    %4547 = vmatmul.mubr.bf16.gmra.mrb[0].mxu0 %v4309
    %v4548 = vpop.f32.mrb[0].mxu0
    %v4549 = vadd.f32 %v4216, %v4548
    %v4550 = vpop.f32.mrb[0].mxu0
    %v4551 = vpop.f32.mrb[0].mxu0
    %v4552 = vadd.f32 %v4216, %v4551
    %v4553 = vpop.f32.mrb[0].mxu0
    %4554 = vmatprep.mubr.bf16.mxu0 0
    %4555 = vmatmul.mubr.bf16.gmra.mrb[0].mxu0 %v4312
    %v4556 = vpop.f32.mrb[0].mxu0
    %v4557 = vadd.f32 %v4216, %v4556
    %v4558 = vpop.f32.mrb[0].mxu0
    %v4559 = vpop.f32.mrb[0].mxu0
    %v4560 = vadd.f32 %v4216, %v4559
    %v4561 = vpop.f32.mrb[0].mxu0
    %4562 = vmatprep.mubr.bf16.mxu0 0
    %4563 = vmatmul.mubr.bf16.gmra.mrb[0].mxu0 %v4315
    %v4564 = vpop.f32.mrb[0].mxu0
    %v4565 = vadd.f32 %v4216, %v4564
    %v4566 = vpop.f32.mrb[0].mxu0
    %v4567 = vpop.f32.mrb[0].mxu0
    %v4568 = vadd.f32 %v4216, %v4567
    %v4569 = vpop.f32.mrb[0].mxu0
    %4570 = vmatprep.mubr.bf16.mxu0 0
    %4571 = vmatmul.mubr.bf16.gmra.mrb[0].mxu0 %v4318
    %v4572 = vpop.f32.mrb[0].mxu0
    %v4573 = vadd.f32 %v4216, %v4572
    %v4574 = vpop.f32.mrb[0].mxu0
    %v4575 = vpop.f32.mrb[0].mxu0
    %v4576 = vadd.f32 %v4216, %v4575
    %v4577 = vpop.f32.mrb[0].mxu0
    %4578 = vmatprep.mubr.bf16.mxu0 0
    %4579 = vmatmul.mubr.bf16.gmra.mrb[0].mxu0 %v4321
    %v4580 = vpop.f32.mrb[0].mxu0
    %v4581 = vadd.f32 %v4216, %v4580
    %v4582 = vpop.f32.mrb[0].mxu0
    %v4583 = vpop.f32.mrb[0].mxu0
    %v4584 = vadd.f32 %v4216, %v4583
    %v4585 = vpop.f32.mrb[0].mxu0
    %4586 = vmatprep.mubr.bf16.mxu0 0
    %4587 = vmatmul.mubr.bf16.gmra.mrb[0].mxu0 %v4324
    %v4588 = vpop.f32.mrb[0].mxu0
    %v4589 = vadd.f32 %v4216, %v4588
    %v4590 = vpop.f32.mrb[0].mxu0
    %v4591 = vpop.f32.mrb[0].mxu0
    %v4592 = vadd.f32 %v4216, %v4591
    %v4593 = vpop.f32.mrb[0].mxu0
    %4594 = vmatprep.mubr.bf16.mxu0 0
    %4595 = vmatmul.mubr.bf16.gmra.mrb[0].mxu0 %v4327
    %v4596 = vpop.f32.mrb[0].mxu0
    %v4597 = vadd.f32 %v4216, %v4596
    %v4598 = vpop.f32.mrb[0].mxu0
    %v4599 = vpop.f32.mrb[0].mxu0
    %v4600 = vadd.f32 %v4216, %v4599
    %v4601 = vpop.f32.mrb[0].mxu0
    %4602 = vmatprep.mubr.bf16.mxu0 0
    %4603 = vmatmul.mubr.bf16.gmra.mrb[0].mxu0 %v4330
    %v4604 = vpop.f32.mrb[0].mxu0
    %v4605 = vadd.f32 %v4216, %v4604
    %v4606 = vpop.f32.mrb[0].mxu0
    %v4607 = vpop.f32.mrb[0].mxu0
    %v4608 = vadd.f32 %v4216, %v4607
    %v4609 = vpop.f32.mrb[0].mxu0
    %4610 = vmatprep.mubr.bf16.mxu0 0
    %4611 = vmatmul.mubr.bf16.gmra.mrb[0].mxu0 %v4333
    %v4612 = vpop.f32.mrb[0].mxu0
    %v4613 = vadd.f32 %v4216, %v4612
    %v4614 = vpop.f32.mrb[0].mxu0
    %v4615 = vpop.f32.mrb[0].mxu0
    %v4616 = vadd.f32 %v4216, %v4615
    %v4617 = vpop.f32.mrb[0].mxu0
    %4618 = vmatprep.mubr.bf16.mxu0 0
    %4619 = vmatmul.mubr.bf16.gmra.mrb[0].mxu0 %v4336
    %v4620 = vpop.f32.mrb[0].mxu0
    %v4621 = vadd.f32 %v4216, %v4620
    %v4622 = vpop.f32.mrb[0].mxu0
    %v4623 = vpop.f32.mrb[0].mxu0
    %v4624 = vadd.f32 %v4216, %v4623
    %v4625 = vpop.f32.mrb[0].mxu0
    %4626 = vdwg.mxu0
    %4627 = vst [vmem:[#allocation2] sm:$0xff] %v4373
    %4628 = vst [vmem:[#allocation2 + $0x8] sm:$0xff] %v4376
    %4629 = vst [vmem:[#allocation2 + $0x10] sm:$0xff] %v4381
    %4630 = vst [vmem:[#allocation2 + $0x18] sm:$0xff] %v4384
    %4631 = vst [vmem:[#allocation2 + $0x20] sm:$0xff] %v4389
    %4632 = vst [vmem:[#allocation2 + $0x28] sm:$0xff] %v4392
    %4633 = vst [vmem:[#allocation2 + $0x30] sm:$0xff] %v4397
    %4634 = vst [vmem:[#allocation2 + $0x38] sm:$0xff] %v4400
    %4635 = vst [vmem:[#allocation2 + $0x40] sm:$0xff] %v4405
    %4636 = vst [vmem:[#allocation2 + $0x48] sm:$0xff] %v4408
    %4637 = vst [vmem:[#allocation2 + $0x50] sm:$0xff] %v4413
    %4638 = vst [vmem:[#allocation2 + $0x58] sm:$0xff] %v4416
    %4639 = vst [vmem:[#allocation2 + $0x60] sm:$0xff] %v4421
    %4640 = vst [vmem:[#allocation2 + $0x68] sm:$0xff] %v4424
    %4641 = vst [vmem:[#allocation2 + $0x70] sm:$0xff] %v4429
    %4642 = vst [vmem:[#allocation2 + $0x78] sm:$0xff] %v4432
    %4643 = vst [vmem:[#allocation2 + $0x80] sm:$0xff] %v4437
    %4644 = vst [vmem:[#allocation2 + $0x88] sm:$0xff] %v4440
    %4645 = vst [vmem:[#allocation2 + $0x90] sm:$0xff] %v4445
    %4646 = vst [vmem:[#allocation2 + $0x98] sm:$0xff] %v4448
    %4647 = vst [vmem:[#allocation2 + $0xa0] sm:$0xff] %v4453
    %4648 = vst [vmem:[#allocation2 + $0xa8] sm:$0xff] %v4456
    %4649 = vst [vmem:[#allocation2 + $0xb0] sm:$0xff] %v4461
    %4650 = vst [vmem:[#allocation2 + $0xb8] sm:$0xff] %v4464
    %4651 = vst [vmem:[#allocation2 + $0xc0] sm:$0xff] %v4469
    %4652 = vst [vmem:[#allocation2 + $0xc8] sm:$0xff] %v4472
    %4653 = vst [vmem:[#allocation2 + $0xd0] sm:$0xff] %v4477
    %4654 = vst [vmem:[#allocation2 + $0xd8] sm:$0xff] %v4480
    %4655 = vst [vmem:[#allocation2 + $0xe0] sm:$0xff] %v4485
    %4656 = vst [vmem:[#allocation2 + $0xe8] sm:$0xff] %v4488
    %4657 = vst [vmem:[#allocation2 + $0xf0] sm:$0xff] %v4493
    %4658 = vst [vmem:[#allocation2 + $0xf8] sm:$0xff] %v4496
    %4659 = vst [vmem:[#allocation2 + $0x100] sm:$0xff] %v4501
    %4660 = vst [vmem:[#allocation2 + $0x108] sm:$0xff] %v4504
    %4661 = vst [vmem:[#allocation2 + $0x110] sm:$0xff] %v4509
    %4662 = vst [vmem:[#allocation2 + $0x118] sm:$0xff] %v4512
    %4663 = vst [vmem:[#allocation2 + $0x120] sm:$0xff] %v4517
    %4664 = vst [vmem:[#allocation2 + $0x128] sm:$0xff] %v4520
    %4665 = vst [vmem:[#allocation2 + $0x130] sm:$0xff] %v4525
    %4666 = vst [vmem:[#allocation2 + $0x138] sm:$0xff] %v4528
    %4667 = vst [vmem:[#allocation2 + $0x140] sm:$0xff] %v4533
    %4668 = vst [vmem:[#allocation2 + $0x148] sm:$0xff] %v4536
    %4669 = vst [vmem:[#allocation2 + $0x150] sm:$0xff] %v4541
    %4670 = vst [vmem:[#allocation2 + $0x158] sm:$0xff] %v4544
    %4671 = vst [vmem:[#allocation2 + $0x160] sm:$0xff] %v4549
    %4672 = vst [vmem:[#allocation2 + $0x168] sm:$0xff] %v4552
    %4673 = vst [vmem:[#allocation2 + $0x170] sm:$0xff] %v4557
    %4674 = vst [vmem:[#allocation2 + $0x178] sm:$0xff] %v4560
    %4675 = vst [vmem:[#allocation2 + $0x180] sm:$0xff] %v4565
    %4676 = vst [vmem:[#allocation2 + $0x188] sm:$0xff] %v4568
    %4677 = vst [vmem:[#allocation2 + $0x190] sm:$0xff] %v4573
    %4678 = vst [vmem:[#allocation2 + $0x198] sm:$0xff] %v4576
    %4679 = vst [vmem:[#allocation2 + $0x1a0] sm:$0xff] %v4581
    %4680 = vst [vmem:[#allocation2 + $0x1a8] sm:$0xff] %v4584
    %4681 = vst [vmem:[#allocation2 + $0x1b0] sm:$0xff] %v4589
    %4682 = vst [vmem:[#allocation2 + $0x1b8] sm:$0xff] %v4592
    %4683 = vst [vmem:[#allocation2 + $0x1c0] sm:$0xff] %v4597
    %4684 = vst [vmem:[#allocation2 + $0x1c8] sm:$0xff] %v4600
    %4685 = vst [vmem:[#allocation2 + $0x1d0] sm:$0xff] %v4605
    %4686 = vst [vmem:[#allocation2 + $0x1d8] sm:$0xff] %v4608
    %4687 = vst [vmem:[#allocation2 + $0x1e0] sm:$0xff] %v4613
    %4688 = vst [vmem:[#allocation2 + $0x1e8] sm:$0xff] %v4616
    %4689 = vst [vmem:[#allocation2 + $0x1f0] sm:$0xff] %v4621
    %4690 = vst [vmem:[#allocation2 + $0x1f8] sm:$0xff] %v4624
    // Predicated region
    $region54: #{sindy_forward.1} parent=1 // pred_check
      _
    $region55: #{sindy_forward.1} parent=1 // pred_check_branch
      %4692 = sbr.rel (0) target = $region57
    $region56: #{sindy_forward.1} parent=1 // pred_region
      %s4694 = ssub.s32 8192, 8192
      %4695 = vsyncadd [#allocation3], %s4694
      %s4696 = sshll.u32 [#allocation2], 4
      %s4697 = int_to_ptr.vmem [resolvable:$true] %s4696
      %4702 = dma.vmem_to_hbm [thread:$0]  %s4697, 8192, %s13, [#allocation3], 128, 128, 8
    $region57: #{sindy_forward.1} parent=1 // pred_fallthru
      _
    // Predicated region
    $region58: #{sindy_forward.1} parent=1 // pred_check
      _
    $region59: #{sindy_forward.1} parent=1 // pred_check_branch
      %4704 = sbr.rel (0) target = $region61
    $region60: #{sindy_forward.1} parent=1 // pred_region
      _
    $region61: #{sindy_forward.1} parent=1 // pred_fallthru
      _
    // Predicated region
    $region62: #{sindy_forward.1} parent=1 // pred_check
      _
    $region63: #{sindy_forward.1} parent=1 // pred_check_branch
      %4706 = sbr.rel (0) target = $region65
    $region64: #{sindy_forward.1} parent=1 // pred_region
      %4707 = dma.done [#allocation3], 8192
    $region65: #{sindy_forward.1} parent=1 // pred_fallthru
      _
    // Predicated region
    $region66: #{sindy_forward.1} parent=1 // pred_check
      _
    $region67: #{sindy_forward.1} parent=1 // pred_check_branch
      %4709 = sbr.rel (0) target = $region69
    $region68: #{sindy_forward.1} parent=1 // pred_region
      _
    $region69: #{sindy_forward.1} parent=1 // pred_fallthru
      _
    %4710 = vsyncpa [#allocation3], 1

</llo_original>
